<compile_context>
chip_gen: v7x
topology: tpu7x:2x2x1
jax: 0.10.0
libtpu: 0.0.40
codegen_flags: <defaults>
</compile_context>

<pallas_src>
import jax
import jax.numpy as jnp
import numpy as np
from jax.experimental import pallas as pl
from jax.experimental.pallas import tpu as pltpu

EXPANSION = 4
EPS = 1e-5
LANE = 128  # channel dims are zero-padded to a multiple of the TPU lane width


def _round_up(x, m):
    return (x + m - 1) // m * m


# ---------------------------------------------------------------------------
# Fused Pallas kernel: one grid step = (batch n, row tile i)
# ---------------------------------------------------------------------------
def _bottleneck_kernel(xb_ref, xt_ref, xd_ref,
                       w1_ref, b1_ref, w2_ref, b2_ref, w3_ref, b3_ref,
                       out_ref, y1p_ref):
    TH, W, Cp = xb_ref.shape        # body tile: (tile_h, W, padded Cin) bf16
    Pp = w1_ref.shape[1]            # padded planes
    Co = w3_ref.shape[1]            # padded Cout (== Cp for the residual add)
    Wp2 = W + 2                     # column-padded row length in the scratch
    L = TH * Wp2                    # flat length of one conv2 output band
    i = pl.program_id(1)
    last = pl.num_programs(1) - 1
    f32 = jnp.float32
    bf16 = jnp.bfloat16

    def conv1(x2d):                 # (rows, Cp) bf16 -> (rows, Pp) f32; BN+ReLU fused
        y = jnp.dot(x2d, w1_ref[...], preferred_element_type=f32)
        return jnp.maximum(y + b1_ref[...], 0.0)

    # --- conv1 + bn1 + relu into the flat bf16 scratch --------------------
    # Flat layout: logical (row, col), row in [-1, TH], col in [-1, W], lives
    # at flat index 1 + (row+1)*Wp2 + (col+1); index 0 and S-1 are guard rows.
    # One aligned full clear provides every zero border / gap / guard row;
    # data stores below all start on even rows (bf16 pairs never split).
    y1p_ref[...] = jnp.zeros_like(y1p_ref)

    yb = conv1(xb_ref[...].reshape(TH * W, Cp)).astype(bf16)      # (TH*W, Pp)
    for h in range(TH):                                           # body rows
        off = (h + 1) * Wp2 + 2
        y1p_ref[off:off + W, :] = yb[h * W:(h + 1) * W, :]

    @pl.when(i > 0)                                               # top halo row
    def _():
        y1p_ref[2:2 + W, :] = conv1(xt_ref[...].reshape(W, Cp)).astype(bf16)

    @pl.when(i < last)                                            # bottom halo row
    def _():
        off = (TH + 1) * Wp2 + 2
        y1p_ref[off:off + W, :] = conv1(xd_ref[...].reshape(W, Cp)).astype(bf16)

    # --- conv2 (3x3, SAME) + bn2 + relu ------------------------------------
    # Each row offset dy needs the contiguous flat band [dy*Wp2, dy*Wp2+L+2);
    # it is loaded once (bf16, even offset) and reused for the three column
    # taps.  The +-1 column shift is a static slice of the f32 matmul result,
    # and the accumulation is a local chained sum (no scratch RMW).
    acc = None
    for dy in range(3):
        band = y1p_ref[dy * Wp2:dy * Wp2 + L + 2, :]               # (L+2, Pp) bf16
        for dx in range(3):
            c = jnp.dot(band, w2_ref[3 * dy + dx],
                        preferred_element_type=f32)                # (L+2, Pp) f32
            c = c[dx:dx + L, :]
            acc = c if acc is None else acc + c
    y2 = jnp.maximum(acc + b2_ref[...], 0.0)                       # (L, Pp) f32

    # Drop the two junk border columns carried per row by the padded layout.
    y2 = jnp.concatenate(
        [y2[h * Wp2 + 1:h * Wp2 + 1 + W, :] for h in range(TH)], axis=0)
    y2 = y2.astype(bf16)                                           # (TH*W, Pp)

    # --- conv3 (1x1) + bn3 + residual (x tile already in VMEM) + relu ------
    y3 = jnp.dot(y2, w3_ref[...], preferred_element_type=f32) + b3_ref[...]
    res = xb_ref[...].astype(f32).reshape(TH * W, Co)              # Cin == Cout
    out_ref[...] = (jnp.maximum(y3 + res, 0.0)
                    .reshape(TH, W, Co).astype(out_ref.dtype))


# ---------------------------------------------------------------------------
# Wrapper helpers: BN folding, channel padding, VMEM budgeting, BlockSpecs
# ---------------------------------------------------------------------------
def _full_spec(shape):
    nd = len(shape)
    return pl.BlockSpec(shape, lambda n, i, _nd=nd: (0,) * _nd)


def _vmem_estimate(TH, W, Cp, Pp, Cpo):
    """Rough per-step VMEM footprint (bytes): double-buffered I/O blocks,
    double-buffered weights, the flat conv1 scratch and the live f32 values."""
    Wp2 = W + 2
    L = TH * Wp2
    S = (TH + 2) * Wp2 + 2
    io = 2 * (TH * W * Cp + 2 * W * Cp + TH * W * Cpo) * 2          # bf16 blocks
    wts = 2 * (Cp * Pp + 9 * Pp * Pp + Pp * Cpo) * 2 + 2 * (2 * Pp + Cpo) * 4
    scratch = S * Pp * 2
    live = 2 * L * Pp * 4 + (L + 2) * Pp * 6 + TH * W * Pp * 4      # acc/contrib/band/y2
    return io + wts + scratch + live


def _pick_tile_h(N, H, W, Cp, Pp, Cpo, budget=20 << 20, min_steps=4):
    divisors = [d for d in range(1, H + 1) if H % d == 0]
    fits = [d for d in divisors if _vmem_estimate(d, W, Cp, Pp, Cpo) <= budget]
    th = max(fits) if fits else 1
    # keep enough grid steps so both v7x TensorCores get work
    while th > 1 and N * (H // th) < min_steps:
        smaller = [d for d in divisors if d < th]
        if not smaller:
            break
        th = max(smaller)
    return th


def _fold_params(p):
    planes = p["w1"].shape[1]
    Cin = p["w1"].shape[0]
    Cout = p["w3"].shape[1]

    s1 = p["g1"] / jnp.sqrt(p["v1"] + EPS)
    b1 = p["b1"] - p["m1"] * s1
    s2 = p["g2"] / jnp.sqrt(p["v2"] + EPS)
    b2 = p["b2"] + (p["conv2_bias"] - p["m2"]) * s2      # conv2 bias folded in
    s3 = p["g3"] / jnp.sqrt(p["v3"] + EPS)
    b3 = p["b3"] - p["m3"] * s3

    Cp = _round_up(Cin, LANE)
    Pp = _round_up(planes, LANE)
    Cpo = _round_up(Cout, LANE)

    w1 = p["w1"] * s1[None, :]
    w2 = p["w2"].reshape(9, planes, planes) * s2[None, None, :]
    w3 = p["w3"] * s3[None, :]

    def pad2(a, r, c):
        return jnp.pad(a, ((0, r - a.shape[0]), (0, c - a.shape[1])))

    fp = dict(
        w1=pad2(w1, Cp, Pp).astype(jnp.bfloat16),
        w2=jnp.pad(w2, ((0, 0), (0, Pp - planes), (0, Pp - planes))).astype(jnp.bfloat16),
        w3=pad2(w3, Pp, Cpo).astype(jnp.bfloat16),
        b1=jnp.pad(b1, (0, Pp - planes)).reshape(1, Pp).astype(jnp.float32),
        b2=jnp.pad(b2, (0, Pp - planes)).reshape(1, Pp).astype(jnp.float32),
        b3=jnp.pad(b3, (0, Cpo - Cout)).reshape(1, Cpo).astype(jnp.float32),
    )
    return fp, (Cin, Cout, Cp, Pp, Cpo)


def bottleneck_nhwc(xp, fp, tile_h=None):
    """Core fused block.  xp: (N, H, W, Cp) bf16, channel-padded NHWC.
    Returns (N, H, W, Cpo) bf16, channel-padded NHWC (keep this format when
    stacking blocks so no HBM transpose / un-pad passes sit between kernels)."""
    N, H, W, Cp = xp.shape
    Pp = fp["w1"].shape[1]
    Cpo = fp["w3"].shape[1]
    assert Cp == Cpo, "residual add requires padded Cin == padded Cout"
    assert W % 8 == 0, "pad W to a multiple of 8 (TODO(synk): auto-pad odd widths)"

    TH = _pick_tile_h(N, H, W, Cp, Pp, Cpo) if tile_h is None else tile_h
    assert H % TH == 0, "tile_h must divide H"
    nH = H // TH
    grid = (N, nH)

    # Body tile (also the residual) + two 1-row halo views of the same input
    # (clamped at the image edges; the edge halo rows stay zero in the scratch).
    body_spec = pl.BlockSpec((None, TH, W, Cp), lambda n, i: (n, i, 0, 0))
    top_spec = pl.BlockSpec((None, 1, W, Cp),
                            lambda n, i: (n, jnp.maximum(i * TH - 1, 0), 0, 0))
    bot_spec = pl.BlockSpec((None, 1, W, Cp),
                            lambda n, i: (n, jnp.minimum(i * TH + TH, H - 1), 0, 0))
    out_spec = pl.BlockSpec((None, TH, W, Cpo), lambda n, i: (n, i, 0, 0))

    S = (TH + 2) * (W + 2) + 2
    vmem_limit = int(min(max(2 * _vmem_estimate(TH, W, Cp, Pp, Cpo), 32 << 20),
                         48 << 20))

    return pl.pallas_call(
        _bottleneck_kernel,
        out_shape=jax.ShapeDtypeStruct((N, H, W, Cpo), jnp.bfloat16),
        grid_spec=pltpu.PrefetchScalarGridSpec(
            num_scalar_prefetch=0,
            grid=grid,
            in_specs=[body_spec, top_spec, bot_spec,
                      _full_spec((Cp, Pp)), _full_spec((1, Pp)),
                      _full_spec((9, Pp, Pp)), _full_spec((1, Pp)),
                      _full_spec((Pp, Cpo)), _full_spec((1, Cpo))],
            out_specs=out_spec,
            scratch_shapes=[pltpu.VMEM((S, Pp), jnp.bfloat16)]),
        compiler_params=pltpu.CompilerParams(
            dimension_semantics=("parallel", "parallel"),
            vmem_limit_bytes=vmem_limit),
    )(xp, xp, xp, fp["w1"], fp["b1"], fp["w2"], fp["b2"], fp["w3"], fp["b3"])


def bottleneck_forward(x_nchw, p, tile_h=None):
    """Public PyTorch-convention boundary: NCHW f32 in / NCHW f32 out."""
    fp, (Cin, Cout, Cp, Pp, Cpo) = _fold_params(p)
    assert Cin == Cout, "residual add requires inplanes == planes * expansion"

    x = jnp.transpose(x_nchw, (0, 2, 3, 1))                        # NCHW -> NHWC
    if Cp != Cin:
        x = jnp.pad(x, ((0, 0), (0, 0), (0, 0), (0, Cp - Cin)))
    x = x.astype(jnp.bfloat16)

    out = bottleneck_nhwc(x, fp, tile_h=tile_h)

    out = out[..., :Cout].astype(jnp.float32)
    return jnp.transpose(out, (0, 3, 1, 2))                        # NHWC -> NCHW


# ---------------------------------------------------------------------------
# Parameters (deterministic, in-script) and pure-JAX reference
# ---------------------------------------------------------------------------
def init_bottleneck_params(key, inplanes, planes):
    ks = jax.random.split(key, 7)
    p = {}
    p["w1"] = 0.1 * jax.random.normal(ks[0], (inplanes, planes), jnp.float32)
    p["w2"] = 0.1 * jax.random.normal(ks[1], (3, 3, planes, planes), jnp.float32)
    p["conv2_bias"] = 0.1 * jax.random.normal(ks[2], (planes,), jnp.float32)
    p["w3"] = 0.1 * jax.random.normal(ks[3], (planes, planes * EXPANSION),
                                      jnp.float32)

    def bn(kk, c):
        k1, k2, k3, k4 = jax.random.split(kk, 4)
        gamma = 1.0 + 0.1 * jax.random.normal(k1, (c,), jnp.float32)
        beta = 0.1 * jax.random.normal(k2, (c,), jnp.float32)
        mean = 0.1 * jax.random.normal(k3, (c,), jnp.float32)
        var = 0.5 + jnp.abs(jax.random.normal(k4, (c,), jnp.float32))
        return gamma, beta, mean, var

    p["g1"], p["b1"], p["m1"], p["v1"] = bn(ks[4], planes)
    p["g2"], p["b2"], p["m2"], p["v2"] = bn(ks[5], planes)
    p["g3"], p["b3"], p["m3"], p["v3"] = bn(ks[6], planes * EXPANSION)
    return p


def bottleneck_reference(x_nchw, p):
    x = jnp.transpose(x_nchw, (0, 2, 3, 1)).astype(jnp.float32)
    dn = ("NHWC", "HWIO", "NHWC")

    def bn(y, g, b, m, v):
        return (y - m) / jnp.sqrt(v + EPS) * g + b

    out = jax.lax.conv_general_dilated(x, p["w1"][None, None], (1, 1), "VALID",
                                       dimension_numbers=dn)
    out = jax.nn.relu(bn(out, p["g1"], p["b1"], p["m1"], p["v1"]))
    out = jax.lax.conv_general_dilated(out, p["w2"], (1, 1), "SAME",
                                       dimension_numbers=dn) + p["conv2_bias"]
    out = jax.nn.relu(bn(out, p["g2"], p["b2"], p["m2"], p["v2"]))
    out = jax.lax.conv_general_dilated(out, p["w3"][None, None], (1, 1), "VALID",
                                       dimension_numbers=dn)
    out = bn(out, p["g3"], p["b3"], p["m3"], p["v3"])
    out = jax.nn.relu(out + x)
    return jnp.transpose(out, (0, 3, 1, 2))


if __name__ == "__main__":
    key = jax.random.PRNGKey(0)
    k_x, k_p = jax.random.split(key)

    N, planes = 2, 4
    inplanes = planes * EXPANSION   # 16, so the residual add is well defined
    H = W = 16

    x = jax.random.normal(k_x, (N, inplanes, H, W), jnp.float32)   # NCHW input
    params = init_bottleneck_params(k_p, inplanes, planes)

    fwd = jax.jit(bottleneck_forward, static_argnames=("tile_h",))
    # tile_h=8 -> 2 row tiles per image, exercising the inter-tile halo path.
    out = jax.block_until_ready(fwd(x, params, tile_h=8))
    ref = jax.block_until_ready(bottleneck_reference(x, params))

    assert out.shape == (N, inplanes, H, W)
    # bf16 activations/weights end-to-end (f32 accumulation) vs. a pure-f32
    # reference -> a few-percent-level tolerance.
    if not np.allclose(np.asarray(out), np.asarray(ref), atol=5e-2, rtol=5e-2):
        raise AssertionError("Pallas Bottleneck does not match JAX reference")
    print("KERNEL_OK")
</pallas_src>

<mosaic_0001>
module attributes {stable_mosaic.version = 11 : i64} {
  func.func @_bottleneck_kernel(%arg0: i32, %arg1: i32, %arg2: memref<1x8x16x128xbf16, #tpu.memory_space<vmem>>, %arg3: memref<1x1x16x128xbf16, #tpu.memory_space<vmem>>, %arg4: memref<1x1x16x128xbf16, #tpu.memory_space<vmem>>, %arg5: memref<128x128xbf16, #tpu.memory_space<vmem>>, %arg6: memref<1x128xf32, #tpu.memory_space<vmem>>, %arg7: memref<9x128x128xbf16, #tpu.memory_space<vmem>>, %arg8: memref<1x128xf32, #tpu.memory_space<vmem>>, %arg9: memref<128x128xbf16, #tpu.memory_space<vmem>>, %arg10: memref<1x128xf32, #tpu.memory_space<vmem>>, %arg11: memref<1x8x16x128xbf16, #tpu.memory_space<vmem>>, %arg12: memref<182x128xbf16, #tpu.memory_space<vmem>>) attributes {dimension_semantics = [#tpu.dimension_semantics<parallel>, #tpu.dimension_semantics<parallel>], iteration_bounds = array<i64: 2, 2>, scalar_prefetch = 0 : i64, scratch_operands = 1 : i64, tpu.core_type = #tpu.core_type<tc>, window_params = [{transform_indices = @transform_0, window_bounds = array<i64: 1, 8, 16, 128>}, {transform_indices = @transform_1, window_bounds = array<i64: 1, 1, 16, 128>}, {transform_indices = @transform_2, window_bounds = array<i64: 1, 1, 16, 128>}, {pipeline_mode = #tpu.pipeline_mode<synchronous>, transform_indices = @transform_3, window_bounds = array<i64: 128, 128>}, {pipeline_mode = #tpu.pipeline_mode<synchronous>, transform_indices = @transform_4, window_bounds = array<i64: 1, 128>}, {pipeline_mode = #tpu.pipeline_mode<synchronous>, transform_indices = @transform_5, window_bounds = array<i64: 9, 128, 128>}, {pipeline_mode = #tpu.pipeline_mode<synchronous>, transform_indices = @transform_6, window_bounds = array<i64: 1, 128>}, {pipeline_mode = #tpu.pipeline_mode<synchronous>, transform_indices = @transform_7, window_bounds = array<i64: 128, 128>}, {pipeline_mode = #tpu.pipeline_mode<synchronous>, transform_indices = @transform_8, window_bounds = array<i64: 1, 128>}, {transform_indices = @transform_9, window_bounds = array<i64: 1, 8, 16, 128>}]} {
    %cst = arith.constant 0.000000e+00 : bf16
    %0 = vector.broadcast %cst : bf16 to vector<182x128xbf16>
    %c0 = arith.constant 0 : index
    %c0_0 = arith.constant 0 : index
    %1 = vector.load %arg12[%c0, %c0_0] : memref<182x128xbf16, #tpu.memory_space<vmem>>, vector<182x128xbf16>
    tpu.vector_store %arg12[%c0, %c0_0], %0 {strides = array<i32>} : memref<182x128xbf16, #tpu.memory_space<vmem>>, vector<182x128xbf16>,
    %c0_1 = arith.constant 0 : index
    %c0_2 = arith.constant 0 : index
    %c0_3 = arith.constant 0 : index
    %c0_4 = arith.constant 0 : index
    %2 = vector.load %arg2[%c0_1, %c0_2, %c0_3, %c0_4] : memref<1x8x16x128xbf16, #tpu.memory_space<vmem>>, vector<1x8x16x128xbf16>
    %3 = vector.shape_cast %2 : vector<1x8x16x128xbf16> to vector<8x16x128xbf16>
    %4 = vector.shape_cast %3 : vector<8x16x128xbf16> to vector<128x128xbf16>
    %c0_5 = arith.constant 0 : index
    %c0_6 = arith.constant 0 : index
    %5 = vector.load %arg5[%c0_5, %c0_6] : memref<128x128xbf16, #tpu.memory_space<vmem>>, vector<128x128xbf16>
    %cst_7 = arith.constant dense<0.000000e+00> : vector<128x128xf32>
    %6 = tpu.matmul %4, %5, %cst_7 {dimension_numbers = #tpu.dot_dimension_numbers<[1], [0], [0], [1], [0, 0, 1, 1], [], []>} : vector<128x128xbf16>, vector<128x128xbf16>, vector<128x128xf32> -> vector<128x128xf32>
    %c0_8 = arith.constant 0 : index
    %c0_9 = arith.constant 0 : index
    %7 = vector.load %arg6[%c0_8, %c0_9] : memref<1x128xf32, #tpu.memory_space<vmem>>, vector<1x128xf32>
    %8 = vector.broadcast %7 : vector<1x128xf32> to vector<128x128xf32>
    %9 = arith.addf %6, %8 : vector<128x128xf32>
    %cst_10 = arith.constant 0.000000e+00 : f32
    %10 = vector.broadcast %cst_10 : f32 to vector<128x128xf32>
    %11 = arith.maximumf %9, %10 : vector<128x128xf32>
    %12 = arith.truncf %11 : vector<128x128xf32> to vector<128x128xbf16>
    %13 = vector.extract_strided_slice %12 {offsets = [0, 0], sizes = [16, 128], strides = [1, 1]} : vector<128x128xbf16> to vector<16x128xbf16>
    %c20 = arith.constant 20 : index
    %c0_11 = arith.constant 0 : index
    %14 = vector.load %arg12[%c20, %c0_11] : memref<182x128xbf16, #tpu.memory_space<vmem>>, vector<16x128xbf16>
    tpu.vector_store %arg12[%c20, %c0_11], %13 {strides = array<i32>} : memref<182x128xbf16, #tpu.memory_space<vmem>>, vector<16x128xbf16>,
    %15 = vector.extract_strided_slice %12 {offsets = [16, 0], sizes = [16, 128], strides = [1, 1]} : vector<128x128xbf16> to vector<16x128xbf16>
    %c38 = arith.constant 38 : index
    %c0_12 = arith.constant 0 : index
    %16 = vector.load %arg12[%c38, %c0_12] : memref<182x128xbf16, #tpu.memory_space<vmem>>, vector<16x128xbf16>
    tpu.vector_store %arg12[%c38, %c0_12], %15 {strides = array<i32>} : memref<182x128xbf16, #tpu.memory_space<vmem>>, vector<16x128xbf16>,
    %17 = vector.extract_strided_slice %12 {offsets = [32, 0], sizes = [16, 128], strides = [1, 1]} : vector<128x128xbf16> to vector<16x128xbf16>
    %c56 = arith.constant 56 : index
    %c0_13 = arith.constant 0 : index
    %18 = vector.load %arg12[%c56, %c0_13] : memref<182x128xbf16, #tpu.memory_space<vmem>>, vector<16x128xbf16>
    tpu.vector_store %arg12[%c56, %c0_13], %17 {strides = array<i32>} : memref<182x128xbf16, #tpu.memory_space<vmem>>, vector<16x128xbf16>,
    %19 = vector.extract_strided_slice %12 {offsets = [48, 0], sizes = [16, 128], strides = [1, 1]} : vector<128x128xbf16> to vector<16x128xbf16>
    %c74 = arith.constant 74 : index
    %c0_14 = arith.constant 0 : index
    %20 = vector.load %arg12[%c74, %c0_14] : memref<182x128xbf16, #tpu.memory_space<vmem>>, vector<16x128xbf16>
    tpu.vector_store %arg12[%c74, %c0_14], %19 {strides = array<i32>} : memref<182x128xbf16, #tpu.memory_space<vmem>>, vector<16x128xbf16>,
    %21 = vector.extract_strided_slice %12 {offsets = [64, 0], sizes = [16, 128], strides = [1, 1]} : vector<128x128xbf16> to vector<16x128xbf16>
    %c92 = arith.constant 92 : index
    %c0_15 = arith.constant 0 : index
    %22 = vector.load %arg12[%c92, %c0_15] : memref<182x128xbf16, #tpu.memory_space<vmem>>, vector<16x128xbf16>
    tpu.vector_store %arg12[%c92, %c0_15], %21 {strides = array<i32>} : memref<182x128xbf16, #tpu.memory_space<vmem>>, vector<16x128xbf16>,
    %23 = vector.extract_strided_slice %12 {offsets = [80, 0], sizes = [16, 128], strides = [1, 1]} : vector<128x128xbf16> to vector<16x128xbf16>
    %c110 = arith.constant 110 : index
    %c0_16 = arith.constant 0 : index
    %24 = vector.load %arg12[%c110, %c0_16] : memref<182x128xbf16, #tpu.memory_space<vmem>>, vector<16x128xbf16>
    tpu.vector_store %arg12[%c110, %c0_16], %23 {strides = array<i32>} : memref<182x128xbf16, #tpu.memory_space<vmem>>, vector<16x128xbf16>,
    %25 = vector.extract_strided_slice %12 {offsets = [96, 0], sizes = [16, 128], strides = [1, 1]} : vector<128x128xbf16> to vector<16x128xbf16>
    %c128 = arith.constant 128 : index
    %c0_17 = arith.constant 0 : index
    %26 = vector.load %arg12[%c128, %c0_17] : memref<182x128xbf16, #tpu.memory_space<vmem>>, vector<16x128xbf16>
    tpu.vector_store %arg12[%c128, %c0_17], %25 {strides = array<i32>} : memref<182x128xbf16, #tpu.memory_space<vmem>>, vector<16x128xbf16>,
    %27 = vector.extract_strided_slice %12 {offsets = [112, 0], sizes = [16, 128], strides = [1, 1]} : vector<128x128xbf16> to vector<16x128xbf16>
    %c146 = arith.constant 146 : index
    %c0_18 = arith.constant 0 : index
    %28 = vector.load %arg12[%c146, %c0_18] : memref<182x128xbf16, #tpu.memory_space<vmem>>, vector<16x128xbf16>
    tpu.vector_store %arg12[%c146, %c0_18], %27 {strides = array<i32>} : memref<182x128xbf16, #tpu.memory_space<vmem>>, vector<16x128xbf16>,
    %c0_i32 = arith.constant 0 : i32
    %29 = arith.cmpi sgt, %arg1, %c0_i32 : i32
    %30 = arith.extui %29 : i1 to i32
    %c0_i32_19 = arith.constant 0 : i32
    %31 = arith.cmpi ne, %30, %c0_i32_19 : i32
    scf.if %31 {
      %c0_70 = arith.constant 0 : index
      %c0_71 = arith.constant 0 : index
      %c0_72 = arith.constant 0 : index
      %c0_73 = arith.constant 0 : index
      %114 = vector.load %arg3[%c0_70, %c0_71, %c0_72, %c0_73] : memref<1x1x16x128xbf16, #tpu.memory_space<vmem>>, vector<1x1x16x128xbf16>
      %115 = vector.shape_cast %114 : vector<1x1x16x128xbf16> to vector<1x16x128xbf16>
      %116 = vector.shape_cast %115 : vector<1x16x128xbf16> to vector<16x128xbf16>
      %c0_74 = arith.constant 0 : index
      %c0_75 = arith.constant 0 : index
      %117 = vector.load %arg5[%c0_74, %c0_75] : memref<128x128xbf16, #tpu.memory_space<vmem>>, vector<128x128xbf16>
      %cst_76 = arith.constant dense<0.000000e+00> : vector<16x128xf32>
      %118 = tpu.matmul %116, %117, %cst_76 {dimension_numbers = #tpu.dot_dimension_numbers<[1], [0], [0], [1], [0, 0, 1, 1], [], []>} : vector<16x128xbf16>, vector<128x128xbf16>, vector<16x128xf32> -> vector<16x128xf32>
      %c0_77 = arith.constant 0 : index
      %c0_78 = arith.constant 0 : index
      %119 = vector.load %arg6[%c0_77, %c0_78] : memref<1x128xf32, #tpu.memory_space<vmem>>, vector<1x128xf32>
      %120 = vector.broadcast %119 : vector<1x128xf32> to vector<16x128xf32>
      %121 = arith.addf %118, %120 : vector<16x128xf32>
      %cst_79 = arith.constant 0.000000e+00 : f32
      %122 = vector.broadcast %cst_79 : f32 to vector<16x128xf32>
      %123 = arith.maximumf %121, %122 : vector<16x128xf32>
      %124 = arith.truncf %123 : vector<16x128xf32> to vector<16x128xbf16>
      %c2_80 = arith.constant 2 : index
      %c0_81 = arith.constant 0 : index
      %125 = vector.load %arg12[%c2_80, %c0_81] : memref<182x128xbf16, #tpu.memory_space<vmem>>, vector<16x128xbf16>
      tpu.vector_store %arg12[%c2_80, %c0_81], %124 {strides = array<i32>} : memref<182x128xbf16, #tpu.memory_space<vmem>>, vector<16x128xbf16>,
    } else {
    }
    %c1_i32 = arith.constant 1 : i32
    %32 = arith.cmpi slt, %arg1, %c1_i32 : i32
    %33 = arith.extui %32 : i1 to i32
    %c0_i32_20 = arith.constant 0 : i32
    %34 = arith.cmpi ne, %33, %c0_i32_20 : i32
    scf.if %34 {
      %c0_70 = arith.constant 0 : index
      %c0_71 = arith.constant 0 : index
      %c0_72 = arith.constant 0 : index
      %c0_73 = arith.constant 0 : index
      %114 = vector.load %arg4[%c0_70, %c0_71, %c0_72, %c0_73] : memref<1x1x16x128xbf16, #tpu.memory_space<vmem>>, vector<1x1x16x128xbf16>
      %115 = vector.shape_cast %114 : vector<1x1x16x128xbf16> to vector<1x16x128xbf16>
      %116 = vector.shape_cast %115 : vector<1x16x128xbf16> to vector<16x128xbf16>
      %c0_74 = arith.constant 0 : index
      %c0_75 = arith.constant 0 : index
      %117 = vector.load %arg5[%c0_74, %c0_75] : memref<128x128xbf16, #tpu.memory_space<vmem>>, vector<128x128xbf16>
      %cst_76 = arith.constant dense<0.000000e+00> : vector<16x128xf32>
      %118 = tpu.matmul %116, %117, %cst_76 {dimension_numbers = #tpu.dot_dimension_numbers<[1], [0], [0], [1], [0, 0, 1, 1], [], []>} : vector<16x128xbf16>, vector<128x128xbf16>, vector<16x128xf32> -> vector<16x128xf32>
      %c0_77 = arith.constant 0 : index
      %c0_78 = arith.constant 0 : index
      %119 = vector.load %arg6[%c0_77, %c0_78] : memref<1x128xf32, #tpu.memory_space<vmem>>, vector<1x128xf32>
      %120 = vector.broadcast %119 : vector<1x128xf32> to vector<16x128xf32>
      %121 = arith.addf %118, %120 : vector<16x128xf32>
      %cst_79 = arith.constant 0.000000e+00 : f32
      %122 = vector.broadcast %cst_79 : f32 to vector<16x128xf32>
      %123 = arith.maximumf %121, %122 : vector<16x128xf32>
      %124 = arith.truncf %123 : vector<16x128xf32> to vector<16x128xbf16>
      %c164 = arith.constant 164 : index
      %c0_80 = arith.constant 0 : index
      %125 = vector.load %arg12[%c164, %c0_80] : memref<182x128xbf16, #tpu.memory_space<vmem>>, vector<16x128xbf16>
      tpu.vector_store %arg12[%c164, %c0_80], %124 {strides = array<i32>} : memref<182x128xbf16, #tpu.memory_space<vmem>>, vector<16x128xbf16>,
    } else {
    }
    %c0_21 = arith.constant 0 : index
    %c0_22 = arith.constant 0 : index
    %35 = vector.load %arg12[%c0_21, %c0_22] : memref<182x128xbf16, #tpu.memory_space<vmem>>, vector<146x128xbf16>
    %c0_23 = arith.constant 0 : index
    %c0_24 = arith.constant 0 : index
    %c0_25 = arith.constant 0 : index
    %36 = vector.load %arg7[%c0_23, %c0_24, %c0_25] : memref<9x128x128xbf16, #tpu.memory_space<vmem>>, vector<1x128x128xbf16>
    %37 = vector.shape_cast %36 : vector<1x128x128xbf16> to vector<128x128xbf16>
    %cst_26 = arith.constant dense<0.000000e+00> : vector<146x128xf32>
    %38 = tpu.matmul %35, %37, %cst_26 {dimension_numbers = #tpu.dot_dimension_numbers<[1], [0], [0], [1], [0, 0, 1, 1], [], []>} : vector<146x128xbf16>, vector<128x128xbf16>, vector<146x128xf32> -> vector<146x128xf32>
    %39 = vector.extract_strided_slice %38 {offsets = [0, 0], sizes = [144, 128], strides = [1, 1]} : vector<146x128xf32> to vector<144x128xf32>
    %c1 = arith.constant 1 : index
    %c0_27 = arith.constant 0 : index
    %c0_28 = arith.constant 0 : index
    %40 = vector.load %arg7[%c1, %c0_27, %c0_28] : memref<9x128x128xbf16, #tpu.memory_space<vmem>>, vector<1x128x128xbf16>
    %41 = vector.shape_cast %40 : vector<1x128x128xbf16> to vector<128x128xbf16>
    %cst_29 = arith.constant dense<0.000000e+00> : vector<146x128xf32>
    %42 = tpu.matmul %35, %41, %cst_29 {dimension_numbers = #tpu.dot_dimension_numbers<[1], [0], [0], [1], [0, 0, 1, 1], [], []>} : vector<146x128xbf16>, vector<128x128xbf16>, vector<146x128xf32> -> vector<146x128xf32>
    %43 = vector.extract_strided_slice %42 {offsets = [1, 0], sizes = [144, 128], strides = [1, 1]} : vector<146x128xf32> to vector<144x128xf32>
    %44 = arith.addf %39, %43 : vector<144x128xf32>
    %c2 = arith.constant 2 : index
    %c0_30 = arith.constant 0 : index
    %c0_31 = arith.constant 0 : index
    %45 = vector.load %arg7[%c2, %c0_30, %c0_31] : memref<9x128x128xbf16, #tpu.memory_space<vmem>>, vector<1x128x128xbf16>
    %46 = vector.shape_cast %45 : vector<1x128x128xbf16> to vector<128x128xbf16>
    %cst_32 = arith.constant dense<0.000000e+00> : vector<146x128xf32>
    %47 = tpu.matmul %35, %46, %cst_32 {dimension_numbers = #tpu.dot_dimension_numbers<[1], [0], [0], [1], [0, 0, 1, 1], [], []>} : vector<146x128xbf16>, vector<128x128xbf16>, vector<146x128xf32> -> vector<146x128xf32>
    %48 = vector.extract_strided_slice %47 {offsets = [2, 0], sizes = [144, 128], strides = [1, 1]} : vector<146x128xf32> to vector<144x128xf32>
    %49 = arith.addf %44, %48 : vector<144x128xf32>
    %c18 = arith.constant 18 : index
    %c0_33 = arith.constant 0 : index
    %50 = vector.load %arg12[%c18, %c0_33] : memref<182x128xbf16, #tpu.memory_space<vmem>>, vector<146x128xbf16>
    %c3 = arith.constant 3 : index
    %c0_34 = arith.constant 0 : index
    %c0_35 = arith.constant 0 : index
    %51 = vector.load %arg7[%c3, %c0_34, %c0_35] : memref<9x128x128xbf16, #tpu.memory_space<vmem>>, vector<1x128x128xbf16>
    %52 = vector.shape_cast %51 : vector<1x128x128xbf16> to vector<128x128xbf16>
    %cst_36 = arith.constant dense<0.000000e+00> : vector<146x128xf32>
    %53 = tpu.matmul %50, %52, %cst_36 {dimension_numbers = #tpu.dot_dimension_numbers<[1], [0], [0], [1], [0, 0, 1, 1], [], []>} : vector<146x128xbf16>, vector<128x128xbf16>, vector<146x128xf32> -> vector<146x128xf32>
    %54 = vector.extract_strided_slice %53 {offsets = [0, 0], sizes = [144, 128], strides = [1, 1]} : vector<146x128xf32> to vector<144x128xf32>
    %55 = arith.addf %49, %54 : vector<144x128xf32>
    %c4 = arith.constant 4 : index
    %c0_37 = arith.constant 0 : index
    %c0_38 = arith.constant 0 : index
    %56 = vector.load %arg7[%c4, %c0_37, %c0_38] : memref<9x128x128xbf16, #tpu.memory_space<vmem>>, vector<1x128x128xbf16>
    %57 = vector.shape_cast %56 : vector<1x128x128xbf16> to vector<128x128xbf16>
    %cst_39 = arith.constant dense<0.000000e+00> : vector<146x128xf32>
    %58 = tpu.matmul %50, %57, %cst_39 {dimension_numbers = #tpu.dot_dimension_numbers<[1], [0], [0], [1], [0, 0, 1, 1], [], []>} : vector<146x128xbf16>, vector<128x128xbf16>, vector<146x128xf32> -> vector<146x128xf32>
    %59 = vector.extract_strided_slice %58 {offsets = [1, 0], sizes = [144, 128], strides = [1, 1]} : vector<146x128xf32> to vector<144x128xf32>
    %60 = arith.addf %55, %59 : vector<144x128xf32>
    %c5 = arith.constant 5 : index
    %c0_40 = arith.constant 0 : index
    %c0_41 = arith.constant 0 : index
    %61 = vector.load %arg7[%c5, %c0_40, %c0_41] : memref<9x128x128xbf16, #tpu.memory_space<vmem>>, vector<1x128x128xbf16>
    %62 = vector.shape_cast %61 : vector<1x128x128xbf16> to vector<128x128xbf16>
    %cst_42 = arith.constant dense<0.000000e+00> : vector<146x128xf32>
    %63 = tpu.matmul %50, %62, %cst_42 {dimension_numbers = #tpu.dot_dimension_numbers<[1], [0], [0], [1], [0, 0, 1, 1], [], []>} : vector<146x128xbf16>, vector<128x128xbf16>, vector<146x128xf32> -> vector<146x128xf32>
    %64 = vector.extract_strided_slice %63 {offsets = [2, 0], sizes = [144, 128], strides = [1, 1]} : vector<146x128xf32> to vector<144x128xf32>
    %65 = arith.addf %60, %64 : vector<144x128xf32>
    %c36 = arith.constant 36 : index
    %c0_43 = arith.constant 0 : index
    %66 = vector.load %arg12[%c36, %c0_43] : memref<182x128xbf16, #tpu.memory_space<vmem>>, vector<146x128xbf16>
    %c6 = arith.constant 6 : index
    %c0_44 = arith.constant 0 : index
    %c0_45 = arith.constant 0 : index
    %67 = vector.load %arg7[%c6, %c0_44, %c0_45] : memref<9x128x128xbf16, #tpu.memory_space<vmem>>, vector<1x128x128xbf16>
    %68 = vector.shape_cast %67 : vector<1x128x128xbf16> to vector<128x128xbf16>
    %cst_46 = arith.constant dense<0.000000e+00> : vector<146x128xf32>
    %69 = tpu.matmul %66, %68, %cst_46 {dimension_numbers = #tpu.dot_dimension_numbers<[1], [0], [0], [1], [0, 0, 1, 1], [], []>} : vector<146x128xbf16>, vector<128x128xbf16>, vector<146x128xf32> -> vector<146x128xf32>
    %70 = vector.extract_strided_slice %69 {offsets = [0, 0], sizes = [144, 128], strides = [1, 1]} : vector<146x128xf32> to vector<144x128xf32>
    %71 = arith.addf %65, %70 : vector<144x128xf32>
    %c7 = arith.constant 7 : index
    %c0_47 = arith.constant 0 : index
    %c0_48 = arith.constant 0 : index
    %72 = vector.load %arg7[%c7, %c0_47, %c0_48] : memref<9x128x128xbf16, #tpu.memory_space<vmem>>, vector<1x128x128xbf16>
    %73 = vector.shape_cast %72 : vector<1x128x128xbf16> to vector<128x128xbf16>
    %cst_49 = arith.constant dense<0.000000e+00> : vector<146x128xf32>
    %74 = tpu.matmul %66, %73, %cst_49 {dimension_numbers = #tpu.dot_dimension_numbers<[1], [0], [0], [1], [0, 0, 1, 1], [], []>} : vector<146x128xbf16>, vector<128x128xbf16>, vector<146x128xf32> -> vector<146x128xf32>
    %75 = vector.extract_strided_slice %74 {offsets = [1, 0], sizes = [144, 128], strides = [1, 1]} : vector<146x128xf32> to vector<144x128xf32>
    %76 = arith.addf %71, %75 : vector<144x128xf32>
    %c8 = arith.constant 8 : index
    %c0_50 = arith.constant 0 : index
    %c0_51 = arith.constant 0 : index
    %77 = vector.load %arg7[%c8, %c0_50, %c0_51] : memref<9x128x128xbf16, #tpu.memory_space<vmem>>, vector<1x128x128xbf16>
    %78 = vector.shape_cast %77 : vector<1x128x128xbf16> to vector<128x128xbf16>
    %cst_52 = arith.constant dense<0.000000e+00> : vector<146x128xf32>
    %79 = tpu.matmul %66, %78, %cst_52 {dimension_numbers = #tpu.dot_dimension_numbers<[1], [0], [0], [1], [0, 0, 1, 1], [], []>} : vector<146x128xbf16>, vector<128x128xbf16>, vector<146x128xf32> -> vector<146x128xf32>
    %80 = vector.extract_strided_slice %79 {offsets = [2, 0], sizes = [144, 128], strides = [1, 1]} : vector<146x128xf32> to vector<144x128xf32>
    %81 = arith.addf %76, %80 : vector<144x128xf32>
    %c0_53 = arith.constant 0 : index
    %c0_54 = arith.constant 0 : index
    %82 = vector.load %arg8[%c0_53, %c0_54] : memref<1x128xf32, #tpu.memory_space<vmem>>, vector<1x128xf32>
    %83 = vector.broadcast %82 : vector<1x128xf32> to vector<144x128xf32>
    %84 = arith.addf %81, %83 : vector<144x128xf32>
    %cst_55 = arith.constant 0.000000e+00 : f32
    %85 = vector.broadcast %cst_55 : f32 to vector<144x128xf32>
    %86 = arith.maximumf %84, %85 : vector<144x128xf32>
    %87 = vector.extract_strided_slice %86 {offsets = [1, 0], sizes = [16, 128], strides = [1, 1]} : vector<144x128xf32> to vector<16x128xf32>
    %88 = vector.extract_strided_slice %86 {offsets = [19, 0], sizes = [16, 128], strides = [1, 1]} : vector<144x128xf32> to vector<16x128xf32>
    %89 = vector.extract_strided_slice %86 {offsets = [37, 0], sizes = [16, 128], strides = [1, 1]} : vector<144x128xf32> to vector<16x128xf32>
    %90 = vector.extract_strided_slice %86 {offsets = [55, 0], sizes = [16, 128], strides = [1, 1]} : vector<144x128xf32> to vector<16x128xf32>
    %91 = vector.extract_strided_slice %86 {offsets = [73, 0], sizes = [16, 128], strides = [1, 1]} : vector<144x128xf32> to vector<16x128xf32>
    %92 = vector.extract_strided_slice %86 {offsets = [91, 0], sizes = [16, 128], strides = [1, 1]} : vector<144x128xf32> to vector<16x128xf32>
    %93 = vector.extract_strided_slice %86 {offsets = [109, 0], sizes = [16, 128], strides = [1, 1]} : vector<144x128xf32> to vector<16x128xf32>
    %94 = vector.extract_strided_slice %86 {offsets = [127, 0], sizes = [16, 128], strides = [1, 1]} : vector<144x128xf32> to vector<16x128xf32>
    %95 = tpu.concatenate %87, %88, %89, %90, %91, %92, %93, %94 in 0 : vector<16x128xf32>, vector<16x128xf32>, vector<16x128xf32>, vector<16x128xf32>, vector<16x128xf32>, vector<16x128xf32>, vector<16x128xf32>, vector<16x128xf32> -> vector<128x128xf32>
    %96 = arith.truncf %95 : vector<128x128xf32> to vector<128x128xbf16>
    %c0_56 = arith.constant 0 : index
    %c0_57 = arith.constant 0 : index
    %97 = vector.load %arg9[%c0_56, %c0_57] : memref<128x128xbf16, #tpu.memory_space<vmem>>, vector<128x128xbf16>
    %cst_58 = arith.constant dense<0.000000e+00> : vector<128x128xf32>
    %98 = tpu.matmul %96, %97, %cst_58 {dimension_numbers = #tpu.dot_dimension_numbers<[1], [0], [0], [1], [0, 0, 1, 1], [], []>} : vector<128x128xbf16>, vector<128x128xbf16>, vector<128x128xf32> -> vector<128x128xf32>
    %c0_59 = arith.constant 0 : index
    %c0_60 = arith.constant 0 : index
    %99 = vector.load %arg10[%c0_59, %c0_60] : memref<1x128xf32, #tpu.memory_space<vmem>>, vector<1x128xf32>
    %100 = vector.broadcast %99 : vector<1x128xf32> to vector<128x128xf32>
    %101 = arith.addf %98, %100 : vector<128x128xf32>
    %c0_61 = arith.constant 0 : index
    %c0_62 = arith.constant 0 : index
    %c0_63 = arith.constant 0 : index
    %c0_64 = arith.constant 0 : index
    %102 = vector.load %arg2[%c0_61, %c0_62, %c0_63, %c0_64] : memref<1x8x16x128xbf16, #tpu.memory_space<vmem>>, vector<1x8x16x128xbf16>
    %103 = vector.shape_cast %102 : vector<1x8x16x128xbf16> to vector<8x16x128xbf16>
    %104 = arith.extf %103 : vector<8x16x128xbf16> to vector<8x16x128xf32>
    %105 = vector.shape_cast %104 : vector<8x16x128xf32> to vector<128x128xf32>
    %106 = arith.addf %101, %105 : vector<128x128xf32>
    %cst_65 = arith.constant 0.000000e+00 : f32
    %107 = vector.broadcast %cst_65 : f32 to vector<128x128xf32>
    %108 = arith.maximumf %106, %107 : vector<128x128xf32>
    %109 = vector.shape_cast %108 : vector<128x128xf32> to vector<8x16x128xf32>
    %110 = arith.truncf %109 : vector<8x16x128xf32> to vector<8x16x128xbf16>
    %c0_66 = arith.constant 0 : index
    %c0_67 = arith.constant 0 : index
    %c0_68 = arith.constant 0 : index
    %c0_69 = arith.constant 0 : index
    %111 = vector.load %arg11[%c0_66, %c0_67, %c0_68, %c0_69] : memref<1x8x16x128xbf16, #tpu.memory_space<vmem>>, vector<1x8x16x128xbf16>
    %112 = vector.shape_cast %111 : vector<1x8x16x128xbf16> to vector<8x16x128xbf16>
    %113 = vector.shape_cast %110 : vector<8x16x128xbf16> to vector<1x8x16x128xbf16>
    tpu.vector_store %arg11[%c0_66, %c0_67, %c0_68, %c0_69], %113 {strides = array<i32>} : memref<1x8x16x128xbf16, #tpu.memory_space<vmem>>, vector<1x8x16x128xbf16>,
    return
  }
  func.func @transform_0(%arg0: i32, %arg1: i32) -> (i32, i32, i32, i32) {
    %c0_i32 = arith.constant 0 : i32
    %c0_i32_0 = arith.constant 0 : i32
    %c0_i32_1 = arith.constant 0 : i32
    return %arg0, %arg1, %c0_i32, %c0_i32_0 : i32, i32, i32, i32
  }
  func.func @transform_1(%arg0: i32, %arg1: i32) -> (i32, i32, i32, i32) {
    %c8_i32 = arith.constant 8 : i32
    %0 = arith.muli %arg1, %c8_i32 : i32
    %c1_i32 = arith.constant 1 : i32
    %1 = arith.subi %0, %c1_i32 : i32
    %c0_i32 = arith.constant 0 : i32
    %2 = arith.maxsi %1, %c0_i32 : i32
    %c0_i32_0 = arith.constant 0 : i32
    %c0_i32_1 = arith.constant 0 : i32
    %c0_i32_2 = arith.constant 0 : i32
    return %arg0, %2, %c0_i32_0, %c0_i32_1 : i32, i32, i32, i32
  }
  func.func @transform_2(%arg0: i32, %arg1: i32) -> (i32, i32, i32, i32) {
    %c8_i32 = arith.constant 8 : i32
    %0 = arith.muli %arg1, %c8_i32 : i32
    %c8_i32_0 = arith.constant 8 : i32
    %1 = arith.addi %0, %c8_i32_0 : i32
    %c15_i32 = arith.constant 15 : i32
    %2 = arith.minsi %1, %c15_i32 : i32
    %c0_i32 = arith.constant 0 : i32
    %c0_i32_1 = arith.constant 0 : i32
    %c0_i32_2 = arith.constant 0 : i32
    return %arg0, %2, %c0_i32, %c0_i32_1 : i32, i32, i32, i32
  }
  func.func @transform_3(%arg0: i32, %arg1: i32) -> (i32, i32) {
    %c0_i32 = arith.constant 0 : i32
    %c0_i32_0 = arith.constant 0 : i32
    %c0_i32_1 = arith.constant 0 : i32
    return %c0_i32, %c0_i32_0 : i32, i32
  }
  func.func @transform_4(%arg0: i32, %arg1: i32) -> (i32, i32) {
    %c0_i32 = arith.constant 0 : i32
    %c0_i32_0 = arith.constant 0 : i32
    %c0_i32_1 = arith.constant 0 : i32
    return %c0_i32, %c0_i32_0 : i32, i32
  }
  func.func @transform_5(%arg0: i32, %arg1: i32) -> (i32, i32, i32) {
    %c0_i32 = arith.constant 0 : i32
    %c0_i32_0 = arith.constant 0 : i32
    %c0_i32_1 = arith.constant 0 : i32
    %c0_i32_2 = arith.constant 0 : i32
    return %c0_i32, %c0_i32_0, %c0_i32_1 : i32, i32, i32
  }
  func.func @transform_6(%arg0: i32, %arg1: i32) -> (i32, i32) {
    %c0_i32 = arith.constant 0 : i32
    %c0_i32_0 = arith.constant 0 : i32
    %c0_i32_1 = arith.constant 0 : i32
    return %c0_i32, %c0_i32_0 : i32, i32
  }
  func.func @transform_7(%arg0: i32, %arg1: i32) -> (i32, i32) {
    %c0_i32 = arith.constant 0 : i32
    %c0_i32_0 = arith.constant 0 : i32
    %c0_i32_1 = arith.constant 0 : i32
    return %c0_i32, %c0_i32_0 : i32, i32
  }
  func.func @transform_8(%arg0: i32, %arg1: i32) -> (i32, i32) {
    %c0_i32 = arith.constant 0 : i32
    %c0_i32_0 = arith.constant 0 : i32
    %c0_i32_1 = arith.constant 0 : i32
    return %c0_i32, %c0_i32_0 : i32, i32
  }
  func.func @transform_9(%arg0: i32, %arg1: i32) -> (i32, i32, i32, i32) {
    %c0_i32 = arith.constant 0 : i32
    %c0_i32_0 = arith.constant 0 : i32
    %c0_i32_1 = arith.constant 0 : i32
    return %arg0, %arg1, %c0_i32, %c0_i32_0 : i32, i32, i32, i32
  }
}

</mosaic_0001>

<llo_original>
// kernel: bottleneck_forward.1
$region0: #{bottleneck_forward.1}
  #allocation0 [shape = 'u32[]', space=smem, size = 0x4, offset = 0x4, fixed_abs, tag = 'smem constant byte address 0x4 - core index']
  #allocation1 [shape = 'u32[144,128]{1,0:T(1,128)}', space=vmem, size = 0x12000, scoped, tag = 'internal scratch']
  #allocation2 [shape = 'bf16[182,128]{1,0:T(8,128)(2,1)}', space=vmem, size = 0xb800, scoped, tag = 'scratch operand']
  %s0 = inlined_call_operand.vmem [shape: bf16[2,16,16,128], index: 0, kind: input, shape index: {}, may-alias: {0,1,2}]
  %s1 = inlined_call_operand.vmem [shape: bf16[2,16,16,128], index: 1, kind: input, shape index: {}, may-alias: {0,1,2}]
  %s2 = inlined_call_operand.vmem [shape: bf16[2,16,16,128], index: 2, kind: input, shape index: {}, may-alias: {0,1,2}]
  %s3 = inlined_call_operand.vmem [shape: bf16[128,128], index: 3, kind: input, shape index: {}]
  %s4 = inlined_call_operand.vmem [shape: f32[1,128], index: 4, kind: input, shape index: {}]
  %s5 = inlined_call_operand.vmem [shape: bf16[9,128,128], index: 5, kind: input, shape index: {}]
  %s6 = inlined_call_operand.vmem [shape: f32[1,128], index: 6, kind: input, shape index: {}]
  %s7 = inlined_call_operand.vmem [shape: bf16[128,128], index: 7, kind: input, shape index: {}]
  %s8 = inlined_call_operand.vmem [shape: f32[1,128], index: 8, kind: input, shape index: {}]
  %s9 = inlined_call_operand.vmem [shape: bf16[2,16,16,128], index: 9, kind: output, shape index: {}]
  %s10 = sld [smem:[#allocation0]]
  $region77: #{bottleneck_forward.1} parent=0
    _
  %s12 = ssub.s32 1, %s10
  %s13 = scalar_select 0, %s12, %s10
  loop: start=0, step=1, limit=6
  $region2: #{bottleneck_forward.1} parent=0 // loop_pre_header
    _
  $region3: #{bottleneck_forward.1} parent=0 // loop_header
    %s15 = sphi 0, %s19
    %p16 = scmp.ge.s32.totalorder %s15, 6
    %s22 = sphi 0, %s34
    %s23 = sphi 0, %s30
    %s24 = sphi 0, %s22
    %s25 = sphi 0, %s23
    %s26 = sphi 0, %s24
    %s27 = sphi 0, %s25
    %s39 = sphi 0, %s41
    %s42 = sphi 0, %s39
    %s43 = sphi 0, %s42
    %s59 = sphi 0, %s43
    %s75 = sphi 0, %s77
    %s78 = sphi 0, %s75
    %s79 = sphi 0, %s78
    %s95 = sphi 0, %s79
    %s111 = sphi 0, %s113
    %s114 = sphi 0, %s111
    %s115 = sphi 0, %s114
    %s131 = sphi 0, %s115
    %s135 = sphi 0, %s135
    %s137 = sphi 0, %s135
    %s138 = sphi 0, %s137
    %s152 = sphi 0, %s138
    %s156 = sphi 0, %s156
    %s158 = sphi 0, %s156
    %s159 = sphi 0, %s158
    %s173 = sphi 0, %s159
    %s177 = sphi 0, %s177
    %s179 = sphi 0, %s177
    %s180 = sphi 0, %s179
    %s194 = sphi 0, %s180
    %s198 = sphi 0, %s198
    %s200 = sphi 0, %s198
    %s201 = sphi 0, %s200
    %s215 = sphi 0, %s201
    %s219 = sphi 0, %s219
    %s221 = sphi 0, %s219
    %s222 = sphi 0, %s221
    %s236 = sphi 0, %s222
    %s240 = sphi 0, %s240
    %s242 = sphi 0, %s240
    %s243 = sphi 0, %s242
    %s257 = sphi 0, %s243
    %s265 = sphi 0, %s267
    %s268 = sphi 0, %s265
    %s269 = sphi 0, %s268
    %s285 = sphi 0, %s269
  $region4: #{bottleneck_forward.1} parent=0 // loop_header_branch
    %18 = sbr.rel (%p16) target = $region8
  $region5: #{bottleneck_forward.1} parent=0 // loop_body
    %s20 = ssub.s32 %s15, 1
    %s21 = ssub.s32 %s15, 2
    %s28 = sadd.s32 1, %s23
    %p29 = scmp.ge.s32.totalorder %s28, 2
    %s30 = scalar_select %p29, 0, %s28
    %s31 = sadd.s32 1, %s22
    %s32 = scalar_select %p29, %s31, %s22
    %p33 = scmp.ge.s32.totalorder %s32, 2
    %s34 = scalar_select %p33, 0, %s32
    %s35 = ssub.s32 %s22, %s34
    %s36 = ssub.s32 %s23, %s30
    %s37 = sor.u32 %s35, %s36
    %p38 = scmp.eq.s32.totalorder %s37, 0
    %s40 = sadd.s32 %s39, 1
    %s41 = scalar_select %p38, %s39, %s40
    %p44 = pneg %p38
    %p45 = scmp.eq.s32.totalorder %s15, 3
    %p46 = por %p44, %p45
    %p47 = scmp.ne.s32.totalorder %s39, %s42
    %p48 = scmp.eq.s32.totalorder %s15, 0
    %p49 = por %p47, %p48
    %p50 = scmp.ne.s32.totalorder %s39, %s42
    %p51 = scmp.eq.s32.totalorder %s20, 3
    %p52 = por %p50, %p51
    %p53 = scmp.ne.s32.totalorder %s42, %s43
    %p54 = scmp.eq.s32.totalorder %s20, 0
    %p55 = por %p53, %p54
    %p56 = scmp.ne.s32.totalorder %s42, %s43
    %p57 = scmp.eq.s32.totalorder %s21, 3
    %p58 = por %p56, %p57
    %p60 = scmp.ne.s32.totalorder %s43, %s59
    %p61 = scmp.eq.s32.totalorder %s21, 0
    %p62 = por %p60, %p61
    %s63 = smul.u32 %s23, 8
    %s64 = ssub.s32 %s63, 1
    %p65 = scmp.gt.s32.totalorder %s64, 0
    %s66 = scalar_select %p65, %s64, 0
    %s67 = smul.u32 %s30, 8
    %s68 = ssub.s32 %s67, 1
    %p69 = scmp.gt.s32.totalorder %s68, 0
    %s70 = scalar_select %p69, %s68, 0
    %s71 = ssub.s32 %s22, %s34
    %s72 = ssub.s32 %s66, %s70
    %s73 = sor.u32 %s71, %s72
    %p74 = scmp.eq.s32.totalorder %s73, 0
    %s76 = sadd.s32 %s75, 1
    %s77 = scalar_select %p74, %s75, %s76
    %p80 = pneg %p74
    %p81 = scmp.eq.s32.totalorder %s15, 3
    %p82 = por %p80, %p81
    %p83 = scmp.ne.s32.totalorder %s75, %s78
    %p84 = scmp.eq.s32.totalorder %s15, 0
    %p85 = por %p83, %p84
    %p86 = scmp.ne.s32.totalorder %s75, %s78
    %p87 = scmp.eq.s32.totalorder %s20, 3
    %p88 = por %p86, %p87
    %p89 = scmp.ne.s32.totalorder %s78, %s79
    %p90 = scmp.eq.s32.totalorder %s20, 0
    %p91 = por %p89, %p90
    %p92 = scmp.ne.s32.totalorder %s78, %s79
    %p93 = scmp.eq.s32.totalorder %s21, 3
    %p94 = por %p92, %p93
    %p96 = scmp.ne.s32.totalorder %s79, %s95
    %p97 = scmp.eq.s32.totalorder %s21, 0
    %p98 = por %p96, %p97
    %s99 = smul.u32 %s23, 8
    %s100 = sadd.s32 %s99, 8
    %p101 = scmp.lt.s32.totalorder %s100, 15
    %s102 = scalar_select %p101, %s100, 15
    %s103 = smul.u32 %s30, 8
    %s104 = sadd.s32 %s103, 8
    %p105 = scmp.lt.s32.totalorder %s104, 15
    %s106 = scalar_select %p105, %s104, 15
    %s107 = ssub.s32 %s22, %s34
    %s108 = ssub.s32 %s102, %s106
    %s109 = sor.u32 %s107, %s108
    %p110 = scmp.eq.s32.totalorder %s109, 0
    %s112 = sadd.s32 %s111, 1
    %s113 = scalar_select %p110, %s111, %s112
    %p116 = pneg %p110
    %p117 = scmp.eq.s32.totalorder %s15, 3
    %p118 = por %p116, %p117
    %p119 = scmp.ne.s32.totalorder %s111, %s114
    %p120 = scmp.eq.s32.totalorder %s15, 0
    %p121 = por %p119, %p120
    %p122 = scmp.ne.s32.totalorder %s111, %s114
    %p123 = scmp.eq.s32.totalorder %s20, 3
    %p124 = por %p122, %p123
    %p125 = scmp.ne.s32.totalorder %s114, %s115
    %p126 = scmp.eq.s32.totalorder %s20, 0
    %p127 = por %p125, %p126
    %p128 = scmp.ne.s32.totalorder %s114, %s115
    %p129 = scmp.eq.s32.totalorder %s21, 3
    %p130 = por %p128, %p129
    %p132 = scmp.ne.s32.totalorder %s115, %s131
    %p133 = scmp.eq.s32.totalorder %s21, 0
    %p134 = por %p132, %p133
    %s136 = sadd.s32 %s135, 1
    %p139 = scmp.eq.s32.totalorder %s15, 3
    %p140 = scmp.ne.s32.totalorder %s135, %s137
    %p141 = scmp.eq.s32.totalorder %s15, 0
    %p142 = por %p140, %p141
    %p143 = scmp.ne.s32.totalorder %s135, %s137
    %p144 = scmp.eq.s32.totalorder %s20, 3
    %p145 = por %p143, %p144
    %p146 = scmp.ne.s32.totalorder %s137, %s138
    %p147 = scmp.eq.s32.totalorder %s20, 0
    %p148 = por %p146, %p147
    %p149 = scmp.ne.s32.totalorder %s137, %s138
    %p150 = scmp.eq.s32.totalorder %s21, 3
    %p151 = por %p149, %p150
    %p153 = scmp.ne.s32.totalorder %s138, %s152
    %p154 = scmp.eq.s32.totalorder %s21, 0
    %p155 = por %p153, %p154
    %s157 = sadd.s32 %s156, 1
    %p160 = scmp.eq.s32.totalorder %s15, 3
    %p161 = scmp.ne.s32.totalorder %s156, %s158
    %p162 = scmp.eq.s32.totalorder %s15, 0
    %p163 = por %p161, %p162
    %p164 = scmp.ne.s32.totalorder %s156, %s158
    %p165 = scmp.eq.s32.totalorder %s20, 3
    %p166 = por %p164, %p165
    %p167 = scmp.ne.s32.totalorder %s158, %s159
    %p168 = scmp.eq.s32.totalorder %s20, 0
    %p169 = por %p167, %p168
    %p170 = scmp.ne.s32.totalorder %s158, %s159
    %p171 = scmp.eq.s32.totalorder %s21, 3
    %p172 = por %p170, %p171
    %p174 = scmp.ne.s32.totalorder %s159, %s173
    %p175 = scmp.eq.s32.totalorder %s21, 0
    %p176 = por %p174, %p175
    %s178 = sadd.s32 %s177, 1
    %p181 = scmp.eq.s32.totalorder %s15, 3
    %p182 = scmp.ne.s32.totalorder %s177, %s179
    %p183 = scmp.eq.s32.totalorder %s15, 0
    %p184 = por %p182, %p183
    %p185 = scmp.ne.s32.totalorder %s177, %s179
    %p186 = scmp.eq.s32.totalorder %s20, 3
    %p187 = por %p185, %p186
    %p188 = scmp.ne.s32.totalorder %s179, %s180
    %p189 = scmp.eq.s32.totalorder %s20, 0
    %p190 = por %p188, %p189
    %p191 = scmp.ne.s32.totalorder %s179, %s180
    %p192 = scmp.eq.s32.totalorder %s21, 3
    %p193 = por %p191, %p192
    %p195 = scmp.ne.s32.totalorder %s180, %s194
    %p196 = scmp.eq.s32.totalorder %s21, 0
    %p197 = por %p195, %p196
    %s199 = sadd.s32 %s198, 1
    %p202 = scmp.eq.s32.totalorder %s15, 3
    %p203 = scmp.ne.s32.totalorder %s198, %s200
    %p204 = scmp.eq.s32.totalorder %s15, 0
    %p205 = por %p203, %p204
    %p206 = scmp.ne.s32.totalorder %s198, %s200
    %p207 = scmp.eq.s32.totalorder %s20, 3
    %p208 = por %p206, %p207
    %p209 = scmp.ne.s32.totalorder %s200, %s201
    %p210 = scmp.eq.s32.totalorder %s20, 0
    %p211 = por %p209, %p210
    %p212 = scmp.ne.s32.totalorder %s200, %s201
    %p213 = scmp.eq.s32.totalorder %s21, 3
    %p214 = por %p212, %p213
    %p216 = scmp.ne.s32.totalorder %s201, %s215
    %p217 = scmp.eq.s32.totalorder %s21, 0
    %p218 = por %p216, %p217
    %s220 = sadd.s32 %s219, 1
    %p223 = scmp.eq.s32.totalorder %s15, 3
    %p224 = scmp.ne.s32.totalorder %s219, %s221
    %p225 = scmp.eq.s32.totalorder %s15, 0
    %p226 = por %p224, %p225
    %p227 = scmp.ne.s32.totalorder %s219, %s221
    %p228 = scmp.eq.s32.totalorder %s20, 3
    %p229 = por %p227, %p228
    %p230 = scmp.ne.s32.totalorder %s221, %s222
    %p231 = scmp.eq.s32.totalorder %s20, 0
    %p232 = por %p230, %p231
    %p233 = scmp.ne.s32.totalorder %s221, %s222
    %p234 = scmp.eq.s32.totalorder %s21, 3
    %p235 = por %p233, %p234
    %p237 = scmp.ne.s32.totalorder %s222, %s236
    %p238 = scmp.eq.s32.totalorder %s21, 0
    %p239 = por %p237, %p238
    %s241 = sadd.s32 %s240, 1
    %p244 = scmp.eq.s32.totalorder %s15, 3
    %p245 = scmp.ne.s32.totalorder %s240, %s242
    %p246 = scmp.eq.s32.totalorder %s15, 0
    %p247 = por %p245, %p246
    %p248 = scmp.ne.s32.totalorder %s240, %s242
    %p249 = scmp.eq.s32.totalorder %s20, 3
    %p250 = por %p248, %p249
    %p251 = scmp.ne.s32.totalorder %s242, %s243
    %p252 = scmp.eq.s32.totalorder %s20, 0
    %p253 = por %p251, %p252
    %p254 = scmp.ne.s32.totalorder %s242, %s243
    %p255 = scmp.eq.s32.totalorder %s21, 3
    %p256 = por %p254, %p255
    %p258 = scmp.ne.s32.totalorder %s243, %s257
    %p259 = scmp.eq.s32.totalorder %s21, 0
    %p260 = por %p258, %p259
    %s261 = ssub.s32 %s22, %s34
    %s262 = ssub.s32 %s23, %s30
    %s263 = sor.u32 %s261, %s262
    %p264 = scmp.eq.s32.totalorder %s263, 0
    %s266 = sadd.s32 %s265, 1
    %s267 = scalar_select %p264, %s265, %s266
    %p270 = pneg %p264
    %p271 = scmp.eq.s32.totalorder %s15, 3
    %p272 = por %p270, %p271
    %p273 = scmp.ne.s32.totalorder %s265, %s268
    %p274 = scmp.eq.s32.totalorder %s15, 0
    %p275 = por %p273, %p274
    %p276 = scmp.ne.s32.totalorder %s265, %s268
    %p277 = scmp.eq.s32.totalorder %s20, 3
    %p278 = por %p276, %p277
    %p279 = scmp.ne.s32.totalorder %s268, %s269
    %p280 = scmp.eq.s32.totalorder %s20, 0
    %p281 = por %p279, %p280
    %p282 = scmp.ne.s32.totalorder %s268, %s269
    %p283 = scmp.eq.s32.totalorder %s21, 3
    %p284 = por %p282, %p283
    %p286 = scmp.ne.s32.totalorder %s269, %s285
    %p287 = scmp.eq.s32.totalorder %s21, 0
    %p288 = por %p286, %p287
    %p289 = scmp.le.s32.totalorder 1, %s15
    %p290 = scmp.lt.s32.totalorder %s15, 5
    %p291 = pnand %p289, %p290
    %p292 = pneg %p291
    // Predicated region
    $region9: #{bottleneck_forward.1} parent=5 // pred_check
      _
    $region10: #{bottleneck_forward.1} parent=5 // pred_check_branch
      %294 = sbr.rel (%p291) target = $region12
    $region11: #{bottleneck_forward.1} parent=5 // pred_region
      %s295 = ssub.s32 %s15, 1
      // Predicated region
      $region13: #{bottleneck_forward.1} parent=11 // pred_check
        %p296 = pneg %p148
      $region14: #{bottleneck_forward.1} parent=11 // pred_check_branch
        %298 = sbr.rel (%p296) target = $region16
      $region15: #{bottleneck_forward.1} parent=11 // pred_region
        _
      $region16: #{bottleneck_forward.1} parent=11 // pred_fallthru
        _
      // Predicated region
      $region17: #{bottleneck_forward.1} parent=11 // pred_check
        %p299 = pneg %p169
      $region18: #{bottleneck_forward.1} parent=11 // pred_check_branch
        %301 = sbr.rel (%p299) target = $region20
      $region19: #{bottleneck_forward.1} parent=11 // pred_region
        _
      $region20: #{bottleneck_forward.1} parent=11 // pred_fallthru
        _
      // Predicated region
      $region21: #{bottleneck_forward.1} parent=11 // pred_check
        %p302 = pneg %p190
      $region22: #{bottleneck_forward.1} parent=11 // pred_check_branch
        %304 = sbr.rel (%p302) target = $region24
      $region23: #{bottleneck_forward.1} parent=11 // pred_region
        _
      $region24: #{bottleneck_forward.1} parent=11 // pred_fallthru
        _
      // Predicated region
      $region25: #{bottleneck_forward.1} parent=11 // pred_check
        %p305 = pneg %p211
      $region26: #{bottleneck_forward.1} parent=11 // pred_check_branch
        %307 = sbr.rel (%p305) target = $region28
      $region27: #{bottleneck_forward.1} parent=11 // pred_region
        _
      $region28: #{bottleneck_forward.1} parent=11 // pred_fallthru
        _
      // Predicated region
      $region29: #{bottleneck_forward.1} parent=11 // pred_check
        %p308 = pneg %p232
      $region30: #{bottleneck_forward.1} parent=11 // pred_check_branch
        %310 = sbr.rel (%p308) target = $region32
      $region31: #{bottleneck_forward.1} parent=11 // pred_region
        _
      $region32: #{bottleneck_forward.1} parent=11 // pred_fallthru
        _
      // Predicated region
      $region33: #{bottleneck_forward.1} parent=11 // pred_check
        %p311 = pneg %p253
      $region34: #{bottleneck_forward.1} parent=11 // pred_check_branch
        %313 = sbr.rel (%p311) target = $region36
      $region35: #{bottleneck_forward.1} parent=11 // pred_region
        _
      $region36: #{bottleneck_forward.1} parent=11 // pred_fallthru
        _
    $region12: #{bottleneck_forward.1} parent=5 // pred_fallthru
      _
    %p314 = scmp.lt.s32.totalorder %s15, 4
    // Predicated region
    $region37: #{bottleneck_forward.1} parent=5 // pred_check
      %p315 = pneg %p314
    $region38: #{bottleneck_forward.1} parent=5 // pred_check_branch
      %317 = sbr.rel (%p315) target = $region40
    $region39: #{bottleneck_forward.1} parent=5 // pred_region
      // Predicated region
      $region41: #{bottleneck_forward.1} parent=39 // pred_check
        %p318 = pneg %p49
      $region42: #{bottleneck_forward.1} parent=39 // pred_check_branch
        %320 = sbr.rel (%p318) target = $region44
      $region43: #{bottleneck_forward.1} parent=39 // pred_region
        %s321 = smul.u32 8, %s23
        %p322 = scmp.lt.s32.totalorder %s22, 1
        %s323 = scalar_select %p322, %s22, 1
        %p324 = scmp.lt.s32.totalorder %s321, 15
        %s325 = scalar_select %p324, %s321, 15
        %s326 = smul.addr %s325, 2
        %s327 = smul.addr %s323, 32
        %s328 = sadd.s32 %s326, %s327
        %s329 = smul.addr %s328, 4
        %s330 = scalar_lea.vmem %s0, %s329
        %s331 = smul.u32 8, %s23
      $region44: #{bottleneck_forward.1} parent=39 // pred_fallthru
        _
      // Predicated region
      $region45: #{bottleneck_forward.1} parent=39 // pred_check
        %p332 = pneg %p85
      $region46: #{bottleneck_forward.1} parent=39 // pred_check_branch
        %334 = sbr.rel (%p332) target = $region48
      $region47: #{bottleneck_forward.1} parent=39 // pred_region
        %s335 = smul.u32 %s23, 8
        %s336 = ssub.s32 %s335, 1
        %p337 = scmp.gt.s32.totalorder %s336, 0
        %s338 = scalar_select %p337, %s336, 0
        %p339 = scmp.lt.s32.totalorder %s22, 1
        %s340 = scalar_select %p339, %s22, 1
        %p341 = scmp.lt.s32.totalorder %s338, 15
        %s342 = scalar_select %p341, %s338, 15
        %s343 = smul.addr %s342, 2
        %s344 = smul.addr %s340, 32
        %s345 = sadd.s32 %s343, %s344
        %s346 = smul.addr %s345, 4
        %s347 = scalar_lea.vmem %s1, %s346
        %s348 = smul.u32 %s23, 8
        %s349 = ssub.s32 %s348, 1
        %p350 = scmp.gt.s32.totalorder %s349, 0
        %s351 = scalar_select %p350, %s349, 0
      $region48: #{bottleneck_forward.1} parent=39 // pred_fallthru
        _
      // Predicated region
      $region49: #{bottleneck_forward.1} parent=39 // pred_check
        %p352 = pneg %p121
      $region50: #{bottleneck_forward.1} parent=39 // pred_check_branch
        %354 = sbr.rel (%p352) target = $region52
      $region51: #{bottleneck_forward.1} parent=39 // pred_region
        %s355 = smul.u32 %s23, 8
        %s356 = sadd.s32 %s355, 8
        %p357 = scmp.lt.s32.totalorder %s356, 15
        %s358 = scalar_select %p357, %s356, 15
        %p359 = scmp.lt.s32.totalorder %s22, 1
        %s360 = scalar_select %p359, %s22, 1
        %p361 = scmp.lt.s32.totalorder %s358, 15
        %s362 = scalar_select %p361, %s358, 15
        %s363 = smul.addr %s362, 2
        %s364 = smul.addr %s360, 32
        %s365 = sadd.s32 %s363, %s364
        %s366 = smul.addr %s365, 4
        %s367 = scalar_lea.vmem %s2, %s366
        %s368 = smul.u32 %s23, 8
        %s369 = sadd.s32 %s368, 8
        %p370 = scmp.lt.s32.totalorder %s369, 15
        %s371 = scalar_select %p370, %s369, 15
      $region52: #{bottleneck_forward.1} parent=39 // pred_fallthru
        _
    $region40: #{bottleneck_forward.1} parent=5 // pred_fallthru
      _
    %p372 = scmp.le.s32.totalorder 1, %s15
    %p373 = scmp.lt.s32.totalorder %s15, 5
    %p374 = pnand %p372, %p373
    %p375 = pneg %p374
    // Predicated region
    $region53: #{bottleneck_forward.1} parent=5 // pred_check
      _
    $region54: #{bottleneck_forward.1} parent=5 // pred_check_branch
      %377 = sbr.rel (%p374) target = $region56
    $region55: #{bottleneck_forward.1} parent=5 // pred_region
      %s378 = ssub.s32 %s15, 1
      %s379 = smul.u32 8, %s25
      %p380 = scmp.lt.s32.totalorder %s24, 1
      %s381 = scalar_select %p380, %s24, 1
      %p382 = scmp.lt.s32.totalorder %s379, 15
      %s383 = scalar_select %p382, %s379, 15
      %s384 = smul.addr %s383, 2
      %s385 = smul.addr %s381, 32
      %s386 = sadd.s32 %s384, %s385
      %s387 = smul.addr %s386, 4
      %s388 = scalar_lea.vmem %s0, %s387
      %p389 = pneg %p55
      %p390 = pneg %p52
      %s391 = smul.u32 %s25, 8
      %s392 = ssub.s32 %s391, 1
      %p393 = scmp.gt.s32.totalorder %s392, 0
      %s394 = scalar_select %p393, %s392, 0
      %p395 = scmp.lt.s32.totalorder %s24, 1
      %s396 = scalar_select %p395, %s24, 1
      %p397 = scmp.lt.s32.totalorder %s394, 15
      %s398 = scalar_select %p397, %s394, 15
      %s399 = smul.addr %s398, 2
      %s400 = smul.addr %s396, 32
      %s401 = sadd.s32 %s399, %s400
      %s402 = smul.addr %s401, 4
      %s403 = scalar_lea.vmem %s1, %s402
      %p404 = pneg %p91
      %p405 = pneg %p88
      %s406 = smul.u32 %s25, 8
      %s407 = sadd.s32 %s406, 8
      %p408 = scmp.lt.s32.totalorder %s407, 15
      %s409 = scalar_select %p408, %s407, 15
      %p410 = scmp.lt.s32.totalorder %s24, 1
      %s411 = scalar_select %p410, %s24, 1
      %p412 = scmp.lt.s32.totalorder %s409, 15
      %s413 = scalar_select %p412, %s409, 15
      %s414 = smul.addr %s413, 2
      %s415 = smul.addr %s411, 32
      %s416 = sadd.s32 %s414, %s415
      %s417 = smul.addr %s416, 4
      %s418 = scalar_lea.vmem %s2, %s417
      %p419 = pneg %p127
      %p420 = pneg %p124
      %p421 = pneg %p148
      %p422 = pneg %p145
      %p423 = pneg %p169
      %p424 = pneg %p166
      %p425 = pneg %p190
      %p426 = pneg %p187
      %p427 = pneg %p211
      %p428 = pneg %p208
      %p429 = pneg %p232
      %p430 = pneg %p229
      %p431 = pneg %p253
      %p432 = pneg %p250
      %p433 = pneg %p281
      %p434 = pneg %p278
      %s435 = smul.u32 8, %s25
      %p436 = scmp.lt.s32.totalorder %s24, 1
      %s437 = scalar_select %p436, %s24, 1
      %p438 = scmp.lt.s32.totalorder %s435, 15
      %s439 = scalar_select %p438, %s435, 15
      %s440 = smul.addr %s439, 2
      %s441 = smul.addr %s437, 32
      %s442 = sadd.s32 %s440, %s441
      %s443 = smul.addr %s442, 4
      %s444 = scalar_lea.vmem %s9, %s443
      %s445 = smul.u32 8, %s25
      %p446 = scmp.lt.s32.totalorder %s24, 1
      %s447 = scalar_select %p446, %s24, 1
      %p448 = scmp.lt.s32.totalorder %s445, 15
      %s449 = scalar_select %p448, %s445, 15
      %s450 = smul.addr %s449, 2
      %s451 = smul.addr %s447, 32
      %s452 = sadd.s32 %s450, %s451
      %s453 = smul.addr %s452, 4
      %s454 = scalar_lea.vmem %s0, %s453
      %s455 = smul.u32 8, %s25
      %s456 = smul.u32 %s25, 8
      %s457 = ssub.s32 %s456, 1
      %p458 = scmp.gt.s32.totalorder %s457, 0
      %s459 = scalar_select %p458, %s457, 0
      %p460 = scmp.lt.s32.totalorder %s24, 1
      %s461 = scalar_select %p460, %s24, 1
      %p462 = scmp.lt.s32.totalorder %s459, 15
      %s463 = scalar_select %p462, %s459, 15
      %s464 = smul.addr %s463, 2
      %s465 = smul.addr %s461, 32
      %s466 = sadd.s32 %s464, %s465
      %s467 = smul.addr %s466, 4
      %s468 = scalar_lea.vmem %s1, %s467
      %s469 = smul.u32 %s25, 8
      %s470 = ssub.s32 %s469, 1
      %p471 = scmp.gt.s32.totalorder %s470, 0
      %s472 = scalar_select %p471, %s470, 0
      %s473 = smul.u32 %s25, 8
      %s474 = sadd.s32 %s473, 8
      %p475 = scmp.lt.s32.totalorder %s474, 15
      %s476 = scalar_select %p475, %s474, 15
      %p477 = scmp.lt.s32.totalorder %s24, 1
      %s478 = scalar_select %p477, %s24, 1
      %p479 = scmp.lt.s32.totalorder %s476, 15
      %s480 = scalar_select %p479, %s476, 15
      %s481 = smul.addr %s480, 2
      %s482 = smul.addr %s478, 32
      %s483 = sadd.s32 %s481, %s482
      %s484 = smul.addr %s483, 4
      %s485 = scalar_lea.vmem %s2, %s484
      %s486 = smul.u32 %s25, 8
      %s487 = sadd.s32 %s486, 8
      %p488 = scmp.lt.s32.totalorder %s487, 15
      %s489 = scalar_select %p488, %s487, 15
      %s490 = smul.u32 8, %s25
      %p491 = scmp.lt.s32.totalorder %s24, 1
      %s492 = scalar_select %p491, %s24, 1
      %p493 = scmp.lt.s32.totalorder %s490, 15
      %s494 = scalar_select %p493, %s490, 15
      %s495 = smul.addr %s494, 2
      %s496 = smul.addr %s492, 32
      %s497 = sadd.s32 %s495, %s496
      %s498 = smul.addr %s497, 4
      %s499 = scalar_lea.vmem %s9, %s498
      %s500 = smul.u32 8, %s25
      %502 = vst [vmem:[#allocation2] sm:$0xf] 0
      %503 = vst [vmem:[#allocation2 + $0x4] sm:$0xf] 0
      %504 = vst [vmem:[#allocation2 + $0x8] sm:$0xf] 0
      %505 = vst [vmem:[#allocation2 + $0xc] sm:$0xf] 0
      %506 = vst [vmem:[#allocation2 + $0x10] sm:$0xf] 0
      %507 = vst [vmem:[#allocation2 + $0x14] sm:$0xf] 0
      %508 = vst [vmem:[#allocation2 + $0x18] sm:$0xf] 0
      %509 = vst [vmem:[#allocation2 + $0x1c] sm:$0xf] 0
      %510 = vst [vmem:[#allocation2 + $0x20] sm:$0xf] 0
      %511 = vst [vmem:[#allocation2 + $0x24] sm:$0xf] 0
      %512 = vst [vmem:[#allocation2 + $0x28] sm:$0xf] 0
      %513 = vst [vmem:[#allocation2 + $0x2c] sm:$0xf] 0
      %514 = vst [vmem:[#allocation2 + $0x30] sm:$0xf] 0
      %515 = vst [vmem:[#allocation2 + $0x34] sm:$0xf] 0
      %516 = vst [vmem:[#allocation2 + $0x38] sm:$0xf] 0
      %517 = vst [vmem:[#allocation2 + $0x3c] sm:$0xf] 0
      %518 = vst [vmem:[#allocation2 + $0x40] sm:$0xf] 0
      %519 = vst [vmem:[#allocation2 + $0x44] sm:$0xf] 0
      %520 = vst [vmem:[#allocation2 + $0x48] sm:$0xf] 0
      %521 = vst [vmem:[#allocation2 + $0x4c] sm:$0xf] 0
      %522 = vst [vmem:[#allocation2 + $0x50] sm:$0xf] 0
      %523 = vst [vmem:[#allocation2 + $0x54] sm:$0xf] 0
      %524 = vst [vmem:[#allocation2 + $0x58] sm:$0x7] 0
      %v525 = vld [vmem:[%s454] sm:$0xf]
      %v526 = vld [vmem:[%s454 + $0x4] sm:$0xf]
      %v527 = vld [vmem:[%s454 + $0x8] sm:$0xf]
      %v528 = vld [vmem:[%s454 + $0xc] sm:$0xf]
      %v529 = vld [vmem:[%s454 + $0x10] sm:$0xf]
      %v530 = vld [vmem:[%s454 + $0x14] sm:$0xf]
      %v531 = vld [vmem:[%s454 + $0x18] sm:$0xf]
      %v532 = vld [vmem:[%s454 + $0x1c] sm:$0xf]
      %v533 = vld [vmem:[%s454 + $0x20] sm:$0xf]
      %v534 = vld [vmem:[%s454 + $0x24] sm:$0xf]
      %v535 = vld [vmem:[%s454 + $0x28] sm:$0xf]
      %v536 = vld [vmem:[%s454 + $0x2c] sm:$0xf]
      %v537 = vld [vmem:[%s454 + $0x30] sm:$0xf]
      %v538 = vld [vmem:[%s454 + $0x34] sm:$0xf]
      %v539 = vld [vmem:[%s454 + $0x38] sm:$0xf]
      %v540 = vld [vmem:[%s454 + $0x3c] sm:$0xf]
      %v541 = vld [vmem:[%s3] sm:$0xf]
      %v542 = vld [vmem:[%s3 + $0x4] sm:$0xf]
      %v543 = vld [vmem:[%s3 + $0x8] sm:$0xf]
      %v544 = vld [vmem:[%s3 + $0xc] sm:$0xf]
      %v545 = vld [vmem:[%s3 + $0x10] sm:$0xf]
      %v546 = vld [vmem:[%s3 + $0x14] sm:$0xf]
      %v547 = vld [vmem:[%s3 + $0x18] sm:$0xf]
      %v548 = vld [vmem:[%s3 + $0x1c] sm:$0xf]
      %v549 = vld [vmem:[%s3 + $0x20] sm:$0xf]
      %v550 = vld [vmem:[%s3 + $0x24] sm:$0xf]
      %v551 = vld [vmem:[%s3 + $0x28] sm:$0xf]
      %v552 = vld [vmem:[%s3 + $0x2c] sm:$0xf]
      %v553 = vld [vmem:[%s3 + $0x30] sm:$0xf]
      %v554 = vld [vmem:[%s3 + $0x34] sm:$0xf]
      %v555 = vld [vmem:[%s3 + $0x38] sm:$0xf]
      %v556 = vld [vmem:[%s3 + $0x3c] sm:$0xf]
      %v557 = vld [vmem:[%s4] sm:$0x1]
      %v559 = vlaneseq
      %v560 = vshrl.u32 %v559, 7
      %v561 = vsub.s32 0, %v560
      %v562 = vrot.slane %v557, %v561
      %v580 = vunpack.c.l.b16 %v525
      %v581 = vunpack.c.l.b16 %v526
      %v582 = vunpack.c.l.b16 %v527
      %v583 = vunpack.c.l.b16 %v528
      %v584 = vunpack.c.l.b16 %v529
      %v585 = vunpack.c.l.b16 %v530
      %v586 = vunpack.c.l.b16 %v531
      %v587 = vunpack.c.l.b16 %v532
      %v588 = vunpack.c.l.b16 %v533
      %v589 = vunpack.c.l.b16 %v534
      %v590 = vunpack.c.l.b16 %v535
      %v591 = vunpack.c.l.b16 %v536
      %v592 = vunpack.c.l.b16 %v537
      %v593 = vunpack.c.l.b16 %v538
      %v594 = vunpack.c.l.b16 %v539
      %v595 = vunpack.c.l.b16 %v540
      %v596 = vpack.c.b16 %v581, %v580
      %v597 = vpack.c.b16 %v583, %v582
      %v598 = vpack.c.b16 %v585, %v584
      %v599 = vpack.c.b16 %v587, %v586
      %v600 = vpack.c.b16 %v589, %v588
      %v601 = vpack.c.b16 %v591, %v590
      %v602 = vpack.c.b16 %v593, %v592
      %v603 = vpack.c.b16 %v595, %v594
      %v628 = vunpack.c.l.b16 %v541
      %v629 = vunpack.c.l.b16 %v542
      %v630 = vunpack.c.l.b16 %v543
      %v631 = vunpack.c.l.b16 %v544
      %v632 = vunpack.c.l.b16 %v545
      %v633 = vunpack.c.l.b16 %v546
      %v634 = vunpack.c.l.b16 %v547
      %v635 = vunpack.c.l.b16 %v548
      %v636 = vunpack.c.l.b16 %v549
      %v637 = vunpack.c.l.b16 %v550
      %v638 = vunpack.c.l.b16 %v551
      %v639 = vunpack.c.l.b16 %v552
      %v640 = vunpack.c.l.b16 %v553
      %v641 = vunpack.c.l.b16 %v554
      %v642 = vunpack.c.l.b16 %v555
      %v643 = vunpack.c.l.b16 %v556
      %v644 = vpack.c.b16 %v629, %v628
      %v645 = vpack.c.b16 %v631, %v630
      %v646 = vpack.c.b16 %v633, %v632
      %v647 = vpack.c.b16 %v635, %v634
      %v648 = vpack.c.b16 %v637, %v636
      %v649 = vpack.c.b16 %v639, %v638
      %v650 = vpack.c.b16 %v641, %v640
      %v651 = vpack.c.b16 %v643, %v642
      %660 = vmatprep.subr.bf16.mxu0 0
      %661 = vmatpush1.bf16.msra.mxu0 %v644
      %662 = vmatprep.subr.bf16.mxu0 0
      %663 = vmatpush1.bf16.msra.mxu0 %v645
      %664 = vmatprep.subr.bf16.mxu0 0
      %665 = vmatpush1.bf16.msra.mxu0 %v646
      %666 = vmatprep.subr.bf16.mxu0 0
      %667 = vmatpush1.bf16.msra.mxu0 %v647
      %668 = vmatprep.subr.bf16.mxu0 0
      %669 = vmatpush1.bf16.msra.mxu0 %v648
      %670 = vmatprep.subr.bf16.mxu0 0
      %671 = vmatpush1.bf16.msra.mxu0 %v649
      %672 = vmatprep.subr.bf16.mxu0 0
      %673 = vmatpush1.bf16.msra.mxu0 %v650
      %674 = vmatprep.subr.bf16.mxu0 0
      %675 = vmatpush1.bf16.msra.mxu0 %v651
      %676 = vmatprep.subr.bf16.mxu0 0
      %677 = vmatpush1.bf16.msra.mxu0 0
      %678 = vmatprep.subr.bf16.mxu0 0
      %679 = vmatpush1.bf16.msra.mxu0 0
      %680 = vmatprep.subr.bf16.mxu0 0
      %681 = vmatpush1.bf16.msra.mxu0 0
      %682 = vmatprep.subr.bf16.mxu0 0
      %683 = vmatpush1.bf16.msra.mxu0 0
      %684 = vmatprep.subr.bf16.mxu0 0
      %685 = vmatpush1.bf16.msra.mxu0 0
      %686 = vmatprep.subr.bf16.mxu0 0
      %687 = vmatpush1.bf16.msra.mxu0 0
      %688 = vmatprep.subr.bf16.mxu0 0
      %689 = vmatpush1.bf16.msra.mxu0 0
      %690 = vmatprep.subr.bf16.mxu0 0
      %691 = vmatpush1.bf16.msra.mxu0 0
      %692 = vmatprep.mubr.bf16.mxu0 0
      %693 = vmatmul.mubr.bf16.gmra.mrb[0].mxu0 %v596
      %v694 = vpop.f32.mrb[0].mxu0
      %v695 = vadd.f32 %v562, %v694
      %v696 = vpop.f32.mrb[0].mxu0
      %v697 = vpop.f32.mrb[0].mxu0
      %v698 = vadd.f32 %v562, %v697
      %v699 = vpop.f32.mrb[0].mxu0
      %700 = vmatprep.mubr.bf16.mxu0 0
      %701 = vmatmul.mubr.bf16.gmra.mrb[0].mxu0 %v597
      %v702 = vpop.f32.mrb[0].mxu0
      %v703 = vadd.f32 %v562, %v702
      %v704 = vpop.f32.mrb[0].mxu0
      %v705 = vpop.f32.mrb[0].mxu0
      %v706 = vadd.f32 %v562, %v705
      %v707 = vpop.f32.mrb[0].mxu0
      %708 = vmatprep.mubr.bf16.mxu0 0
      %709 = vmatmul.mubr.bf16.gmra.mrb[0].mxu0 %v598
      %v710 = vpop.f32.mrb[0].mxu0
      %v711 = vadd.f32 %v562, %v710
      %v712 = vpop.f32.mrb[0].mxu0
      %v713 = vpop.f32.mrb[0].mxu0
      %v714 = vadd.f32 %v562, %v713
      %v715 = vpop.f32.mrb[0].mxu0
      %716 = vmatprep.mubr.bf16.mxu0 0
      %717 = vmatmul.mubr.bf16.gmra.mrb[0].mxu0 %v599
      %v718 = vpop.f32.mrb[0].mxu0
      %v719 = vadd.f32 %v562, %v718
      %v720 = vpop.f32.mrb[0].mxu0
      %v721 = vpop.f32.mrb[0].mxu0
      %v722 = vadd.f32 %v562, %v721
      %v723 = vpop.f32.mrb[0].mxu0
      %724 = vmatprep.mubr.bf16.mxu0 0
      %725 = vmatmul.mubr.bf16.gmra.mrb[0].mxu0 %v600
      %v726 = vpop.f32.mrb[0].mxu0
      %v727 = vadd.f32 %v562, %v726
      %v728 = vpop.f32.mrb[0].mxu0
      %v729 = vpop.f32.mrb[0].mxu0
      %v730 = vadd.f32 %v562, %v729
      %v731 = vpop.f32.mrb[0].mxu0
      %732 = vmatprep.mubr.bf16.mxu0 0
      %733 = vmatmul.mubr.bf16.gmra.mrb[0].mxu0 %v601
      %v734 = vpop.f32.mrb[0].mxu0
      %v735 = vadd.f32 %v562, %v734
      %v736 = vpop.f32.mrb[0].mxu0
      %v737 = vpop.f32.mrb[0].mxu0
      %v738 = vadd.f32 %v562, %v737
      %v739 = vpop.f32.mrb[0].mxu0
      %740 = vmatprep.mubr.bf16.mxu0 0
      %741 = vmatmul.mubr.bf16.gmra.mrb[0].mxu0 %v602
      %v742 = vpop.f32.mrb[0].mxu0
      %v743 = vadd.f32 %v562, %v742
      %v744 = vpop.f32.mrb[0].mxu0
      %v745 = vpop.f32.mrb[0].mxu0
      %v746 = vadd.f32 %v562, %v745
      %v747 = vpop.f32.mrb[0].mxu0
      %748 = vmatprep.mubr.bf16.mxu0 0
      %749 = vmatmul.mubr.bf16.gmra.mrb[0].mxu0 %v603
      %v750 = vpop.f32.mrb[0].mxu0
      %v751 = vadd.f32 %v562, %v750
      %v752 = vpop.f32.mrb[0].mxu0
      %v753 = vpop.f32.mrb[0].mxu0
      %v754 = vadd.f32 %v562, %v753
      %v755 = vpop.f32.mrb[0].mxu0
      %756 = vdwg.mxu0
      %v757 = vmax.f32 %v695, 0.0
      %v758 = vmax.f32 %v698, 0.0
      %v759 = vmax.f32 %v703, 0.0
      %v760 = vmax.f32 %v706, 0.0
      %v761 = vmax.f32 %v711, 0.0
      %v762 = vmax.f32 %v714, 0.0
      %v763 = vmax.f32 %v719, 0.0
      %v764 = vmax.f32 %v722, 0.0
      %v765 = vmax.f32 %v727, 0.0
      %v766 = vmax.f32 %v730, 0.0
      %v767 = vmax.f32 %v735, 0.0
      %v768 = vmax.f32 %v738, 0.0
      %v769 = vmax.f32 %v743, 0.0
      %v770 = vmax.f32 %v746, 0.0
      %v771 = vmax.f32 %v751, 0.0
      %v772 = vmax.f32 %v754, 0.0
      %v773 = vpack.c.bf16 %v758, %v757
      %v774 = vpack.c.bf16 %v760, %v759
      %v775 = vpack.c.bf16 %v762, %v761
      %v776 = vpack.c.bf16 %v764, %v763
      %v777 = vpack.c.bf16 %v766, %v765
      %v778 = vpack.c.bf16 %v768, %v767
      %v779 = vpack.c.bf16 %v770, %v769
      %v780 = vpack.c.bf16 %v772, %v771
      %v782 = vunpack.c.l.b16 %v773
      %v783 = vunpack.c.h.b16 %v773
      %v784 = vpack.c.b16 %v782, %v782
      %v785 = vpack.c.b16 %v783, %v783
      %vm786 = vcmask 1041408
      %vm787 = vcmask 1045508
      %vm788 = vmor %vm786, %vm787
      %v789 = vrot.slane %v784, 6
      %v790 = vrot.slane %v789, 4
      %v791 = vrot.slane %v785, 6
      %v792 = vsel %vm788, %v790, %v791
      %v793 = vrot.slane %v791, 4
      %797 = vst [vmem:[#allocation2 + $0x8] sm:$0xc] %v789
      %798 = vst [vmem:[#allocation2 + $0xc] sm:$0xf] %v792
      %799 = vst [vmem:[#allocation2 + $0x10] sm:$0x3] %v793
      %v801 = vunpack.c.l.b16 %v774
      %v802 = vunpack.c.h.b16 %v774
      %v803 = vpack.c.b16 %v801, %v801
      %v804 = vpack.c.b16 %v802, %v802
      %vm805 = vcmask 1042432
      %vm806 = vcmask 1046532
      %vm807 = vmor %vm805, %vm806
      %v808 = vrot.slane %v803, 5
      %v809 = vrot.slane %v808, 4
      %v810 = vrot.slane %v804, 5
      %v811 = vsel %vm807, %v809, %v810
      %v812 = vrot.slane %v810, 4
      %816 = vst [vmem:[#allocation2 + $0x10] sm:$0x8] %v808
      %817 = vst [vmem:[#allocation2 + $0x14] sm:$0xf] %v811
      %818 = vst [vmem:[#allocation2 + $0x18] sm:$0x7] %v812
      %v820 = vunpack.c.l.b16 %v775
      %v821 = vunpack.c.h.b16 %v775
      %v822 = vpack.c.b16 %v820, %v820
      %v823 = vpack.c.b16 %v821, %v821
      %826 = vst [vmem:[#allocation2 + $0x1c] sm:$0xf] %v822
      %827 = vst [vmem:[#allocation2 + $0x20] sm:$0xf] %v823
      %v829 = vunpack.c.l.b16 %v776
      %v830 = vunpack.c.h.b16 %v776
      %v831 = vpack.c.b16 %v829, %v829
      %v832 = vpack.c.b16 %v830, %v830
      %vm833 = vcmask 1040384
      %vm834 = vcmask 1044484
      %vm835 = vmor %vm833, %vm834
      %v836 = vrot.slane %v831, 7
      %v837 = vrot.slane %v836, 4
      %v838 = vrot.slane %v832, 7
      %v839 = vsel %vm835, %v837, %v838
      %v840 = vrot.slane %v838, 4
      %844 = vst [vmem:[#allocation2 + $0x24] sm:$0xe] %v836
      %845 = vst [vmem:[#allocation2 + $0x28] sm:$0xf] %v839
      %846 = vst [vmem:[#allocation2 + $0x2c] sm:$0x1] %v840
      %v848 = vunpack.c.l.b16 %v777
      %v849 = vunpack.c.h.b16 %v777
      %v850 = vpack.c.b16 %v848, %v848
      %v851 = vpack.c.b16 %v849, %v849
      %v852 = vrot.slane %v850, 6
      %v853 = vrot.slane %v852, 4
      %v854 = vrot.slane %v851, 6
      %v855 = vsel %vm788, %v853, %v854
      %v856 = vrot.slane %v854, 4
      %860 = vst [vmem:[#allocation2 + $0x2c] sm:$0xc] %v852
      %861 = vst [vmem:[#allocation2 + $0x30] sm:$0xf] %v855
      %862 = vst [vmem:[#allocation2 + $0x34] sm:$0x3] %v856
      %v864 = vunpack.c.l.b16 %v778
      %v865 = vunpack.c.h.b16 %v778
      %v866 = vpack.c.b16 %v864, %v864
      %v867 = vpack.c.b16 %v865, %v865
      %v868 = vrot.slane %v866, 5
      %v869 = vrot.slane %v868, 4
      %v870 = vrot.slane %v867, 5
      %v871 = vsel %vm807, %v869, %v870
      %v872 = vrot.slane %v870, 4
      %876 = vst [vmem:[#allocation2 + $0x34] sm:$0x8] %v868
      %877 = vst [vmem:[#allocation2 + $0x38] sm:$0xf] %v871
      %878 = vst [vmem:[#allocation2 + $0x3c] sm:$0x7] %v872
      %v880 = vunpack.c.l.b16 %v779
      %v881 = vunpack.c.h.b16 %v779
      %v882 = vpack.c.b16 %v880, %v880
      %v883 = vpack.c.b16 %v881, %v881
      %886 = vst [vmem:[#allocation2 + $0x40] sm:$0xf] %v882
      %887 = vst [vmem:[#allocation2 + $0x44] sm:$0xf] %v883
      %v889 = vunpack.c.l.b16 %v780
      %v890 = vunpack.c.h.b16 %v780
      %v891 = vpack.c.b16 %v889, %v889
      %v892 = vpack.c.b16 %v890, %v890
      %v893 = vrot.slane %v891, 7
      %v894 = vrot.slane %v893, 4
      %v895 = vrot.slane %v892, 7
      %v896 = vsel %vm835, %v894, %v895
      %v897 = vrot.slane %v895, 4
      %901 = vst [vmem:[#allocation2 + $0x48] sm:$0xe] %v893
      %902 = vst [vmem:[#allocation2 + $0x4c] sm:$0xf] %v896
      %903 = vst [vmem:[#allocation2 + $0x50] sm:$0x1] %v897
      %p904 = scmp.gt.s32.totalorder %s25, 0
      // Predicated region
      $region57: #{bottleneck_forward.1} parent=55 // pred_check
        %p905 = pneg %p904
      $region58: #{bottleneck_forward.1} parent=55 // pred_check_branch
        %907 = sbr.rel (%p905) target = $region60
      $region59: #{bottleneck_forward.1} parent=55 // pred_region
        %v908 = vld [vmem:[%s468] sm:$0xf]
        %v909 = vld [vmem:[%s468 + $0x4] sm:$0xf]
        %v910 = vld [vmem:[%s3] sm:$0xf]
        %v911 = vld [vmem:[%s3 + $0x4] sm:$0xf]
        %v912 = vld [vmem:[%s3 + $0x8] sm:$0xf]
        %v913 = vld [vmem:[%s3 + $0xc] sm:$0xf]
        %v914 = vld [vmem:[%s3 + $0x10] sm:$0xf]
        %v915 = vld [vmem:[%s3 + $0x14] sm:$0xf]
        %v916 = vld [vmem:[%s3 + $0x18] sm:$0xf]
        %v917 = vld [vmem:[%s3 + $0x1c] sm:$0xf]
        %v918 = vld [vmem:[%s3 + $0x20] sm:$0xf]
        %v919 = vld [vmem:[%s3 + $0x24] sm:$0xf]
        %v920 = vld [vmem:[%s3 + $0x28] sm:$0xf]
        %v921 = vld [vmem:[%s3 + $0x2c] sm:$0xf]
        %v922 = vld [vmem:[%s3 + $0x30] sm:$0xf]
        %v923 = vld [vmem:[%s3 + $0x34] sm:$0xf]
        %v924 = vld [vmem:[%s3 + $0x38] sm:$0xf]
        %v925 = vld [vmem:[%s3 + $0x3c] sm:$0xf]
        %v926 = vld [vmem:[%s4] sm:$0x1]
        %v928 = vlaneseq
        %v929 = vshrl.u32 %v928, 7
        %v930 = vsub.s32 0, %v929
        %v931 = vrot.slane %v926, %v930
        %v935 = vunpack.c.l.b16 %v908
        %v936 = vunpack.c.l.b16 %v909
        %v937 = vpack.c.b16 %v936, %v935
        %v955 = vunpack.c.l.b16 %v910
        %v956 = vunpack.c.l.b16 %v911
        %v957 = vunpack.c.l.b16 %v912
        %v958 = vunpack.c.l.b16 %v913
        %v959 = vunpack.c.l.b16 %v914
        %v960 = vunpack.c.l.b16 %v915
        %v961 = vunpack.c.l.b16 %v916
        %v962 = vunpack.c.l.b16 %v917
        %v963 = vunpack.c.l.b16 %v918
        %v964 = vunpack.c.l.b16 %v919
        %v965 = vunpack.c.l.b16 %v920
        %v966 = vunpack.c.l.b16 %v921
        %v967 = vunpack.c.l.b16 %v922
        %v968 = vunpack.c.l.b16 %v923
        %v969 = vunpack.c.l.b16 %v924
        %v970 = vunpack.c.l.b16 %v925
        %v971 = vpack.c.b16 %v956, %v955
        %v972 = vpack.c.b16 %v958, %v957
        %v973 = vpack.c.b16 %v960, %v959
        %v974 = vpack.c.b16 %v962, %v961
        %v975 = vpack.c.b16 %v964, %v963
        %v976 = vpack.c.b16 %v966, %v965
        %v977 = vpack.c.b16 %v968, %v967
        %v978 = vpack.c.b16 %v970, %v969
        %987 = vmatprep.subr.bf16.mxu0 0
        %988 = vmatpush1.bf16.msra.mxu0 %v971
        %989 = vmatprep.subr.bf16.mxu0 0
        %990 = vmatpush1.bf16.msra.mxu0 %v972
        %991 = vmatprep.subr.bf16.mxu0 0
        %992 = vmatpush1.bf16.msra.mxu0 %v973
        %993 = vmatprep.subr.bf16.mxu0 0
        %994 = vmatpush1.bf16.msra.mxu0 %v974
        %995 = vmatprep.subr.bf16.mxu0 0
        %996 = vmatpush1.bf16.msra.mxu0 %v975
        %997 = vmatprep.subr.bf16.mxu0 0
        %998 = vmatpush1.bf16.msra.mxu0 %v976
        %999 = vmatprep.subr.bf16.mxu0 0
        %1000 = vmatpush1.bf16.msra.mxu0 %v977
        %1001 = vmatprep.subr.bf16.mxu0 0
        %1002 = vmatpush1.bf16.msra.mxu0 %v978
        %1003 = vmatprep.subr.bf16.mxu0 0
        %1004 = vmatpush1.bf16.msra.mxu0 0
        %1005 = vmatprep.subr.bf16.mxu0 0
        %1006 = vmatpush1.bf16.msra.mxu0 0
        %1007 = vmatprep.subr.bf16.mxu0 0
        %1008 = vmatpush1.bf16.msra.mxu0 0
        %1009 = vmatprep.subr.bf16.mxu0 0
        %1010 = vmatpush1.bf16.msra.mxu0 0
        %1011 = vmatprep.subr.bf16.mxu0 0
        %1012 = vmatpush1.bf16.msra.mxu0 0
        %1013 = vmatprep.subr.bf16.mxu0 0
        %1014 = vmatpush1.bf16.msra.mxu0 0
        %1015 = vmatprep.subr.bf16.mxu0 0
        %1016 = vmatpush1.bf16.msra.mxu0 0
        %1017 = vmatprep.subr.bf16.mxu0 0
        %1018 = vmatpush1.bf16.msra.mxu0 0
        %1019 = vmatprep.mubr.bf16.mxu0 0
        %1020 = vmatmul.mubr.bf16.gmra.mrb[0].mxu0 %v937
        %v1021 = vpop.f32.mrb[0].mxu0
        %v1022 = vadd.f32 %v931, %v1021
        %v1023 = vpop.f32.mrb[0].mxu0
        %v1024 = vpop.f32.mrb[0].mxu0
        %v1025 = vadd.f32 %v931, %v1024
        %v1026 = vpop.f32.mrb[0].mxu0
        %1027 = vdwg.mxu0
        %v1028 = vmax.f32 %v1022, 0.0
        %v1029 = vmax.f32 %v1025, 0.0
        %v1030 = vpack.c.bf16 %v1029, %v1028
        %v1032 = vunpack.c.l.b16 %v1030
        %v1033 = vunpack.c.h.b16 %v1030
        %v1034 = vpack.c.b16 %v1032, %v1032
        %v1035 = vpack.c.b16 %v1033, %v1033
        %v1036 = vrot.slane %v1034, 7
        %v1037 = vrot.slane %v1036, 4
        %v1038 = vrot.slane %v1035, 7
        %v1039 = vsel %vm835, %v1037, %v1038
        %v1040 = vrot.slane %v1038, 4
        %1044 = vst [vmem:[#allocation2] sm:$0xe] %v1036
        %1045 = vst [vmem:[#allocation2 + $0x4] sm:$0xf] %v1039
        %1046 = vst [vmem:[#allocation2 + $0x8] sm:$0x1] %v1040
      $region60: #{bottleneck_forward.1} parent=55 // pred_fallthru
        _
      %p1047 = scmp.lt.s32.totalorder %s25, 1
      // Predicated region
      $region61: #{bottleneck_forward.1} parent=55 // pred_check
        %p1048 = pneg %p1047
      $region62: #{bottleneck_forward.1} parent=55 // pred_check_branch
        %1050 = sbr.rel (%p1048) target = $region64
      $region63: #{bottleneck_forward.1} parent=55 // pred_region
        %v1051 = vld [vmem:[%s485] sm:$0xf]
        %v1052 = vld [vmem:[%s485 + $0x4] sm:$0xf]
        %v1053 = vld [vmem:[%s3] sm:$0xf]
        %v1054 = vld [vmem:[%s3 + $0x4] sm:$0xf]
        %v1055 = vld [vmem:[%s3 + $0x8] sm:$0xf]
        %v1056 = vld [vmem:[%s3 + $0xc] sm:$0xf]
        %v1057 = vld [vmem:[%s3 + $0x10] sm:$0xf]
        %v1058 = vld [vmem:[%s3 + $0x14] sm:$0xf]
        %v1059 = vld [vmem:[%s3 + $0x18] sm:$0xf]
        %v1060 = vld [vmem:[%s3 + $0x1c] sm:$0xf]
        %v1061 = vld [vmem:[%s3 + $0x20] sm:$0xf]
        %v1062 = vld [vmem:[%s3 + $0x24] sm:$0xf]
        %v1063 = vld [vmem:[%s3 + $0x28] sm:$0xf]
        %v1064 = vld [vmem:[%s3 + $0x2c] sm:$0xf]
        %v1065 = vld [vmem:[%s3 + $0x30] sm:$0xf]
        %v1066 = vld [vmem:[%s3 + $0x34] sm:$0xf]
        %v1067 = vld [vmem:[%s3 + $0x38] sm:$0xf]
        %v1068 = vld [vmem:[%s3 + $0x3c] sm:$0xf]
        %v1069 = vld [vmem:[%s4] sm:$0x1]
        %v1071 = vlaneseq
        %v1072 = vshrl.u32 %v1071, 7
        %v1073 = vsub.s32 0, %v1072
        %v1074 = vrot.slane %v1069, %v1073
        %v1078 = vunpack.c.l.b16 %v1051
        %v1079 = vunpack.c.l.b16 %v1052
        %v1080 = vpack.c.b16 %v1079, %v1078
        %v1098 = vunpack.c.l.b16 %v1053
        %v1099 = vunpack.c.l.b16 %v1054
        %v1100 = vunpack.c.l.b16 %v1055
        %v1101 = vunpack.c.l.b16 %v1056
        %v1102 = vunpack.c.l.b16 %v1057
        %v1103 = vunpack.c.l.b16 %v1058
        %v1104 = vunpack.c.l.b16 %v1059
        %v1105 = vunpack.c.l.b16 %v1060
        %v1106 = vunpack.c.l.b16 %v1061
        %v1107 = vunpack.c.l.b16 %v1062
        %v1108 = vunpack.c.l.b16 %v1063
        %v1109 = vunpack.c.l.b16 %v1064
        %v1110 = vunpack.c.l.b16 %v1065
        %v1111 = vunpack.c.l.b16 %v1066
        %v1112 = vunpack.c.l.b16 %v1067
        %v1113 = vunpack.c.l.b16 %v1068
        %v1114 = vpack.c.b16 %v1099, %v1098
        %v1115 = vpack.c.b16 %v1101, %v1100
        %v1116 = vpack.c.b16 %v1103, %v1102
        %v1117 = vpack.c.b16 %v1105, %v1104
        %v1118 = vpack.c.b16 %v1107, %v1106
        %v1119 = vpack.c.b16 %v1109, %v1108
        %v1120 = vpack.c.b16 %v1111, %v1110
        %v1121 = vpack.c.b16 %v1113, %v1112
        %1130 = vmatprep.subr.bf16.mxu0 0
        %1131 = vmatpush1.bf16.msra.mxu0 %v1114
        %1132 = vmatprep.subr.bf16.mxu0 0
        %1133 = vmatpush1.bf16.msra.mxu0 %v1115
        %1134 = vmatprep.subr.bf16.mxu0 0
        %1135 = vmatpush1.bf16.msra.mxu0 %v1116
        %1136 = vmatprep.subr.bf16.mxu0 0
        %1137 = vmatpush1.bf16.msra.mxu0 %v1117
        %1138 = vmatprep.subr.bf16.mxu0 0
        %1139 = vmatpush1.bf16.msra.mxu0 %v1118
        %1140 = vmatprep.subr.bf16.mxu0 0
        %1141 = vmatpush1.bf16.msra.mxu0 %v1119
        %1142 = vmatprep.subr.bf16.mxu0 0
        %1143 = vmatpush1.bf16.msra.mxu0 %v1120
        %1144 = vmatprep.subr.bf16.mxu0 0
        %1145 = vmatpush1.bf16.msra.mxu0 %v1121
        %1146 = vmatprep.subr.bf16.mxu0 0
        %1147 = vmatpush1.bf16.msra.mxu0 0
        %1148 = vmatprep.subr.bf16.mxu0 0
        %1149 = vmatpush1.bf16.msra.mxu0 0
        %1150 = vmatprep.subr.bf16.mxu0 0
        %1151 = vmatpush1.bf16.msra.mxu0 0
        %1152 = vmatprep.subr.bf16.mxu0 0
        %1153 = vmatpush1.bf16.msra.mxu0 0
        %1154 = vmatprep.subr.bf16.mxu0 0
        %1155 = vmatpush1.bf16.msra.mxu0 0
        %1156 = vmatprep.subr.bf16.mxu0 0
        %1157 = vmatpush1.bf16.msra.mxu0 0
        %1158 = vmatprep.subr.bf16.mxu0 0
        %1159 = vmatpush1.bf16.msra.mxu0 0
        %1160 = vmatprep.subr.bf16.mxu0 0
        %1161 = vmatpush1.bf16.msra.mxu0 0
        %1162 = vmatprep.mubr.bf16.mxu0 0
        %1163 = vmatmul.mubr.bf16.gmra.mrb[0].mxu0 %v1080
        %v1164 = vpop.f32.mrb[0].mxu0
        %v1165 = vadd.f32 %v1074, %v1164
        %v1166 = vpop.f32.mrb[0].mxu0
        %v1167 = vpop.f32.mrb[0].mxu0
        %v1168 = vadd.f32 %v1074, %v1167
        %v1169 = vpop.f32.mrb[0].mxu0
        %1170 = vdwg.mxu0
        %v1171 = vmax.f32 %v1165, 0.0
        %v1172 = vmax.f32 %v1168, 0.0
        %v1173 = vpack.c.bf16 %v1172, %v1171
        %v1175 = vunpack.c.l.b16 %v1173
        %v1176 = vunpack.c.h.b16 %v1173
        %v1177 = vpack.c.b16 %v1175, %v1175
        %v1178 = vpack.c.b16 %v1176, %v1176
        %v1179 = vrot.slane %v1177, 6
        %v1180 = vrot.slane %v1179, 4
        %v1181 = vrot.slane %v1178, 6
        %v1182 = vsel %vm788, %v1180, %v1181
        %v1183 = vrot.slane %v1181, 4
        %1187 = vst [vmem:[#allocation2 + $0x50] sm:$0xc] %v1179
        %1188 = vst [vmem:[#allocation2 + $0x54] sm:$0xf] %v1182
        %1189 = vst [vmem:[#allocation2 + $0x58] sm:$0x3] %v1183
      $region64: #{bottleneck_forward.1} parent=55 // pred_fallthru
        _
      %v1190 = vld [vmem:[#allocation2] sm:$0xf]
      %v1191 = vld [vmem:[#allocation2 + $0x4] sm:$0xf]
      %v1192 = vld [vmem:[#allocation2 + $0x8] sm:$0xf]
      %v1193 = vld [vmem:[#allocation2 + $0xc] sm:$0xf]
      %v1194 = vld [vmem:[#allocation2 + $0x10] sm:$0xf]
      %v1195 = vld [vmem:[#allocation2 + $0x14] sm:$0xf]
      %v1196 = vld [vmem:[#allocation2 + $0x18] sm:$0xf]
      %v1197 = vld [vmem:[#allocation2 + $0x1c] sm:$0xf]
      %v1198 = vld [vmem:[#allocation2 + $0x20] sm:$0xf]
      %v1199 = vld [vmem:[#allocation2 + $0x24] sm:$0xf]
      %v1200 = vld [vmem:[#allocation2 + $0x28] sm:$0xf]
      %v1201 = vld [vmem:[#allocation2 + $0x2c] sm:$0xf]
      %v1202 = vld [vmem:[#allocation2 + $0x30] sm:$0xf]
      %v1203 = vld [vmem:[#allocation2 + $0x34] sm:$0xf]
      %v1204 = vld [vmem:[#allocation2 + $0x38] sm:$0xf]
      %v1205 = vld [vmem:[#allocation2 + $0x3c] sm:$0xf]
      %v1206 = vld [vmem:[#allocation2 + $0x40] sm:$0xf]
      %v1207 = vld [vmem:[#allocation2 + $0x44] sm:$0xf]
      %v1208 = vld [vmem:[#allocation2 + $0x48] sm:$0x1]
      %v1209 = vld [vmem:[%s5] sm:$0xf]
      %v1210 = vld [vmem:[%s5 + $0x4] sm:$0xf]
      %v1211 = vld [vmem:[%s5 + $0x8] sm:$0xf]
      %v1212 = vld [vmem:[%s5 + $0xc] sm:$0xf]
      %v1213 = vld [vmem:[%s5 + $0x10] sm:$0xf]
      %v1214 = vld [vmem:[%s5 + $0x14] sm:$0xf]
      %v1215 = vld [vmem:[%s5 + $0x18] sm:$0xf]
      %v1216 = vld [vmem:[%s5 + $0x1c] sm:$0xf]
      %v1217 = vld [vmem:[%s5 + $0x20] sm:$0xf]
      %v1218 = vld [vmem:[%s5 + $0x24] sm:$0xf]
      %v1219 = vld [vmem:[%s5 + $0x28] sm:$0xf]
      %v1220 = vld [vmem:[%s5 + $0x2c] sm:$0xf]
      %v1221 = vld [vmem:[%s5 + $0x30] sm:$0xf]
      %v1222 = vld [vmem:[%s5 + $0x34] sm:$0xf]
      %v1223 = vld [vmem:[%s5 + $0x38] sm:$0xf]
      %v1224 = vld [vmem:[%s5 + $0x3c] sm:$0xf]
      %v1244 = vunpack.c.l.b16 %v1190
      %v1245 = vunpack.c.l.b16 %v1191
      %v1246 = vunpack.c.l.b16 %v1192
      %v1247 = vunpack.c.l.b16 %v1193
      %v1248 = vunpack.c.l.b16 %v1194
      %v1249 = vunpack.c.l.b16 %v1195
      %v1250 = vunpack.c.l.b16 %v1196
      %v1251 = vunpack.c.l.b16 %v1197
      %v1252 = vunpack.c.l.b16 %v1198
      %v1253 = vunpack.c.l.b16 %v1199
      %v1254 = vunpack.c.l.b16 %v1200
      %v1255 = vunpack.c.l.b16 %v1201
      %v1256 = vunpack.c.l.b16 %v1202
      %v1257 = vunpack.c.l.b16 %v1203
      %v1258 = vunpack.c.l.b16 %v1204
      %v1259 = vunpack.c.l.b16 %v1205
      %v1260 = vunpack.c.l.b16 %v1206
      %v1261 = vunpack.c.l.b16 %v1207
      %v1262 = vunpack.c.l.b16 %v1208
      %v1263 = vpack.c.b16 %v1245, %v1244
      %v1264 = vpack.c.b16 %v1247, %v1246
      %v1265 = vpack.c.b16 %v1249, %v1248
      %v1266 = vpack.c.b16 %v1251, %v1250
      %v1267 = vpack.c.b16 %v1253, %v1252
      %v1268 = vpack.c.b16 %v1255, %v1254
      %v1269 = vpack.c.b16 %v1257, %v1256
      %v1270 = vpack.c.b16 %v1259, %v1258
      %v1271 = vpack.c.b16 %v1261, %v1260
      %v1272 = vpack.c.b16 %v1262, %v1262
      %v1299 = vunpack.c.l.b16 %v1209
      %v1300 = vunpack.c.l.b16 %v1210
      %v1301 = vunpack.c.l.b16 %v1211
      %v1302 = vunpack.c.l.b16 %v1212
      %v1303 = vunpack.c.l.b16 %v1213
      %v1304 = vunpack.c.l.b16 %v1214
      %v1305 = vunpack.c.l.b16 %v1215
      %v1306 = vunpack.c.l.b16 %v1216
      %v1307 = vunpack.c.l.b16 %v1217
      %v1308 = vunpack.c.l.b16 %v1218
      %v1309 = vunpack.c.l.b16 %v1219
      %v1310 = vunpack.c.l.b16 %v1220
      %v1311 = vunpack.c.l.b16 %v1221
      %v1312 = vunpack.c.l.b16 %v1222
      %v1313 = vunpack.c.l.b16 %v1223
      %v1314 = vunpack.c.l.b16 %v1224
      %v1315 = vpack.c.b16 %v1300, %v1299
      %v1316 = vpack.c.b16 %v1302, %v1301
      %v1317 = vpack.c.b16 %v1304, %v1303
      %v1318 = vpack.c.b16 %v1306, %v1305
      %v1319 = vpack.c.b16 %v1308, %v1307
      %v1320 = vpack.c.b16 %v1310, %v1309
      %v1321 = vpack.c.b16 %v1312, %v1311
      %v1322 = vpack.c.b16 %v1314, %v1313
      %1331 = vmatprep.subr.bf16.mxu0 0
      %1332 = vmatpush1.bf16.msra.mxu0 %v1315
      %1333 = vmatprep.subr.bf16.mxu0 0
      %1334 = vmatpush1.bf16.msra.mxu0 %v1316
      %1335 = vmatprep.subr.bf16.mxu0 0
      %1336 = vmatpush1.bf16.msra.mxu0 %v1317
      %1337 = vmatprep.subr.bf16.mxu0 0
      %1338 = vmatpush1.bf16.msra.mxu0 %v1318
      %1339 = vmatprep.subr.bf16.mxu0 0
      %1340 = vmatpush1.bf16.msra.mxu0 %v1319
      %1341 = vmatprep.subr.bf16.mxu0 0
      %1342 = vmatpush1.bf16.msra.mxu0 %v1320
      %1343 = vmatprep.subr.bf16.mxu0 0
      %1344 = vmatpush1.bf16.msra.mxu0 %v1321
      %1345 = vmatprep.subr.bf16.mxu0 0
      %1346 = vmatpush1.bf16.msra.mxu0 %v1322
      %1347 = vmatprep.subr.bf16.mxu0 0
      %1348 = vmatpush1.bf16.msra.mxu0 0
      %1349 = vmatprep.subr.bf16.mxu0 0
      %1350 = vmatpush1.bf16.msra.mxu0 0
      %1351 = vmatprep.subr.bf16.mxu0 0
      %1352 = vmatpush1.bf16.msra.mxu0 0
      %1353 = vmatprep.subr.bf16.mxu0 0
      %1354 = vmatpush1.bf16.msra.mxu0 0
      %1355 = vmatprep.subr.bf16.mxu0 0
      %1356 = vmatpush1.bf16.msra.mxu0 0
      %1357 = vmatprep.subr.bf16.mxu0 0
      %1358 = vmatpush1.bf16.msra.mxu0 0
      %1359 = vmatprep.subr.bf16.mxu0 0
      %1360 = vmatpush1.bf16.msra.mxu0 0
      %1361 = vmatprep.subr.bf16.mxu0 0
      %1362 = vmatpush1.bf16.msra.mxu0 0
      %1363 = vmatprep.mubr.bf16.mxu0 0
      %1364 = vmatmul.mubr.bf16.gmra.mrb[0].mxu0 %v1263
      %v1365 = vpop.f32.mrb[0].mxu0
      %v1366 = vadd.f32 0.0, %v1365
      %v1367 = vpop.f32.mrb[0].mxu0
      %v1368 = vpop.f32.mrb[0].mxu0
      %v1369 = vadd.f32 0.0, %v1368
      %v1370 = vpop.f32.mrb[0].mxu0
      %1371 = vmatprep.mubr.bf16.mxu0 0
      %1372 = vmatmul.mubr.bf16.gmra.mrb[0].mxu0 %v1264
      %v1373 = vpop.f32.mrb[0].mxu0
      %v1374 = vadd.f32 0.0, %v1373
      %v1375 = vpop.f32.mrb[0].mxu0
      %v1376 = vpop.f32.mrb[0].mxu0
      %v1377 = vadd.f32 0.0, %v1376
      %v1378 = vpop.f32.mrb[0].mxu0
      %1379 = vmatprep.mubr.bf16.mxu0 0
      %1380 = vmatmul.mubr.bf16.gmra.mrb[0].mxu0 %v1265
      %v1381 = vpop.f32.mrb[0].mxu0
      %v1382 = vadd.f32 0.0, %v1381
      %v1383 = vpop.f32.mrb[0].mxu0
      %v1384 = vpop.f32.mrb[0].mxu0
      %v1385 = vadd.f32 0.0, %v1384
      %v1386 = vpop.f32.mrb[0].mxu0
      %1387 = vmatprep.mubr.bf16.mxu0 0
      %1388 = vmatmul.mubr.bf16.gmra.mrb[0].mxu0 %v1266
      %v1389 = vpop.f32.mrb[0].mxu0
      %v1390 = vadd.f32 0.0, %v1389
      %v1391 = vpop.f32.mrb[0].mxu0
      %v1392 = vpop.f32.mrb[0].mxu0
      %v1393 = vadd.f32 0.0, %v1392
      %v1394 = vpop.f32.mrb[0].mxu0
      %1395 = vmatprep.mubr.bf16.mxu0 0
      %1396 = vmatmul.mubr.bf16.gmra.mrb[0].mxu0 %v1267
      %v1397 = vpop.f32.mrb[0].mxu0
      %v1398 = vadd.f32 0.0, %v1397
      %v1399 = vpop.f32.mrb[0].mxu0
      %v1400 = vpop.f32.mrb[0].mxu0
      %v1401 = vadd.f32 0.0, %v1400
      %v1402 = vpop.f32.mrb[0].mxu0
      %1403 = vmatprep.mubr.bf16.mxu0 0
      %1404 = vmatmul.mubr.bf16.gmra.mrb[0].mxu0 %v1268
      %v1405 = vpop.f32.mrb[0].mxu0
      %v1406 = vadd.f32 0.0, %v1405
      %v1407 = vpop.f32.mrb[0].mxu0
      %v1408 = vpop.f32.mrb[0].mxu0
      %v1409 = vadd.f32 0.0, %v1408
      %v1410 = vpop.f32.mrb[0].mxu0
      %1411 = vmatprep.mubr.bf16.mxu0 0
      %1412 = vmatmul.mubr.bf16.gmra.mrb[0].mxu0 %v1269
      %v1413 = vpop.f32.mrb[0].mxu0
      %v1414 = vadd.f32 0.0, %v1413
      %v1415 = vpop.f32.mrb[0].mxu0
      %v1416 = vpop.f32.mrb[0].mxu0
      %v1417 = vadd.f32 0.0, %v1416
      %v1418 = vpop.f32.mrb[0].mxu0
      %1419 = vmatprep.mubr.bf16.mxu0 0
      %1420 = vmatmul.mubr.bf16.gmra.mrb[0].mxu0 %v1270
      %v1421 = vpop.f32.mrb[0].mxu0
      %v1422 = vadd.f32 0.0, %v1421
      %v1423 = vpop.f32.mrb[0].mxu0
      %v1424 = vpop.f32.mrb[0].mxu0
      %v1425 = vadd.f32 0.0, %v1424
      %v1426 = vpop.f32.mrb[0].mxu0
      %1427 = vmatprep.mubr.bf16.mxu0 0
      %1428 = vmatmul.mubr.bf16.gmra.mrb[0].mxu0 %v1271
      %v1429 = vpop.f32.mrb[0].mxu0
      %v1430 = vadd.f32 0.0, %v1429
      %v1431 = vpop.f32.mrb[0].mxu0
      %v1432 = vpop.f32.mrb[0].mxu0
      %v1433 = vadd.f32 0.0, %v1432
      %v1434 = vpop.f32.mrb[0].mxu0
      %1435 = vmatprep.mubr.bf16.mxu0 0
      %1436 = vmatmul.mubr.bf16.gmra.mrb[0].mxu0 %v1272
      %v1437 = vpop.f32.mrb[0].mxu0
      %v1438 = vpop.f32.mrb[0].mxu0
      %v1439 = vpop.f32.mrb[0].mxu0
      %v1440 = vpop.f32.mrb[0].mxu0
      %1441 = vdwg.mxu0
      %s1442 = scalar_lea.vmem %s5, 64
      %v1443 = vld [vmem:[%s1442] sm:$0xf]
      %v1444 = vld [vmem:[%s1442 + $0x4] sm:$0xf]
      %v1445 = vld [vmem:[%s1442 + $0x8] sm:$0xf]
      %v1446 = vld [vmem:[%s1442 + $0xc] sm:$0xf]
      %v1447 = vld [vmem:[%s1442 + $0x10] sm:$0xf]
      %v1448 = vld [vmem:[%s1442 + $0x14] sm:$0xf]
      %v1449 = vld [vmem:[%s1442 + $0x18] sm:$0xf]
      %v1450 = vld [vmem:[%s1442 + $0x1c] sm:$0xf]
      %v1451 = vld [vmem:[%s1442 + $0x20] sm:$0xf]
      %v1452 = vld [vmem:[%s1442 + $0x24] sm:$0xf]
      %v1453 = vld [vmem:[%s1442 + $0x28] sm:$0xf]
      %v1454 = vld [vmem:[%s1442 + $0x2c] sm:$0xf]
      %v1455 = vld [vmem:[%s1442 + $0x30] sm:$0xf]
      %v1456 = vld [vmem:[%s1442 + $0x34] sm:$0xf]
      %v1457 = vld [vmem:[%s1442 + $0x38] sm:$0xf]
      %v1458 = vld [vmem:[%s1442 + $0x3c] sm:$0xf]
      %v1475 = vunpack.c.l.b16 %v1443
      %v1476 = vunpack.c.l.b16 %v1444
      %v1477 = vunpack.c.l.b16 %v1445
      %v1478 = vunpack.c.l.b16 %v1446
      %v1479 = vunpack.c.l.b16 %v1447
      %v1480 = vunpack.c.l.b16 %v1448
      %v1481 = vunpack.c.l.b16 %v1449
      %v1482 = vunpack.c.l.b16 %v1450
      %v1483 = vunpack.c.l.b16 %v1451
      %v1484 = vunpack.c.l.b16 %v1452
      %v1485 = vunpack.c.l.b16 %v1453
      %v1486 = vunpack.c.l.b16 %v1454
      %v1487 = vunpack.c.l.b16 %v1455
      %v1488 = vunpack.c.l.b16 %v1456
      %v1489 = vunpack.c.l.b16 %v1457
      %v1490 = vunpack.c.l.b16 %v1458
      %v1491 = vpack.c.b16 %v1476, %v1475
      %v1492 = vpack.c.b16 %v1478, %v1477
      %v1493 = vpack.c.b16 %v1480, %v1479
      %v1494 = vpack.c.b16 %v1482, %v1481
      %v1495 = vpack.c.b16 %v1484, %v1483
      %v1496 = vpack.c.b16 %v1486, %v1485
      %v1497 = vpack.c.b16 %v1488, %v1487
      %v1498 = vpack.c.b16 %v1490, %v1489
      %1507 = vmatprep.subr.bf16.mxu0 0
      %1508 = vmatpush1.bf16.msra.mxu0 %v1491
      %1509 = vmatprep.subr.bf16.mxu0 0
      %1510 = vmatpush1.bf16.msra.mxu0 %v1492
      %1511 = vmatprep.subr.bf16.mxu0 0
      %1512 = vmatpush1.bf16.msra.mxu0 %v1493
      %1513 = vmatprep.subr.bf16.mxu0 0
      %1514 = vmatpush1.bf16.msra.mxu0 %v1494
      %1515 = vmatprep.subr.bf16.mxu0 0
      %1516 = vmatpush1.bf16.msra.mxu0 %v1495
      %1517 = vmatprep.subr.bf16.mxu0 0
      %1518 = vmatpush1.bf16.msra.mxu0 %v1496
      %1519 = vmatprep.subr.bf16.mxu0 0
      %1520 = vmatpush1.bf16.msra.mxu0 %v1497
      %1521 = vmatprep.subr.bf16.mxu0 0
      %1522 = vmatpush1.bf16.msra.mxu0 %v1498
      %1523 = vmatprep.subr.bf16.mxu0 0
      %1524 = vmatpush1.bf16.msra.mxu0 0
      %1525 = vmatprep.subr.bf16.mxu0 0
      %1526 = vmatpush1.bf16.msra.mxu0 0
      %1527 = vmatprep.subr.bf16.mxu0 0
      %1528 = vmatpush1.bf16.msra.mxu0 0
      %1529 = vmatprep.subr.bf16.mxu0 0
      %1530 = vmatpush1.bf16.msra.mxu0 0
      %1531 = vmatprep.subr.bf16.mxu0 0
      %1532 = vmatpush1.bf16.msra.mxu0 0
      %1533 = vmatprep.subr.bf16.mxu0 0
      %1534 = vmatpush1.bf16.msra.mxu0 0
      %1535 = vmatprep.subr.bf16.mxu0 0
      %1536 = vmatpush1.bf16.msra.mxu0 0
      %1537 = vmatprep.subr.bf16.mxu0 0
      %1538 = vmatpush1.bf16.msra.mxu0 0
      %1539 = vmatprep.mubr.bf16.mxu0 0
      %1540 = vmatmul.mubr.bf16.gmra.mrb[0].mxu0 %v1263
      %v1541 = vpop.f32.mrb[0].mxu0
      %v1542 = vadd.f32 0.0, %v1541
      %v1543 = vpop.f32.mrb[0].mxu0
      %v1544 = vpop.f32.mrb[0].mxu0
      %v1545 = vadd.f32 0.0, %v1544
      %v1546 = vpop.f32.mrb[0].mxu0
      %1547 = vmatprep.mubr.bf16.mxu0 0
      %1548 = vmatmul.mubr.bf16.gmra.mrb[0].mxu0 %v1264
      %v1549 = vpop.f32.mrb[0].mxu0
      %v1550 = vadd.f32 0.0, %v1549
      %v1551 = vpop.f32.mrb[0].mxu0
      %v1552 = vpop.f32.mrb[0].mxu0
      %v1553 = vadd.f32 0.0, %v1552
      %v1554 = vpop.f32.mrb[0].mxu0
      %1555 = vmatprep.mubr.bf16.mxu0 0
      %1556 = vmatmul.mubr.bf16.gmra.mrb[0].mxu0 %v1265
      %v1557 = vpop.f32.mrb[0].mxu0
      %v1558 = vadd.f32 0.0, %v1557
      %v1559 = vpop.f32.mrb[0].mxu0
      %v1560 = vpop.f32.mrb[0].mxu0
      %v1561 = vadd.f32 0.0, %v1560
      %v1562 = vpop.f32.mrb[0].mxu0
      %1563 = vmatprep.mubr.bf16.mxu0 0
      %1564 = vmatmul.mubr.bf16.gmra.mrb[0].mxu0 %v1266
      %v1565 = vpop.f32.mrb[0].mxu0
      %v1566 = vadd.f32 0.0, %v1565
      %v1567 = vpop.f32.mrb[0].mxu0
      %v1568 = vpop.f32.mrb[0].mxu0
      %v1569 = vadd.f32 0.0, %v1568
      %v1570 = vpop.f32.mrb[0].mxu0
      %1571 = vmatprep.mubr.bf16.mxu0 0
      %1572 = vmatmul.mubr.bf16.gmra.mrb[0].mxu0 %v1267
      %v1573 = vpop.f32.mrb[0].mxu0
      %v1574 = vadd.f32 0.0, %v1573
      %v1575 = vpop.f32.mrb[0].mxu0
      %v1576 = vpop.f32.mrb[0].mxu0
      %v1577 = vadd.f32 0.0, %v1576
      %v1578 = vpop.f32.mrb[0].mxu0
      %1579 = vmatprep.mubr.bf16.mxu0 0
      %1580 = vmatmul.mubr.bf16.gmra.mrb[0].mxu0 %v1268
      %v1581 = vpop.f32.mrb[0].mxu0
      %v1582 = vadd.f32 0.0, %v1581
      %v1583 = vpop.f32.mrb[0].mxu0
      %v1584 = vpop.f32.mrb[0].mxu0
      %v1585 = vadd.f32 0.0, %v1584
      %v1586 = vpop.f32.mrb[0].mxu0
      %1587 = vmatprep.mubr.bf16.mxu0 0
      %1588 = vmatmul.mubr.bf16.gmra.mrb[0].mxu0 %v1269
      %v1589 = vpop.f32.mrb[0].mxu0
      %v1590 = vadd.f32 0.0, %v1589
      %v1591 = vpop.f32.mrb[0].mxu0
      %v1592 = vpop.f32.mrb[0].mxu0
      %v1593 = vadd.f32 0.0, %v1592
      %v1594 = vpop.f32.mrb[0].mxu0
      %1595 = vmatprep.mubr.bf16.mxu0 0
      %1596 = vmatmul.mubr.bf16.gmra.mrb[0].mxu0 %v1270
      %v1597 = vpop.f32.mrb[0].mxu0
      %v1598 = vadd.f32 0.0, %v1597
      %v1599 = vpop.f32.mrb[0].mxu0
      %v1600 = vpop.f32.mrb[0].mxu0
      %v1601 = vadd.f32 0.0, %v1600
      %v1602 = vpop.f32.mrb[0].mxu0
      %1603 = vmatprep.mubr.bf16.mxu0 0
      %1604 = vmatmul.mubr.bf16.gmra.mrb[0].mxu0 %v1271
      %v1605 = vpop.f32.mrb[0].mxu0
      %v1606 = vadd.f32 0.0, %v1605
      %v1607 = vpop.f32.mrb[0].mxu0
      %v1608 = vpop.f32.mrb[0].mxu0
      %v1609 = vadd.f32 0.0, %v1608
      %v1610 = vpop.f32.mrb[0].mxu0
      %1611 = vmatprep.mubr.bf16.mxu0 0
      %1612 = vmatmul.mubr.bf16.gmra.mrb[0].mxu0 %v1272
      %v1613 = vpop.f32.mrb[0].mxu0
      %v1614 = vadd.f32 0.0, %v1613
      %v1615 = vpop.f32.mrb[0].mxu0
      %v1616 = vpop.f32.mrb[0].mxu0
      %v1617 = vpop.f32.mrb[0].mxu0
      %1618 = vdwg.mxu0
      %vm1638 = vcmask 1046528
      %v1639 = vrot.slane %v1542, 1
      %v1640 = vrot.slane %v1545, 1
      %v1641 = vsel %vm1638, %v1639, %v1640
      %v1642 = vrot.slane %v1550, 1
      %v1643 = vsel %vm1638, %v1640, %v1642
      %v1644 = vrot.slane %v1553, 1
      %v1645 = vsel %vm1638, %v1642, %v1644
      %v1646 = vrot.slane %v1558, 1
      %v1647 = vsel %vm1638, %v1644, %v1646
      %v1648 = vrot.slane %v1561, 1
      %v1649 = vsel %vm1638, %v1646, %v1648
      %v1650 = vrot.slane %v1566, 1
      %v1651 = vsel %vm1638, %v1648, %v1650
      %v1652 = vrot.slane %v1569, 1
      %v1653 = vsel %vm1638, %v1650, %v1652
      %v1654 = vrot.slane %v1574, 1
      %v1655 = vsel %vm1638, %v1652, %v1654
      %v1656 = vrot.slane %v1577, 1
      %v1657 = vsel %vm1638, %v1654, %v1656
      %v1658 = vrot.slane %v1582, 1
      %v1659 = vsel %vm1638, %v1656, %v1658
      %v1660 = vrot.slane %v1585, 1
      %v1661 = vsel %vm1638, %v1658, %v1660
      %v1662 = vrot.slane %v1590, 1
      %v1663 = vsel %vm1638, %v1660, %v1662
      %v1664 = vrot.slane %v1593, 1
      %v1665 = vsel %vm1638, %v1662, %v1664
      %v1666 = vrot.slane %v1598, 1
      %v1667 = vsel %vm1638, %v1664, %v1666
      %v1668 = vrot.slane %v1601, 1
      %v1669 = vsel %vm1638, %v1666, %v1668
      %v1670 = vrot.slane %v1606, 1
      %v1671 = vsel %vm1638, %v1668, %v1670
      %v1672 = vrot.slane %v1609, 1
      %v1673 = vsel %vm1638, %v1670, %v1672
      %v1674 = vrot.slane %v1614, 1
      %v1675 = vsel %vm1638, %v1672, %v1674
      %v1694 = vadd.f32 %v1366, %v1641
      %v1695 = vadd.f32 %v1369, %v1643
      %v1696 = vadd.f32 %v1374, %v1645
      %v1697 = vadd.f32 %v1377, %v1647
      %v1698 = vadd.f32 %v1382, %v1649
      %v1699 = vadd.f32 %v1385, %v1651
      %v1700 = vadd.f32 %v1390, %v1653
      %v1701 = vadd.f32 %v1393, %v1655
      %v1702 = vadd.f32 %v1398, %v1657
      %v1703 = vadd.f32 %v1401, %v1659
      %v1704 = vadd.f32 %v1406, %v1661
      %v1705 = vadd.f32 %v1409, %v1663
      %v1706 = vadd.f32 %v1414, %v1665
      %v1707 = vadd.f32 %v1417, %v1667
      %v1708 = vadd.f32 %v1422, %v1669
      %v1709 = vadd.f32 %v1425, %v1671
      %v1710 = vadd.f32 %v1430, %v1673
      %v1711 = vadd.f32 %v1433, %v1675
      %s1712 = scalar_lea.vmem %s5, 128
      %v1713 = vld [vmem:[%s1712] sm:$0xf]
      %v1714 = vld [vmem:[%s1712 + $0x4] sm:$0xf]
      %v1715 = vld [vmem:[%s1712 + $0x8] sm:$0xf]
      %v1716 = vld [vmem:[%s1712 + $0xc] sm:$0xf]
      %v1717 = vld [vmem:[%s1712 + $0x10] sm:$0xf]
      %v1718 = vld [vmem:[%s1712 + $0x14] sm:$0xf]
      %v1719 = vld [vmem:[%s1712 + $0x18] sm:$0xf]
      %v1720 = vld [vmem:[%s1712 + $0x1c] sm:$0xf]
      %v1721 = vld [vmem:[%s1712 + $0x20] sm:$0xf]
      %v1722 = vld [vmem:[%s1712 + $0x24] sm:$0xf]
      %v1723 = vld [vmem:[%s1712 + $0x28] sm:$0xf]
      %v1724 = vld [vmem:[%s1712 + $0x2c] sm:$0xf]
      %v1725 = vld [vmem:[%s1712 + $0x30] sm:$0xf]
      %v1726 = vld [vmem:[%s1712 + $0x34] sm:$0xf]
      %v1727 = vld [vmem:[%s1712 + $0x38] sm:$0xf]
      %v1728 = vld [vmem:[%s1712 + $0x3c] sm:$0xf]
      %v1745 = vunpack.c.l.b16 %v1713
      %v1746 = vunpack.c.l.b16 %v1714
      %v1747 = vunpack.c.l.b16 %v1715
      %v1748 = vunpack.c.l.b16 %v1716
      %v1749 = vunpack.c.l.b16 %v1717
      %v1750 = vunpack.c.l.b16 %v1718
      %v1751 = vunpack.c.l.b16 %v1719
      %v1752 = vunpack.c.l.b16 %v1720
      %v1753 = vunpack.c.l.b16 %v1721
      %v1754 = vunpack.c.l.b16 %v1722
      %v1755 = vunpack.c.l.b16 %v1723
      %v1756 = vunpack.c.l.b16 %v1724
      %v1757 = vunpack.c.l.b16 %v1725
      %v1758 = vunpack.c.l.b16 %v1726
      %v1759 = vunpack.c.l.b16 %v1727
      %v1760 = vunpack.c.l.b16 %v1728
      %v1761 = vpack.c.b16 %v1746, %v1745
      %v1762 = vpack.c.b16 %v1748, %v1747
      %v1763 = vpack.c.b16 %v1750, %v1749
      %v1764 = vpack.c.b16 %v1752, %v1751
      %v1765 = vpack.c.b16 %v1754, %v1753
      %v1766 = vpack.c.b16 %v1756, %v1755
      %v1767 = vpack.c.b16 %v1758, %v1757
      %v1768 = vpack.c.b16 %v1760, %v1759
      %1777 = vmatprep.subr.bf16.mxu0 0
      %1778 = vmatpush1.bf16.msra.mxu0 %v1761
      %1779 = vmatprep.subr.bf16.mxu0 0
      %1780 = vmatpush1.bf16.msra.mxu0 %v1762
      %1781 = vmatprep.subr.bf16.mxu0 0
      %1782 = vmatpush1.bf16.msra.mxu0 %v1763
      %1783 = vmatprep.subr.bf16.mxu0 0
      %1784 = vmatpush1.bf16.msra.mxu0 %v1764
      %1785 = vmatprep.subr.bf16.mxu0 0
      %1786 = vmatpush1.bf16.msra.mxu0 %v1765
      %1787 = vmatprep.subr.bf16.mxu0 0
      %1788 = vmatpush1.bf16.msra.mxu0 %v1766
      %1789 = vmatprep.subr.bf16.mxu0 0
      %1790 = vmatpush1.bf16.msra.mxu0 %v1767
      %1791 = vmatprep.subr.bf16.mxu0 0
      %1792 = vmatpush1.bf16.msra.mxu0 %v1768
      %1793 = vmatprep.subr.bf16.mxu0 0
      %1794 = vmatpush1.bf16.msra.mxu0 0
      %1795 = vmatprep.subr.bf16.mxu0 0
      %1796 = vmatpush1.bf16.msra.mxu0 0
      %1797 = vmatprep.subr.bf16.mxu0 0
      %1798 = vmatpush1.bf16.msra.mxu0 0
      %1799 = vmatprep.subr.bf16.mxu0 0
      %1800 = vmatpush1.bf16.msra.mxu0 0
      %1801 = vmatprep.subr.bf16.mxu0 0
      %1802 = vmatpush1.bf16.msra.mxu0 0
      %1803 = vmatprep.subr.bf16.mxu0 0
      %1804 = vmatpush1.bf16.msra.mxu0 0
      %1805 = vmatprep.subr.bf16.mxu0 0
      %1806 = vmatpush1.bf16.msra.mxu0 0
      %1807 = vmatprep.subr.bf16.mxu0 0
      %1808 = vmatpush1.bf16.msra.mxu0 0
      %1809 = vmatprep.mubr.bf16.mxu0 0
      %1810 = vmatmul.mubr.bf16.gmra.mrb[0].mxu0 %v1263
      %v1811 = vpop.f32.mrb[0].mxu0
      %v1812 = vadd.f32 0.0, %v1811
      %v1813 = vpop.f32.mrb[0].mxu0
      %v1814 = vpop.f32.mrb[0].mxu0
      %v1815 = vadd.f32 0.0, %v1814
      %v1816 = vpop.f32.mrb[0].mxu0
      %1817 = vmatprep.mubr.bf16.mxu0 0
      %1818 = vmatmul.mubr.bf16.gmra.mrb[0].mxu0 %v1264
      %v1819 = vpop.f32.mrb[0].mxu0
      %v1820 = vadd.f32 0.0, %v1819
      %v1821 = vpop.f32.mrb[0].mxu0
      %v1822 = vpop.f32.mrb[0].mxu0
      %v1823 = vadd.f32 0.0, %v1822
      %v1824 = vpop.f32.mrb[0].mxu0
      %1825 = vmatprep.mubr.bf16.mxu0 0
      %1826 = vmatmul.mubr.bf16.gmra.mrb[0].mxu0 %v1265
      %v1827 = vpop.f32.mrb[0].mxu0
      %v1828 = vadd.f32 0.0, %v1827
      %v1829 = vpop.f32.mrb[0].mxu0
      %v1830 = vpop.f32.mrb[0].mxu0
      %v1831 = vadd.f32 0.0, %v1830
      %v1832 = vpop.f32.mrb[0].mxu0
      %1833 = vmatprep.mubr.bf16.mxu0 0
      %1834 = vmatmul.mubr.bf16.gmra.mrb[0].mxu0 %v1266
      %v1835 = vpop.f32.mrb[0].mxu0
      %v1836 = vadd.f32 0.0, %v1835
      %v1837 = vpop.f32.mrb[0].mxu0
      %v1838 = vpop.f32.mrb[0].mxu0
      %v1839 = vadd.f32 0.0, %v1838
      %v1840 = vpop.f32.mrb[0].mxu0
      %1841 = vmatprep.mubr.bf16.mxu0 0
      %1842 = vmatmul.mubr.bf16.gmra.mrb[0].mxu0 %v1267
      %v1843 = vpop.f32.mrb[0].mxu0
      %v1844 = vadd.f32 0.0, %v1843
      %v1845 = vpop.f32.mrb[0].mxu0
      %v1846 = vpop.f32.mrb[0].mxu0
      %v1847 = vadd.f32 0.0, %v1846
      %v1848 = vpop.f32.mrb[0].mxu0
      %1849 = vmatprep.mubr.bf16.mxu0 0
      %1850 = vmatmul.mubr.bf16.gmra.mrb[0].mxu0 %v1268
      %v1851 = vpop.f32.mrb[0].mxu0
      %v1852 = vadd.f32 0.0, %v1851
      %v1853 = vpop.f32.mrb[0].mxu0
      %v1854 = vpop.f32.mrb[0].mxu0
      %v1855 = vadd.f32 0.0, %v1854
      %v1856 = vpop.f32.mrb[0].mxu0
      %1857 = vmatprep.mubr.bf16.mxu0 0
      %1858 = vmatmul.mubr.bf16.gmra.mrb[0].mxu0 %v1269
      %v1859 = vpop.f32.mrb[0].mxu0
      %v1860 = vadd.f32 0.0, %v1859
      %v1861 = vpop.f32.mrb[0].mxu0
      %v1862 = vpop.f32.mrb[0].mxu0
      %v1863 = vadd.f32 0.0, %v1862
      %v1864 = vpop.f32.mrb[0].mxu0
      %1865 = vmatprep.mubr.bf16.mxu0 0
      %1866 = vmatmul.mubr.bf16.gmra.mrb[0].mxu0 %v1270
      %v1867 = vpop.f32.mrb[0].mxu0
      %v1868 = vadd.f32 0.0, %v1867
      %v1869 = vpop.f32.mrb[0].mxu0
      %v1870 = vpop.f32.mrb[0].mxu0
      %v1871 = vadd.f32 0.0, %v1870
      %v1872 = vpop.f32.mrb[0].mxu0
      %1873 = vmatprep.mubr.bf16.mxu0 0
      %1874 = vmatmul.mubr.bf16.gmra.mrb[0].mxu0 %v1271
      %v1875 = vpop.f32.mrb[0].mxu0
      %v1876 = vadd.f32 0.0, %v1875
      %v1877 = vpop.f32.mrb[0].mxu0
      %v1878 = vpop.f32.mrb[0].mxu0
      %v1879 = vadd.f32 0.0, %v1878
      %v1880 = vpop.f32.mrb[0].mxu0
      %1881 = vmatprep.mubr.bf16.mxu0 0
      %1882 = vmatmul.mubr.bf16.gmra.mrb[0].mxu0 %v1272
      %v1883 = vpop.f32.mrb[0].mxu0
      %v1884 = vadd.f32 0.0, %v1883
      %v1885 = vpop.f32.mrb[0].mxu0
      %v1886 = vpop.f32.mrb[0].mxu0
      %v1887 = vpop.f32.mrb[0].mxu0
      %1888 = vdwg.mxu0
      %vm1908 = vcmask 1045504
      %v1909 = vrot.slane %v1812, 2
      %v1910 = vrot.slane %v1815, 2
      %v1911 = vsel %vm1908, %v1909, %v1910
      %v1912 = vrot.slane %v1820, 2
      %v1913 = vsel %vm1908, %v1910, %v1912
      %v1914 = vrot.slane %v1823, 2
      %v1915 = vsel %vm1908, %v1912, %v1914
      %v1916 = vrot.slane %v1828, 2
      %v1917 = vsel %vm1908, %v1914, %v1916
      %v1918 = vrot.slane %v1831, 2
      %v1919 = vsel %vm1908, %v1916, %v1918
      %v1920 = vrot.slane %v1836, 2
      %v1921 = vsel %vm1908, %v1918, %v1920
      %v1922 = vrot.slane %v1839, 2
      %v1923 = vsel %vm1908, %v1920, %v1922
      %v1924 = vrot.slane %v1844, 2
      %v1925 = vsel %vm1908, %v1922, %v1924
      %v1926 = vrot.slane %v1847, 2
      %v1927 = vsel %vm1908, %v1924, %v1926
      %v1928 = vrot.slane %v1852, 2
      %v1929 = vsel %vm1908, %v1926, %v1928
      %v1930 = vrot.slane %v1855, 2
      %v1931 = vsel %vm1908, %v1928, %v1930
      %v1932 = vrot.slane %v1860, 2
      %v1933 = vsel %vm1908, %v1930, %v1932
      %v1934 = vrot.slane %v1863, 2
      %v1935 = vsel %vm1908, %v1932, %v1934
      %v1936 = vrot.slane %v1868, 2
      %v1937 = vsel %vm1908, %v1934, %v1936
      %v1938 = vrot.slane %v1871, 2
      %v1939 = vsel %vm1908, %v1936, %v1938
      %v1940 = vrot.slane %v1876, 2
      %v1941 = vsel %vm1908, %v1938, %v1940
      %v1942 = vrot.slane %v1879, 2
      %v1943 = vsel %vm1908, %v1940, %v1942
      %v1944 = vrot.slane %v1884, 2
      %v1945 = vsel %vm1908, %v1942, %v1944
      %v1964 = vadd.f32 %v1694, %v1911
      %v1965 = vadd.f32 %v1695, %v1913
      %v1966 = vadd.f32 %v1696, %v1915
      %v1967 = vadd.f32 %v1697, %v1917
      %v1968 = vadd.f32 %v1698, %v1919
      %v1969 = vadd.f32 %v1699, %v1921
      %v1970 = vadd.f32 %v1700, %v1923
      %v1971 = vadd.f32 %v1701, %v1925
      %v1972 = vadd.f32 %v1702, %v1927
      %v1973 = vadd.f32 %v1703, %v1929
      %v1974 = vadd.f32 %v1704, %v1931
      %v1975 = vadd.f32 %v1705, %v1933
      %v1976 = vadd.f32 %v1706, %v1935
      %v1977 = vadd.f32 %v1707, %v1937
      %v1978 = vadd.f32 %v1708, %v1939
      %v1979 = vadd.f32 %v1709, %v1941
      %v1980 = vadd.f32 %v1710, %v1943
      %v1981 = vadd.f32 %v1711, %v1945
      %v1982 = vld [vmem:[#allocation2 + $0x8] sm:$0xe]
      %v1983 = vld [vmem:[#allocation2 + $0xc] sm:$0xf]
      %v1984 = vld [vmem:[#allocation2 + $0x10] sm:$0xf]
      %v1985 = vld [vmem:[#allocation2 + $0x14] sm:$0xf]
      %v1986 = vld [vmem:[#allocation2 + $0x18] sm:$0xf]
      %v1987 = vld [vmem:[#allocation2 + $0x1c] sm:$0xf]
      %v1988 = vld [vmem:[#allocation2 + $0x20] sm:$0xf]
      %v1989 = vld [vmem:[#allocation2 + $0x24] sm:$0xf]
      %v1990 = vld [vmem:[#allocation2 + $0x28] sm:$0xf]
      %v1991 = vld [vmem:[#allocation2 + $0x2c] sm:$0xf]
      %v1992 = vld [vmem:[#allocation2 + $0x30] sm:$0xf]
      %v1993 = vld [vmem:[#allocation2 + $0x34] sm:$0xf]
      %v1994 = vld [vmem:[#allocation2 + $0x38] sm:$0xf]
      %v1995 = vld [vmem:[#allocation2 + $0x3c] sm:$0xf]
      %v1996 = vld [vmem:[#allocation2 + $0x40] sm:$0xf]
      %v1997 = vld [vmem:[#allocation2 + $0x44] sm:$0xf]
      %v1998 = vld [vmem:[#allocation2 + $0x48] sm:$0xf]
      %v1999 = vld [vmem:[#allocation2 + $0x4c] sm:$0xf]
      %v2000 = vld [vmem:[#allocation2 + $0x50] sm:$0x3]
      %s2001 = scalar_lea.vmem %s5, 192
      %v2002 = vld [vmem:[%s2001] sm:$0xf]
      %v2003 = vld [vmem:[%s2001 + $0x4] sm:$0xf]
      %v2004 = vld [vmem:[%s2001 + $0x8] sm:$0xf]
      %v2005 = vld [vmem:[%s2001 + $0xc] sm:$0xf]
      %v2006 = vld [vmem:[%s2001 + $0x10] sm:$0xf]
      %v2007 = vld [vmem:[%s2001 + $0x14] sm:$0xf]
      %v2008 = vld [vmem:[%s2001 + $0x18] sm:$0xf]
      %v2009 = vld [vmem:[%s2001 + $0x1c] sm:$0xf]
      %v2010 = vld [vmem:[%s2001 + $0x20] sm:$0xf]
      %v2011 = vld [vmem:[%s2001 + $0x24] sm:$0xf]
      %v2012 = vld [vmem:[%s2001 + $0x28] sm:$0xf]
      %v2013 = vld [vmem:[%s2001 + $0x2c] sm:$0xf]
      %v2014 = vld [vmem:[%s2001 + $0x30] sm:$0xf]
      %v2015 = vld [vmem:[%s2001 + $0x34] sm:$0xf]
      %v2016 = vld [vmem:[%s2001 + $0x38] sm:$0xf]
      %v2017 = vld [vmem:[%s2001 + $0x3c] sm:$0xf]
      %v2037 = vunpack.c.l.b16 %v1982
      %v2038 = vunpack.c.l.b16 %v1983
      %v2039 = vunpack.c.l.b16 %v1984
      %v2040 = vunpack.c.l.b16 %v1985
      %v2041 = vunpack.c.l.b16 %v1986
      %v2042 = vunpack.c.l.b16 %v1987
      %v2043 = vunpack.c.l.b16 %v1988
      %v2044 = vunpack.c.l.b16 %v1989
      %v2045 = vunpack.c.l.b16 %v1990
      %v2046 = vunpack.c.l.b16 %v1991
      %v2047 = vunpack.c.l.b16 %v1992
      %v2048 = vunpack.c.l.b16 %v1993
      %v2049 = vunpack.c.l.b16 %v1994
      %v2050 = vunpack.c.l.b16 %v1995
      %v2051 = vunpack.c.l.b16 %v1996
      %v2052 = vunpack.c.l.b16 %v1997
      %v2053 = vunpack.c.l.b16 %v1998
      %v2054 = vunpack.c.l.b16 %v1999
      %v2055 = vunpack.c.l.b16 %v2000
      %v2056 = vpack.c.b16 %v2038, %v2037
      %v2057 = vpack.c.b16 %v2040, %v2039
      %v2058 = vpack.c.b16 %v2042, %v2041
      %v2059 = vpack.c.b16 %v2044, %v2043
      %v2060 = vpack.c.b16 %v2046, %v2045
      %v2061 = vpack.c.b16 %v2048, %v2047
      %v2062 = vpack.c.b16 %v2050, %v2049
      %v2063 = vpack.c.b16 %v2052, %v2051
      %v2064 = vpack.c.b16 %v2054, %v2053
      %v2065 = vpack.c.b16 %v2055, %v2055
      %vm2066 = vcmask 1046528
      %v2067 = vrot.slane %v2056, 1
      %v2068 = vrot.slane %v2057, 1
      %v2069 = vsel %vm2066, %v2067, %v2068
      %v2070 = vrot.slane %v2058, 1
      %v2071 = vsel %vm2066, %v2068, %v2070
      %v2072 = vrot.slane %v2059, 1
      %v2073 = vsel %vm2066, %v2070, %v2072
      %v2074 = vrot.slane %v2060, 1
      %v2075 = vsel %vm2066, %v2072, %v2074
      %v2076 = vrot.slane %v2061, 1
      %v2077 = vsel %vm2066, %v2074, %v2076
      %v2078 = vrot.slane %v2062, 1
      %v2079 = vsel %vm2066, %v2076, %v2078
      %v2080 = vrot.slane %v2063, 1
      %v2081 = vsel %vm2066, %v2078, %v2080
      %v2082 = vrot.slane %v2064, 1
      %v2083 = vsel %vm2066, %v2080, %v2082
      %v2084 = vrot.slane %v2065, 1
      %v2085 = vsel %vm2066, %v2082, %v2084
      %v2112 = vunpack.c.l.b16 %v2002
      %v2113 = vunpack.c.l.b16 %v2003
      %v2114 = vunpack.c.l.b16 %v2004
      %v2115 = vunpack.c.l.b16 %v2005
      %v2116 = vunpack.c.l.b16 %v2006
      %v2117 = vunpack.c.l.b16 %v2007
      %v2118 = vunpack.c.l.b16 %v2008
      %v2119 = vunpack.c.l.b16 %v2009
      %v2120 = vunpack.c.l.b16 %v2010
      %v2121 = vunpack.c.l.b16 %v2011
      %v2122 = vunpack.c.l.b16 %v2012
      %v2123 = vunpack.c.l.b16 %v2013
      %v2124 = vunpack.c.l.b16 %v2014
      %v2125 = vunpack.c.l.b16 %v2015
      %v2126 = vunpack.c.l.b16 %v2016
      %v2127 = vunpack.c.l.b16 %v2017
      %v2128 = vpack.c.b16 %v2113, %v2112
      %v2129 = vpack.c.b16 %v2115, %v2114
      %v2130 = vpack.c.b16 %v2117, %v2116
      %v2131 = vpack.c.b16 %v2119, %v2118
      %v2132 = vpack.c.b16 %v2121, %v2120
      %v2133 = vpack.c.b16 %v2123, %v2122
      %v2134 = vpack.c.b16 %v2125, %v2124
      %v2135 = vpack.c.b16 %v2127, %v2126
      %2144 = vmatprep.subr.bf16.mxu0 0
      %2145 = vmatpush1.bf16.msra.mxu0 %v2128
      %2146 = vmatprep.subr.bf16.mxu0 0
      %2147 = vmatpush1.bf16.msra.mxu0 %v2129
      %2148 = vmatprep.subr.bf16.mxu0 0
      %2149 = vmatpush1.bf16.msra.mxu0 %v2130
      %2150 = vmatprep.subr.bf16.mxu0 0
      %2151 = vmatpush1.bf16.msra.mxu0 %v2131
      %2152 = vmatprep.subr.bf16.mxu0 0
      %2153 = vmatpush1.bf16.msra.mxu0 %v2132
      %2154 = vmatprep.subr.bf16.mxu0 0
      %2155 = vmatpush1.bf16.msra.mxu0 %v2133
      %2156 = vmatprep.subr.bf16.mxu0 0
      %2157 = vmatpush1.bf16.msra.mxu0 %v2134
      %2158 = vmatprep.subr.bf16.mxu0 0
      %2159 = vmatpush1.bf16.msra.mxu0 %v2135
      %2160 = vmatprep.subr.bf16.mxu0 0
      %2161 = vmatpush1.bf16.msra.mxu0 0
      %2162 = vmatprep.subr.bf16.mxu0 0
      %2163 = vmatpush1.bf16.msra.mxu0 0
      %2164 = vmatprep.subr.bf16.mxu0 0
      %2165 = vmatpush1.bf16.msra.mxu0 0
      %2166 = vmatprep.subr.bf16.mxu0 0
      %2167 = vmatpush1.bf16.msra.mxu0 0
      %2168 = vmatprep.subr.bf16.mxu0 0
      %2169 = vmatpush1.bf16.msra.mxu0 0
      %2170 = vmatprep.subr.bf16.mxu0 0
      %2171 = vmatpush1.bf16.msra.mxu0 0
      %2172 = vmatprep.subr.bf16.mxu0 0
      %2173 = vmatpush1.bf16.msra.mxu0 0
      %2174 = vmatprep.subr.bf16.mxu0 0
      %2175 = vmatpush1.bf16.msra.mxu0 0
      %2176 = vmatprep.mubr.bf16.mxu0 0
      %2177 = vmatmul.mubr.bf16.gmra.mrb[0].mxu0 %v2069
      %v2178 = vpop.f32.mrb[0].mxu0
      %v2179 = vadd.f32 0.0, %v2178
      %v2180 = vpop.f32.mrb[0].mxu0
      %v2181 = vpop.f32.mrb[0].mxu0
      %v2182 = vadd.f32 0.0, %v2181
      %v2183 = vpop.f32.mrb[0].mxu0
      %2184 = vmatprep.mubr.bf16.mxu0 0
      %2185 = vmatmul.mubr.bf16.gmra.mrb[0].mxu0 %v2071
      %v2186 = vpop.f32.mrb[0].mxu0
      %v2187 = vadd.f32 0.0, %v2186
      %v2188 = vpop.f32.mrb[0].mxu0
      %v2189 = vpop.f32.mrb[0].mxu0
      %v2190 = vadd.f32 0.0, %v2189
      %v2191 = vpop.f32.mrb[0].mxu0
      %2192 = vmatprep.mubr.bf16.mxu0 0
      %2193 = vmatmul.mubr.bf16.gmra.mrb[0].mxu0 %v2073
      %v2194 = vpop.f32.mrb[0].mxu0
      %v2195 = vadd.f32 0.0, %v2194
      %v2196 = vpop.f32.mrb[0].mxu0
      %v2197 = vpop.f32.mrb[0].mxu0
      %v2198 = vadd.f32 0.0, %v2197
      %v2199 = vpop.f32.mrb[0].mxu0
      %2200 = vmatprep.mubr.bf16.mxu0 0
      %2201 = vmatmul.mubr.bf16.gmra.mrb[0].mxu0 %v2075
      %v2202 = vpop.f32.mrb[0].mxu0
      %v2203 = vadd.f32 0.0, %v2202
      %v2204 = vpop.f32.mrb[0].mxu0
      %v2205 = vpop.f32.mrb[0].mxu0
      %v2206 = vadd.f32 0.0, %v2205
      %v2207 = vpop.f32.mrb[0].mxu0
      %2208 = vmatprep.mubr.bf16.mxu0 0
      %2209 = vmatmul.mubr.bf16.gmra.mrb[0].mxu0 %v2077
      %v2210 = vpop.f32.mrb[0].mxu0
      %v2211 = vadd.f32 0.0, %v2210
      %v2212 = vpop.f32.mrb[0].mxu0
      %v2213 = vpop.f32.mrb[0].mxu0
      %v2214 = vadd.f32 0.0, %v2213
      %v2215 = vpop.f32.mrb[0].mxu0
      %2216 = vmatprep.mubr.bf16.mxu0 0
      %2217 = vmatmul.mubr.bf16.gmra.mrb[0].mxu0 %v2079
      %v2218 = vpop.f32.mrb[0].mxu0
      %v2219 = vadd.f32 0.0, %v2218
      %v2220 = vpop.f32.mrb[0].mxu0
      %v2221 = vpop.f32.mrb[0].mxu0
      %v2222 = vadd.f32 0.0, %v2221
      %v2223 = vpop.f32.mrb[0].mxu0
      %2224 = vmatprep.mubr.bf16.mxu0 0
      %2225 = vmatmul.mubr.bf16.gmra.mrb[0].mxu0 %v2081
      %v2226 = vpop.f32.mrb[0].mxu0
      %v2227 = vadd.f32 0.0, %v2226
      %v2228 = vpop.f32.mrb[0].mxu0
      %v2229 = vpop.f32.mrb[0].mxu0
      %v2230 = vadd.f32 0.0, %v2229
      %v2231 = vpop.f32.mrb[0].mxu0
      %2232 = vmatprep.mubr.bf16.mxu0 0
      %2233 = vmatmul.mubr.bf16.gmra.mrb[0].mxu0 %v2083
      %v2234 = vpop.f32.mrb[0].mxu0
      %v2235 = vadd.f32 0.0, %v2234
      %v2236 = vpop.f32.mrb[0].mxu0
      %v2237 = vpop.f32.mrb[0].mxu0
      %v2238 = vadd.f32 0.0, %v2237
      %v2239 = vpop.f32.mrb[0].mxu0
      %2240 = vmatprep.mubr.bf16.mxu0 0
      %2241 = vmatmul.mubr.bf16.gmra.mrb[0].mxu0 %v2085
      %v2242 = vpop.f32.mrb[0].mxu0
      %v2243 = vadd.f32 0.0, %v2242
      %v2244 = vpop.f32.mrb[0].mxu0
      %v2245 = vpop.f32.mrb[0].mxu0
      %v2246 = vadd.f32 0.0, %v2245
      %v2247 = vpop.f32.mrb[0].mxu0
      %2248 = vmatprep.mubr.bf16.mxu0 0
      %2249 = vmatmul.mubr.bf16.gmra.mrb[0].mxu0 %v2084
      %v2250 = vpop.f32.mrb[0].mxu0
      %v2251 = vpop.f32.mrb[0].mxu0
      %v2252 = vpop.f32.mrb[0].mxu0
      %v2253 = vpop.f32.mrb[0].mxu0
      %2254 = vdwg.mxu0
      %v2255 = vadd.f32 %v1964, %v2179
      %v2256 = vadd.f32 %v1965, %v2182
      %v2257 = vadd.f32 %v1966, %v2187
      %v2258 = vadd.f32 %v1967, %v2190
      %v2259 = vadd.f32 %v1968, %v2195
      %v2260 = vadd.f32 %v1969, %v2198
      %v2261 = vadd.f32 %v1970, %v2203
      %v2262 = vadd.f32 %v1971, %v2206
      %v2263 = vadd.f32 %v1972, %v2211
      %v2264 = vadd.f32 %v1973, %v2214
      %v2265 = vadd.f32 %v1974, %v2219
      %v2266 = vadd.f32 %v1975, %v2222
      %v2267 = vadd.f32 %v1976, %v2227
      %v2268 = vadd.f32 %v1977, %v2230
      %v2269 = vadd.f32 %v1978, %v2235
      %v2270 = vadd.f32 %v1979, %v2238
      %v2271 = vadd.f32 %v1980, %v2243
      %v2272 = vadd.f32 %v1981, %v2246
      %s2273 = scalar_lea.vmem %s5, 256
      %v2274 = vld [vmem:[%s2273] sm:$0xf]
      %v2275 = vld [vmem:[%s2273 + $0x4] sm:$0xf]
      %v2276 = vld [vmem:[%s2273 + $0x8] sm:$0xf]
      %v2277 = vld [vmem:[%s2273 + $0xc] sm:$0xf]
      %v2278 = vld [vmem:[%s2273 + $0x10] sm:$0xf]
      %v2279 = vld [vmem:[%s2273 + $0x14] sm:$0xf]
      %v2280 = vld [vmem:[%s2273 + $0x18] sm:$0xf]
      %v2281 = vld [vmem:[%s2273 + $0x1c] sm:$0xf]
      %v2282 = vld [vmem:[%s2273 + $0x20] sm:$0xf]
      %v2283 = vld [vmem:[%s2273 + $0x24] sm:$0xf]
      %v2284 = vld [vmem:[%s2273 + $0x28] sm:$0xf]
      %v2285 = vld [vmem:[%s2273 + $0x2c] sm:$0xf]
      %v2286 = vld [vmem:[%s2273 + $0x30] sm:$0xf]
      %v2287 = vld [vmem:[%s2273 + $0x34] sm:$0xf]
      %v2288 = vld [vmem:[%s2273 + $0x38] sm:$0xf]
      %v2289 = vld [vmem:[%s2273 + $0x3c] sm:$0xf]
      %v2306 = vunpack.c.l.b16 %v2274
      %v2307 = vunpack.c.l.b16 %v2275
      %v2308 = vunpack.c.l.b16 %v2276
      %v2309 = vunpack.c.l.b16 %v2277
      %v2310 = vunpack.c.l.b16 %v2278
      %v2311 = vunpack.c.l.b16 %v2279
      %v2312 = vunpack.c.l.b16 %v2280
      %v2313 = vunpack.c.l.b16 %v2281
      %v2314 = vunpack.c.l.b16 %v2282
      %v2315 = vunpack.c.l.b16 %v2283
      %v2316 = vunpack.c.l.b16 %v2284
      %v2317 = vunpack.c.l.b16 %v2285
      %v2318 = vunpack.c.l.b16 %v2286
      %v2319 = vunpack.c.l.b16 %v2287
      %v2320 = vunpack.c.l.b16 %v2288
      %v2321 = vunpack.c.l.b16 %v2289
      %v2322 = vpack.c.b16 %v2307, %v2306
      %v2323 = vpack.c.b16 %v2309, %v2308
      %v2324 = vpack.c.b16 %v2311, %v2310
      %v2325 = vpack.c.b16 %v2313, %v2312
      %v2326 = vpack.c.b16 %v2315, %v2314
      %v2327 = vpack.c.b16 %v2317, %v2316
      %v2328 = vpack.c.b16 %v2319, %v2318
      %v2329 = vpack.c.b16 %v2321, %v2320
      %2338 = vmatprep.subr.bf16.mxu0 0
      %2339 = vmatpush1.bf16.msra.mxu0 %v2322
      %2340 = vmatprep.subr.bf16.mxu0 0
      %2341 = vmatpush1.bf16.msra.mxu0 %v2323
      %2342 = vmatprep.subr.bf16.mxu0 0
      %2343 = vmatpush1.bf16.msra.mxu0 %v2324
      %2344 = vmatprep.subr.bf16.mxu0 0
      %2345 = vmatpush1.bf16.msra.mxu0 %v2325
      %2346 = vmatprep.subr.bf16.mxu0 0
      %2347 = vmatpush1.bf16.msra.mxu0 %v2326
      %2348 = vmatprep.subr.bf16.mxu0 0
      %2349 = vmatpush1.bf16.msra.mxu0 %v2327
      %2350 = vmatprep.subr.bf16.mxu0 0
      %2351 = vmatpush1.bf16.msra.mxu0 %v2328
      %2352 = vmatprep.subr.bf16.mxu0 0
      %2353 = vmatpush1.bf16.msra.mxu0 %v2329
      %2354 = vmatprep.subr.bf16.mxu0 0
      %2355 = vmatpush1.bf16.msra.mxu0 0
      %2356 = vmatprep.subr.bf16.mxu0 0
      %2357 = vmatpush1.bf16.msra.mxu0 0
      %2358 = vmatprep.subr.bf16.mxu0 0
      %2359 = vmatpush1.bf16.msra.mxu0 0
      %2360 = vmatprep.subr.bf16.mxu0 0
      %2361 = vmatpush1.bf16.msra.mxu0 0
      %2362 = vmatprep.subr.bf16.mxu0 0
      %2363 = vmatpush1.bf16.msra.mxu0 0
      %2364 = vmatprep.subr.bf16.mxu0 0
      %2365 = vmatpush1.bf16.msra.mxu0 0
      %2366 = vmatprep.subr.bf16.mxu0 0
      %2367 = vmatpush1.bf16.msra.mxu0 0
      %2368 = vmatprep.subr.bf16.mxu0 0
      %2369 = vmatpush1.bf16.msra.mxu0 0
      %2370 = vmatprep.mubr.bf16.mxu0 0
      %2371 = vmatmul.mubr.bf16.gmra.mrb[0].mxu0 %v2069
      %v2372 = vpop.f32.mrb[0].mxu0
      %v2373 = vadd.f32 0.0, %v2372
      %v2374 = vpop.f32.mrb[0].mxu0
      %v2375 = vpop.f32.mrb[0].mxu0
      %v2376 = vadd.f32 0.0, %v2375
      %v2377 = vpop.f32.mrb[0].mxu0
      %2378 = vmatprep.mubr.bf16.mxu0 0
      %2379 = vmatmul.mubr.bf16.gmra.mrb[0].mxu0 %v2071
      %v2380 = vpop.f32.mrb[0].mxu0
      %v2381 = vadd.f32 0.0, %v2380
      %v2382 = vpop.f32.mrb[0].mxu0
      %v2383 = vpop.f32.mrb[0].mxu0
      %v2384 = vadd.f32 0.0, %v2383
      %v2385 = vpop.f32.mrb[0].mxu0
      %2386 = vmatprep.mubr.bf16.mxu0 0
      %2387 = vmatmul.mubr.bf16.gmra.mrb[0].mxu0 %v2073
      %v2388 = vpop.f32.mrb[0].mxu0
      %v2389 = vadd.f32 0.0, %v2388
      %v2390 = vpop.f32.mrb[0].mxu0
      %v2391 = vpop.f32.mrb[0].mxu0
      %v2392 = vadd.f32 0.0, %v2391
      %v2393 = vpop.f32.mrb[0].mxu0
      %2394 = vmatprep.mubr.bf16.mxu0 0
      %2395 = vmatmul.mubr.bf16.gmra.mrb[0].mxu0 %v2075
      %v2396 = vpop.f32.mrb[0].mxu0
      %v2397 = vadd.f32 0.0, %v2396
      %v2398 = vpop.f32.mrb[0].mxu0
      %v2399 = vpop.f32.mrb[0].mxu0
      %v2400 = vadd.f32 0.0, %v2399
      %v2401 = vpop.f32.mrb[0].mxu0
      %2402 = vmatprep.mubr.bf16.mxu0 0
      %2403 = vmatmul.mubr.bf16.gmra.mrb[0].mxu0 %v2077
      %v2404 = vpop.f32.mrb[0].mxu0
      %v2405 = vadd.f32 0.0, %v2404
      %v2406 = vpop.f32.mrb[0].mxu0
      %v2407 = vpop.f32.mrb[0].mxu0
      %v2408 = vadd.f32 0.0, %v2407
      %v2409 = vpop.f32.mrb[0].mxu0
      %2410 = vmatprep.mubr.bf16.mxu0 0
      %2411 = vmatmul.mubr.bf16.gmra.mrb[0].mxu0 %v2079
      %v2412 = vpop.f32.mrb[0].mxu0
      %v2413 = vadd.f32 0.0, %v2412
      %v2414 = vpop.f32.mrb[0].mxu0
      %v2415 = vpop.f32.mrb[0].mxu0
      %v2416 = vadd.f32 0.0, %v2415
      %v2417 = vpop.f32.mrb[0].mxu0
      %2418 = vmatprep.mubr.bf16.mxu0 0
      %2419 = vmatmul.mubr.bf16.gmra.mrb[0].mxu0 %v2081
      %v2420 = vpop.f32.mrb[0].mxu0
      %v2421 = vadd.f32 0.0, %v2420
      %v2422 = vpop.f32.mrb[0].mxu0
      %v2423 = vpop.f32.mrb[0].mxu0
      %v2424 = vadd.f32 0.0, %v2423
      %v2425 = vpop.f32.mrb[0].mxu0
      %2426 = vmatprep.mubr.bf16.mxu0 0
      %2427 = vmatmul.mubr.bf16.gmra.mrb[0].mxu0 %v2083
      %v2428 = vpop.f32.mrb[0].mxu0
      %v2429 = vadd.f32 0.0, %v2428
      %v2430 = vpop.f32.mrb[0].mxu0
      %v2431 = vpop.f32.mrb[0].mxu0
      %v2432 = vadd.f32 0.0, %v2431
      %v2433 = vpop.f32.mrb[0].mxu0
      %2434 = vmatprep.mubr.bf16.mxu0 0
      %2435 = vmatmul.mubr.bf16.gmra.mrb[0].mxu0 %v2085
      %v2436 = vpop.f32.mrb[0].mxu0
      %v2437 = vadd.f32 0.0, %v2436
      %v2438 = vpop.f32.mrb[0].mxu0
      %v2439 = vpop.f32.mrb[0].mxu0
      %v2440 = vadd.f32 0.0, %v2439
      %v2441 = vpop.f32.mrb[0].mxu0
      %2442 = vmatprep.mubr.bf16.mxu0 0
      %2443 = vmatmul.mubr.bf16.gmra.mrb[0].mxu0 %v2084
      %v2444 = vpop.f32.mrb[0].mxu0
      %v2445 = vadd.f32 0.0, %v2444
      %v2446 = vpop.f32.mrb[0].mxu0
      %v2447 = vpop.f32.mrb[0].mxu0
      %v2448 = vpop.f32.mrb[0].mxu0
      %2449 = vdwg.mxu0
      %v2469 = vrot.slane %v2373, 1
      %v2470 = vrot.slane %v2376, 1
      %v2471 = vsel %vm1638, %v2469, %v2470
      %v2472 = vrot.slane %v2381, 1
      %v2473 = vsel %vm1638, %v2470, %v2472
      %v2474 = vrot.slane %v2384, 1
      %v2475 = vsel %vm1638, %v2472, %v2474
      %v2476 = vrot.slane %v2389, 1
      %v2477 = vsel %vm1638, %v2474, %v2476
      %v2478 = vrot.slane %v2392, 1
      %v2479 = vsel %vm1638, %v2476, %v2478
      %v2480 = vrot.slane %v2397, 1
      %v2481 = vsel %vm1638, %v2478, %v2480
      %v2482 = vrot.slane %v2400, 1
      %v2483 = vsel %vm1638, %v2480, %v2482
      %v2484 = vrot.slane %v2405, 1
      %v2485 = vsel %vm1638, %v2482, %v2484
      %v2486 = vrot.slane %v2408, 1
      %v2487 = vsel %vm1638, %v2484, %v2486
      %v2488 = vrot.slane %v2413, 1
      %v2489 = vsel %vm1638, %v2486, %v2488
      %v2490 = vrot.slane %v2416, 1
      %v2491 = vsel %vm1638, %v2488, %v2490
      %v2492 = vrot.slane %v2421, 1
      %v2493 = vsel %vm1638, %v2490, %v2492
      %v2494 = vrot.slane %v2424, 1
      %v2495 = vsel %vm1638, %v2492, %v2494
      %v2496 = vrot.slane %v2429, 1
      %v2497 = vsel %vm1638, %v2494, %v2496
      %v2498 = vrot.slane %v2432, 1
      %v2499 = vsel %vm1638, %v2496, %v2498
      %v2500 = vrot.slane %v2437, 1
      %v2501 = vsel %vm1638, %v2498, %v2500
      %v2502 = vrot.slane %v2440, 1
      %v2503 = vsel %vm1638, %v2500, %v2502
      %v2504 = vrot.slane %v2445, 1
      %v2505 = vsel %vm1638, %v2502, %v2504
      %v2524 = vadd.f32 %v2255, %v2471
      %v2525 = vadd.f32 %v2256, %v2473
      %v2526 = vadd.f32 %v2257, %v2475
      %v2527 = vadd.f32 %v2258, %v2477
      %v2528 = vadd.f32 %v2259, %v2479
      %v2529 = vadd.f32 %v2260, %v2481
      %v2530 = vadd.f32 %v2261, %v2483
      %v2531 = vadd.f32 %v2262, %v2485
      %v2532 = vadd.f32 %v2263, %v2487
      %v2533 = vadd.f32 %v2264, %v2489
      %v2534 = vadd.f32 %v2265, %v2491
      %v2535 = vadd.f32 %v2266, %v2493
      %v2536 = vadd.f32 %v2267, %v2495
      %v2537 = vadd.f32 %v2268, %v2497
      %v2538 = vadd.f32 %v2269, %v2499
      %v2539 = vadd.f32 %v2270, %v2501
      %v2540 = vadd.f32 %v2271, %v2503
      %v2541 = vadd.f32 %v2272, %v2505
      %s2542 = scalar_lea.vmem %s5, 320
      %v2543 = vld [vmem:[%s2542] sm:$0xf]
      %v2544 = vld [vmem:[%s2542 + $0x4] sm:$0xf]
      %v2545 = vld [vmem:[%s2542 + $0x8] sm:$0xf]
      %v2546 = vld [vmem:[%s2542 + $0xc] sm:$0xf]
      %v2547 = vld [vmem:[%s2542 + $0x10] sm:$0xf]
      %v2548 = vld [vmem:[%s2542 + $0x14] sm:$0xf]
      %v2549 = vld [vmem:[%s2542 + $0x18] sm:$0xf]
      %v2550 = vld [vmem:[%s2542 + $0x1c] sm:$0xf]
      %v2551 = vld [vmem:[%s2542 + $0x20] sm:$0xf]
      %v2552 = vld [vmem:[%s2542 + $0x24] sm:$0xf]
      %v2553 = vld [vmem:[%s2542 + $0x28] sm:$0xf]
      %v2554 = vld [vmem:[%s2542 + $0x2c] sm:$0xf]
      %v2555 = vld [vmem:[%s2542 + $0x30] sm:$0xf]
      %v2556 = vld [vmem:[%s2542 + $0x34] sm:$0xf]
      %v2557 = vld [vmem:[%s2542 + $0x38] sm:$0xf]
      %v2558 = vld [vmem:[%s2542 + $0x3c] sm:$0xf]
      %v2575 = vunpack.c.l.b16 %v2543
      %v2576 = vunpack.c.l.b16 %v2544
      %v2577 = vunpack.c.l.b16 %v2545
      %v2578 = vunpack.c.l.b16 %v2546
      %v2579 = vunpack.c.l.b16 %v2547
      %v2580 = vunpack.c.l.b16 %v2548
      %v2581 = vunpack.c.l.b16 %v2549
      %v2582 = vunpack.c.l.b16 %v2550
      %v2583 = vunpack.c.l.b16 %v2551
      %v2584 = vunpack.c.l.b16 %v2552
      %v2585 = vunpack.c.l.b16 %v2553
      %v2586 = vunpack.c.l.b16 %v2554
      %v2587 = vunpack.c.l.b16 %v2555
      %v2588 = vunpack.c.l.b16 %v2556
      %v2589 = vunpack.c.l.b16 %v2557
      %v2590 = vunpack.c.l.b16 %v2558
      %v2591 = vpack.c.b16 %v2576, %v2575
      %v2592 = vpack.c.b16 %v2578, %v2577
      %v2593 = vpack.c.b16 %v2580, %v2579
      %v2594 = vpack.c.b16 %v2582, %v2581
      %v2595 = vpack.c.b16 %v2584, %v2583
      %v2596 = vpack.c.b16 %v2586, %v2585
      %v2597 = vpack.c.b16 %v2588, %v2587
      %v2598 = vpack.c.b16 %v2590, %v2589
      %2607 = vmatprep.subr.bf16.mxu0 0
      %2608 = vmatpush1.bf16.msra.mxu0 %v2591
      %2609 = vmatprep.subr.bf16.mxu0 0
      %2610 = vmatpush1.bf16.msra.mxu0 %v2592
      %2611 = vmatprep.subr.bf16.mxu0 0
      %2612 = vmatpush1.bf16.msra.mxu0 %v2593
      %2613 = vmatprep.subr.bf16.mxu0 0
      %2614 = vmatpush1.bf16.msra.mxu0 %v2594
      %2615 = vmatprep.subr.bf16.mxu0 0
      %2616 = vmatpush1.bf16.msra.mxu0 %v2595
      %2617 = vmatprep.subr.bf16.mxu0 0
      %2618 = vmatpush1.bf16.msra.mxu0 %v2596
      %2619 = vmatprep.subr.bf16.mxu0 0
      %2620 = vmatpush1.bf16.msra.mxu0 %v2597
      %2621 = vmatprep.subr.bf16.mxu0 0
      %2622 = vmatpush1.bf16.msra.mxu0 %v2598
      %2623 = vmatprep.subr.bf16.mxu0 0
      %2624 = vmatpush1.bf16.msra.mxu0 0
      %2625 = vmatprep.subr.bf16.mxu0 0
      %2626 = vmatpush1.bf16.msra.mxu0 0
      %2627 = vmatprep.subr.bf16.mxu0 0
      %2628 = vmatpush1.bf16.msra.mxu0 0
      %2629 = vmatprep.subr.bf16.mxu0 0
      %2630 = vmatpush1.bf16.msra.mxu0 0
      %2631 = vmatprep.subr.bf16.mxu0 0
      %2632 = vmatpush1.bf16.msra.mxu0 0
      %2633 = vmatprep.subr.bf16.mxu0 0
      %2634 = vmatpush1.bf16.msra.mxu0 0
      %2635 = vmatprep.subr.bf16.mxu0 0
      %2636 = vmatpush1.bf16.msra.mxu0 0
      %2637 = vmatprep.subr.bf16.mxu0 0
      %2638 = vmatpush1.bf16.msra.mxu0 0
      %2639 = vmatprep.mubr.bf16.mxu0 0
      %2640 = vmatmul.mubr.bf16.gmra.mrb[0].mxu0 %v2069
      %v2641 = vpop.f32.mrb[0].mxu0
      %v2642 = vadd.f32 0.0, %v2641
      %v2643 = vpop.f32.mrb[0].mxu0
      %v2644 = vpop.f32.mrb[0].mxu0
      %v2645 = vadd.f32 0.0, %v2644
      %v2646 = vpop.f32.mrb[0].mxu0
      %2647 = vmatprep.mubr.bf16.mxu0 0
      %2648 = vmatmul.mubr.bf16.gmra.mrb[0].mxu0 %v2071
      %v2649 = vpop.f32.mrb[0].mxu0
      %v2650 = vadd.f32 0.0, %v2649
      %v2651 = vpop.f32.mrb[0].mxu0
      %v2652 = vpop.f32.mrb[0].mxu0
      %v2653 = vadd.f32 0.0, %v2652
      %v2654 = vpop.f32.mrb[0].mxu0
      %2655 = vmatprep.mubr.bf16.mxu0 0
      %2656 = vmatmul.mubr.bf16.gmra.mrb[0].mxu0 %v2073
      %v2657 = vpop.f32.mrb[0].mxu0
      %v2658 = vadd.f32 0.0, %v2657
      %v2659 = vpop.f32.mrb[0].mxu0
      %v2660 = vpop.f32.mrb[0].mxu0
      %v2661 = vadd.f32 0.0, %v2660
      %v2662 = vpop.f32.mrb[0].mxu0
      %2663 = vmatprep.mubr.bf16.mxu0 0
      %2664 = vmatmul.mubr.bf16.gmra.mrb[0].mxu0 %v2075
      %v2665 = vpop.f32.mrb[0].mxu0
      %v2666 = vadd.f32 0.0, %v2665
      %v2667 = vpop.f32.mrb[0].mxu0
      %v2668 = vpop.f32.mrb[0].mxu0
      %v2669 = vadd.f32 0.0, %v2668
      %v2670 = vpop.f32.mrb[0].mxu0
      %2671 = vmatprep.mubr.bf16.mxu0 0
      %2672 = vmatmul.mubr.bf16.gmra.mrb[0].mxu0 %v2077
      %v2673 = vpop.f32.mrb[0].mxu0
      %v2674 = vadd.f32 0.0, %v2673
      %v2675 = vpop.f32.mrb[0].mxu0
      %v2676 = vpop.f32.mrb[0].mxu0
      %v2677 = vadd.f32 0.0, %v2676
      %v2678 = vpop.f32.mrb[0].mxu0
      %2679 = vmatprep.mubr.bf16.mxu0 0
      %2680 = vmatmul.mubr.bf16.gmra.mrb[0].mxu0 %v2079
      %v2681 = vpop.f32.mrb[0].mxu0
      %v2682 = vadd.f32 0.0, %v2681
      %v2683 = vpop.f32.mrb[0].mxu0
      %v2684 = vpop.f32.mrb[0].mxu0
      %v2685 = vadd.f32 0.0, %v2684
      %v2686 = vpop.f32.mrb[0].mxu0
      %2687 = vmatprep.mubr.bf16.mxu0 0
      %2688 = vmatmul.mubr.bf16.gmra.mrb[0].mxu0 %v2081
      %v2689 = vpop.f32.mrb[0].mxu0
      %v2690 = vadd.f32 0.0, %v2689
      %v2691 = vpop.f32.mrb[0].mxu0
      %v2692 = vpop.f32.mrb[0].mxu0
      %v2693 = vadd.f32 0.0, %v2692
      %v2694 = vpop.f32.mrb[0].mxu0
      %2695 = vmatprep.mubr.bf16.mxu0 0
      %2696 = vmatmul.mubr.bf16.gmra.mrb[0].mxu0 %v2083
      %v2697 = vpop.f32.mrb[0].mxu0
      %v2698 = vadd.f32 0.0, %v2697
      %v2699 = vpop.f32.mrb[0].mxu0
      %v2700 = vpop.f32.mrb[0].mxu0
      %v2701 = vadd.f32 0.0, %v2700
      %v2702 = vpop.f32.mrb[0].mxu0
      %2703 = vmatprep.mubr.bf16.mxu0 0
      %2704 = vmatmul.mubr.bf16.gmra.mrb[0].mxu0 %v2085
      %v2705 = vpop.f32.mrb[0].mxu0
      %v2706 = vadd.f32 0.0, %v2705
      %v2707 = vpop.f32.mrb[0].mxu0
      %v2708 = vpop.f32.mrb[0].mxu0
      %v2709 = vadd.f32 0.0, %v2708
      %v2710 = vpop.f32.mrb[0].mxu0
      %2711 = vmatprep.mubr.bf16.mxu0 0
      %2712 = vmatmul.mubr.bf16.gmra.mrb[0].mxu0 %v2084
      %v2713 = vpop.f32.mrb[0].mxu0
      %v2714 = vadd.f32 0.0, %v2713
      %v2715 = vpop.f32.mrb[0].mxu0
      %v2716 = vpop.f32.mrb[0].mxu0
      %v2717 = vpop.f32.mrb[0].mxu0
      %2718 = vdwg.mxu0
      %v2738 = vrot.slane %v2642, 2
      %v2739 = vrot.slane %v2645, 2
      %v2740 = vsel %vm1908, %v2738, %v2739
      %v2741 = vrot.slane %v2650, 2
      %v2742 = vsel %vm1908, %v2739, %v2741
      %v2743 = vrot.slane %v2653, 2
      %v2744 = vsel %vm1908, %v2741, %v2743
      %v2745 = vrot.slane %v2658, 2
      %v2746 = vsel %vm1908, %v2743, %v2745
      %v2747 = vrot.slane %v2661, 2
      %v2748 = vsel %vm1908, %v2745, %v2747
      %v2749 = vrot.slane %v2666, 2
      %v2750 = vsel %vm1908, %v2747, %v2749
      %v2751 = vrot.slane %v2669, 2
      %v2752 = vsel %vm1908, %v2749, %v2751
      %v2753 = vrot.slane %v2674, 2
      %v2754 = vsel %vm1908, %v2751, %v2753
      %v2755 = vrot.slane %v2677, 2
      %v2756 = vsel %vm1908, %v2753, %v2755
      %v2757 = vrot.slane %v2682, 2
      %v2758 = vsel %vm1908, %v2755, %v2757
      %v2759 = vrot.slane %v2685, 2
      %v2760 = vsel %vm1908, %v2757, %v2759
      %v2761 = vrot.slane %v2690, 2
      %v2762 = vsel %vm1908, %v2759, %v2761
      %v2763 = vrot.slane %v2693, 2
      %v2764 = vsel %vm1908, %v2761, %v2763
      %v2765 = vrot.slane %v2698, 2
      %v2766 = vsel %vm1908, %v2763, %v2765
      %v2767 = vrot.slane %v2701, 2
      %v2768 = vsel %vm1908, %v2765, %v2767
      %v2769 = vrot.slane %v2706, 2
      %v2770 = vsel %vm1908, %v2767, %v2769
      %v2771 = vrot.slane %v2709, 2
      %v2772 = vsel %vm1908, %v2769, %v2771
      %v2773 = vrot.slane %v2714, 2
      %v2774 = vsel %vm1908, %v2771, %v2773
      %v2793 = vadd.f32 %v2524, %v2740
      %v2794 = vadd.f32 %v2525, %v2742
      %v2795 = vadd.f32 %v2526, %v2744
      %v2796 = vadd.f32 %v2527, %v2746
      %v2797 = vadd.f32 %v2528, %v2748
      %v2798 = vadd.f32 %v2529, %v2750
      %v2799 = vadd.f32 %v2530, %v2752
      %v2800 = vadd.f32 %v2531, %v2754
      %v2801 = vadd.f32 %v2532, %v2756
      %v2802 = vadd.f32 %v2533, %v2758
      %v2803 = vadd.f32 %v2534, %v2760
      %v2804 = vadd.f32 %v2535, %v2762
      %v2805 = vadd.f32 %v2536, %v2764
      %v2806 = vadd.f32 %v2537, %v2766
      %v2807 = vadd.f32 %v2538, %v2768
      %v2808 = vadd.f32 %v2539, %v2770
      %v2809 = vadd.f32 %v2540, %v2772
      %v2810 = vadd.f32 %v2541, %v2774
      %v2811 = vld [vmem:[#allocation2 + $0x10] sm:$0xc]
      %v2812 = vld [vmem:[#allocation2 + $0x14] sm:$0xf]
      %v2813 = vld [vmem:[#allocation2 + $0x18] sm:$0xf]
      %v2814 = vld [vmem:[#allocation2 + $0x1c] sm:$0xf]
      %v2815 = vld [vmem:[#allocation2 + $0x20] sm:$0xf]
      %v2816 = vld [vmem:[#allocation2 + $0x24] sm:$0xf]
      %v2817 = vld [vmem:[#allocation2 + $0x28] sm:$0xf]
      %v2818 = vld [vmem:[#allocation2 + $0x2c] sm:$0xf]
      %v2819 = vld [vmem:[#allocation2 + $0x30] sm:$0xf]
      %v2820 = vld [vmem:[#allocation2 + $0x34] sm:$0xf]
      %v2821 = vld [vmem:[#allocation2 + $0x38] sm:$0xf]
      %v2822 = vld [vmem:[#allocation2 + $0x3c] sm:$0xf]
      %v2823 = vld [vmem:[#allocation2 + $0x40] sm:$0xf]
      %v2824 = vld [vmem:[#allocation2 + $0x44] sm:$0xf]
      %v2825 = vld [vmem:[#allocation2 + $0x48] sm:$0xf]
      %v2826 = vld [vmem:[#allocation2 + $0x4c] sm:$0xf]
      %v2827 = vld [vmem:[#allocation2 + $0x50] sm:$0xf]
      %v2828 = vld [vmem:[#allocation2 + $0x54] sm:$0xf]
      %v2829 = vld [vmem:[#allocation2 + $0x58] sm:$0x7]
      %s2830 = scalar_lea.vmem %s5, 384
      %v2831 = vld [vmem:[%s2830] sm:$0xf]
      %v2832 = vld [vmem:[%s2830 + $0x4] sm:$0xf]
      %v2833 = vld [vmem:[%s2830 + $0x8] sm:$0xf]
      %v2834 = vld [vmem:[%s2830 + $0xc] sm:$0xf]
      %v2835 = vld [vmem:[%s2830 + $0x10] sm:$0xf]
      %v2836 = vld [vmem:[%s2830 + $0x14] sm:$0xf]
      %v2837 = vld [vmem:[%s2830 + $0x18] sm:$0xf]
      %v2838 = vld [vmem:[%s2830 + $0x1c] sm:$0xf]
      %v2839 = vld [vmem:[%s2830 + $0x20] sm:$0xf]
      %v2840 = vld [vmem:[%s2830 + $0x24] sm:$0xf]
      %v2841 = vld [vmem:[%s2830 + $0x28] sm:$0xf]
      %v2842 = vld [vmem:[%s2830 + $0x2c] sm:$0xf]
      %v2843 = vld [vmem:[%s2830 + $0x30] sm:$0xf]
      %v2844 = vld [vmem:[%s2830 + $0x34] sm:$0xf]
      %v2845 = vld [vmem:[%s2830 + $0x38] sm:$0xf]
      %v2846 = vld [vmem:[%s2830 + $0x3c] sm:$0xf]
      %v2866 = vunpack.c.l.b16 %v2811
      %v2867 = vunpack.c.l.b16 %v2812
      %v2868 = vunpack.c.l.b16 %v2813
      %v2869 = vunpack.c.l.b16 %v2814
      %v2870 = vunpack.c.l.b16 %v2815
      %v2871 = vunpack.c.l.b16 %v2816
      %v2872 = vunpack.c.l.b16 %v2817
      %v2873 = vunpack.c.l.b16 %v2818
      %v2874 = vunpack.c.l.b16 %v2819
      %v2875 = vunpack.c.l.b16 %v2820
      %v2876 = vunpack.c.l.b16 %v2821
      %v2877 = vunpack.c.l.b16 %v2822
      %v2878 = vunpack.c.l.b16 %v2823
      %v2879 = vunpack.c.l.b16 %v2824
      %v2880 = vunpack.c.l.b16 %v2825
      %v2881 = vunpack.c.l.b16 %v2826
      %v2882 = vunpack.c.l.b16 %v2827
      %v2883 = vunpack.c.l.b16 %v2828
      %v2884 = vunpack.c.l.b16 %v2829
      %v2885 = vpack.c.b16 %v2867, %v2866
      %v2886 = vpack.c.b16 %v2869, %v2868
      %v2887 = vpack.c.b16 %v2871, %v2870
      %v2888 = vpack.c.b16 %v2873, %v2872
      %v2889 = vpack.c.b16 %v2875, %v2874
      %v2890 = vpack.c.b16 %v2877, %v2876
      %v2891 = vpack.c.b16 %v2879, %v2878
      %v2892 = vpack.c.b16 %v2881, %v2880
      %v2893 = vpack.c.b16 %v2883, %v2882
      %v2894 = vpack.c.b16 %v2884, %v2884
      %vm2895 = vcmask 1045504
      %v2896 = vrot.slane %v2885, 2
      %v2897 = vrot.slane %v2886, 2
      %v2898 = vsel %vm2895, %v2896, %v2897
      %v2899 = vrot.slane %v2887, 2
      %v2900 = vsel %vm2895, %v2897, %v2899
      %v2901 = vrot.slane %v2888, 2
      %v2902 = vsel %vm2895, %v2899, %v2901
      %v2903 = vrot.slane %v2889, 2
      %v2904 = vsel %vm2895, %v2901, %v2903
      %v2905 = vrot.slane %v2890, 2
      %v2906 = vsel %vm2895, %v2903, %v2905
      %v2907 = vrot.slane %v2891, 2
      %v2908 = vsel %vm2895, %v2905, %v2907
      %v2909 = vrot.slane %v2892, 2
      %v2910 = vsel %vm2895, %v2907, %v2909
      %v2911 = vrot.slane %v2893, 2
      %v2912 = vsel %vm2895, %v2909, %v2911
      %v2913 = vrot.slane %v2894, 2
      %v2914 = vsel %vm2895, %v2911, %v2913
      %v2941 = vunpack.c.l.b16 %v2831
      %v2942 = vunpack.c.l.b16 %v2832
      %v2943 = vunpack.c.l.b16 %v2833
      %v2944 = vunpack.c.l.b16 %v2834
      %v2945 = vunpack.c.l.b16 %v2835
      %v2946 = vunpack.c.l.b16 %v2836
      %v2947 = vunpack.c.l.b16 %v2837
      %v2948 = vunpack.c.l.b16 %v2838
      %v2949 = vunpack.c.l.b16 %v2839
      %v2950 = vunpack.c.l.b16 %v2840
      %v2951 = vunpack.c.l.b16 %v2841
      %v2952 = vunpack.c.l.b16 %v2842
      %v2953 = vunpack.c.l.b16 %v2843
      %v2954 = vunpack.c.l.b16 %v2844
      %v2955 = vunpack.c.l.b16 %v2845
      %v2956 = vunpack.c.l.b16 %v2846
      %v2957 = vpack.c.b16 %v2942, %v2941
      %v2958 = vpack.c.b16 %v2944, %v2943
      %v2959 = vpack.c.b16 %v2946, %v2945
      %v2960 = vpack.c.b16 %v2948, %v2947
      %v2961 = vpack.c.b16 %v2950, %v2949
      %v2962 = vpack.c.b16 %v2952, %v2951
      %v2963 = vpack.c.b16 %v2954, %v2953
      %v2964 = vpack.c.b16 %v2956, %v2955
      %2973 = vmatprep.subr.bf16.mxu0 0
      %2974 = vmatpush1.bf16.msra.mxu0 %v2957
      %2975 = vmatprep.subr.bf16.mxu0 0
      %2976 = vmatpush1.bf16.msra.mxu0 %v2958
      %2977 = vmatprep.subr.bf16.mxu0 0
      %2978 = vmatpush1.bf16.msra.mxu0 %v2959
      %2979 = vmatprep.subr.bf16.mxu0 0
      %2980 = vmatpush1.bf16.msra.mxu0 %v2960
      %2981 = vmatprep.subr.bf16.mxu0 0
      %2982 = vmatpush1.bf16.msra.mxu0 %v2961
      %2983 = vmatprep.subr.bf16.mxu0 0
      %2984 = vmatpush1.bf16.msra.mxu0 %v2962
      %2985 = vmatprep.subr.bf16.mxu0 0
      %2986 = vmatpush1.bf16.msra.mxu0 %v2963
      %2987 = vmatprep.subr.bf16.mxu0 0
      %2988 = vmatpush1.bf16.msra.mxu0 %v2964
      %2989 = vmatprep.subr.bf16.mxu0 0
      %2990 = vmatpush1.bf16.msra.mxu0 0
      %2991 = vmatprep.subr.bf16.mxu0 0
      %2992 = vmatpush1.bf16.msra.mxu0 0
      %2993 = vmatprep.subr.bf16.mxu0 0
      %2994 = vmatpush1.bf16.msra.mxu0 0
      %2995 = vmatprep.subr.bf16.mxu0 0
      %2996 = vmatpush1.bf16.msra.mxu0 0
      %2997 = vmatprep.subr.bf16.mxu0 0
      %2998 = vmatpush1.bf16.msra.mxu0 0
      %2999 = vmatprep.subr.bf16.mxu0 0
      %3000 = vmatpush1.bf16.msra.mxu0 0
      %3001 = vmatprep.subr.bf16.mxu0 0
      %3002 = vmatpush1.bf16.msra.mxu0 0
      %3003 = vmatprep.subr.bf16.mxu0 0
      %3004 = vmatpush1.bf16.msra.mxu0 0
      %3005 = vmatprep.mubr.bf16.mxu0 0
      %3006 = vmatmul.mubr.bf16.gmra.mrb[0].mxu0 %v2898
      %v3007 = vpop.f32.mrb[0].mxu0
      %v3008 = vadd.f32 0.0, %v3007
      %v3009 = vpop.f32.mrb[0].mxu0
      %v3010 = vpop.f32.mrb[0].mxu0
      %v3011 = vadd.f32 0.0, %v3010
      %v3012 = vpop.f32.mrb[0].mxu0
      %3013 = vmatprep.mubr.bf16.mxu0 0
      %3014 = vmatmul.mubr.bf16.gmra.mrb[0].mxu0 %v2900
      %v3015 = vpop.f32.mrb[0].mxu0
      %v3016 = vadd.f32 0.0, %v3015
      %v3017 = vpop.f32.mrb[0].mxu0
      %v3018 = vpop.f32.mrb[0].mxu0
      %v3019 = vadd.f32 0.0, %v3018
      %v3020 = vpop.f32.mrb[0].mxu0
      %3021 = vmatprep.mubr.bf16.mxu0 0
      %3022 = vmatmul.mubr.bf16.gmra.mrb[0].mxu0 %v2902
      %v3023 = vpop.f32.mrb[0].mxu0
      %v3024 = vadd.f32 0.0, %v3023
      %v3025 = vpop.f32.mrb[0].mxu0
      %v3026 = vpop.f32.mrb[0].mxu0
      %v3027 = vadd.f32 0.0, %v3026
      %v3028 = vpop.f32.mrb[0].mxu0
      %3029 = vmatprep.mubr.bf16.mxu0 0
      %3030 = vmatmul.mubr.bf16.gmra.mrb[0].mxu0 %v2904
      %v3031 = vpop.f32.mrb[0].mxu0
      %v3032 = vadd.f32 0.0, %v3031
      %v3033 = vpop.f32.mrb[0].mxu0
      %v3034 = vpop.f32.mrb[0].mxu0
      %v3035 = vadd.f32 0.0, %v3034
      %v3036 = vpop.f32.mrb[0].mxu0
      %3037 = vmatprep.mubr.bf16.mxu0 0
      %3038 = vmatmul.mubr.bf16.gmra.mrb[0].mxu0 %v2906
      %v3039 = vpop.f32.mrb[0].mxu0
      %v3040 = vadd.f32 0.0, %v3039
      %v3041 = vpop.f32.mrb[0].mxu0
      %v3042 = vpop.f32.mrb[0].mxu0
      %v3043 = vadd.f32 0.0, %v3042
      %v3044 = vpop.f32.mrb[0].mxu0
      %3045 = vmatprep.mubr.bf16.mxu0 0
      %3046 = vmatmul.mubr.bf16.gmra.mrb[0].mxu0 %v2908
      %v3047 = vpop.f32.mrb[0].mxu0
      %v3048 = vadd.f32 0.0, %v3047
      %v3049 = vpop.f32.mrb[0].mxu0
      %v3050 = vpop.f32.mrb[0].mxu0
      %v3051 = vadd.f32 0.0, %v3050
      %v3052 = vpop.f32.mrb[0].mxu0
      %3053 = vmatprep.mubr.bf16.mxu0 0
      %3054 = vmatmul.mubr.bf16.gmra.mrb[0].mxu0 %v2910
      %v3055 = vpop.f32.mrb[0].mxu0
      %v3056 = vadd.f32 0.0, %v3055
      %v3057 = vpop.f32.mrb[0].mxu0
      %v3058 = vpop.f32.mrb[0].mxu0
      %v3059 = vadd.f32 0.0, %v3058
      %v3060 = vpop.f32.mrb[0].mxu0
      %3061 = vmatprep.mubr.bf16.mxu0 0
      %3062 = vmatmul.mubr.bf16.gmra.mrb[0].mxu0 %v2912
      %v3063 = vpop.f32.mrb[0].mxu0
      %v3064 = vadd.f32 0.0, %v3063
      %v3065 = vpop.f32.mrb[0].mxu0
      %v3066 = vpop.f32.mrb[0].mxu0
      %v3067 = vadd.f32 0.0, %v3066
      %v3068 = vpop.f32.mrb[0].mxu0
      %3069 = vmatprep.mubr.bf16.mxu0 0
      %3070 = vmatmul.mubr.bf16.gmra.mrb[0].mxu0 %v2914
      %v3071 = vpop.f32.mrb[0].mxu0
      %v3072 = vadd.f32 0.0, %v3071
      %v3073 = vpop.f32.mrb[0].mxu0
      %v3074 = vpop.f32.mrb[0].mxu0
      %v3075 = vadd.f32 0.0, %v3074
      %v3076 = vpop.f32.mrb[0].mxu0
      %3077 = vmatprep.mubr.bf16.mxu0 0
      %3078 = vmatmul.mubr.bf16.gmra.mrb[0].mxu0 %v2913
      %v3079 = vpop.f32.mrb[0].mxu0
      %v3080 = vpop.f32.mrb[0].mxu0
      %v3081 = vpop.f32.mrb[0].mxu0
      %v3082 = vpop.f32.mrb[0].mxu0
      %3083 = vdwg.mxu0
      %v3084 = vadd.f32 %v2793, %v3008
      %v3085 = vadd.f32 %v2794, %v3011
      %v3086 = vadd.f32 %v2795, %v3016
      %v3087 = vadd.f32 %v2796, %v3019
      %v3088 = vadd.f32 %v2797, %v3024
      %v3089 = vadd.f32 %v2798, %v3027
      %v3090 = vadd.f32 %v2799, %v3032
      %v3091 = vadd.f32 %v2800, %v3035
      %v3092 = vadd.f32 %v2801, %v3040
      %v3093 = vadd.f32 %v2802, %v3043
      %v3094 = vadd.f32 %v2803, %v3048
      %v3095 = vadd.f32 %v2804, %v3051
      %v3096 = vadd.f32 %v2805, %v3056
      %v3097 = vadd.f32 %v2806, %v3059
      %v3098 = vadd.f32 %v2807, %v3064
      %v3099 = vadd.f32 %v2808, %v3067
      %v3100 = vadd.f32 %v2809, %v3072
      %v3101 = vadd.f32 %v2810, %v3075
      %s3102 = scalar_lea.vmem %s5, 448
      %v3103 = vld [vmem:[%s3102] sm:$0xf]
      %v3104 = vld [vmem:[%s3102 + $0x4] sm:$0xf]
      %v3105 = vld [vmem:[%s3102 + $0x8] sm:$0xf]
      %v3106 = vld [vmem:[%s3102 + $0xc] sm:$0xf]
      %v3107 = vld [vmem:[%s3102 + $0x10] sm:$0xf]
      %v3108 = vld [vmem:[%s3102 + $0x14] sm:$0xf]
      %v3109 = vld [vmem:[%s3102 + $0x18] sm:$0xf]
      %v3110 = vld [vmem:[%s3102 + $0x1c] sm:$0xf]
      %v3111 = vld [vmem:[%s3102 + $0x20] sm:$0xf]
      %v3112 = vld [vmem:[%s3102 + $0x24] sm:$0xf]
      %v3113 = vld [vmem:[%s3102 + $0x28] sm:$0xf]
      %v3114 = vld [vmem:[%s3102 + $0x2c] sm:$0xf]
      %v3115 = vld [vmem:[%s3102 + $0x30] sm:$0xf]
      %v3116 = vld [vmem:[%s3102 + $0x34] sm:$0xf]
      %v3117 = vld [vmem:[%s3102 + $0x38] sm:$0xf]
      %v3118 = vld [vmem:[%s3102 + $0x3c] sm:$0xf]
      %v3135 = vunpack.c.l.b16 %v3103
      %v3136 = vunpack.c.l.b16 %v3104
      %v3137 = vunpack.c.l.b16 %v3105
      %v3138 = vunpack.c.l.b16 %v3106
      %v3139 = vunpack.c.l.b16 %v3107
      %v3140 = vunpack.c.l.b16 %v3108
      %v3141 = vunpack.c.l.b16 %v3109
      %v3142 = vunpack.c.l.b16 %v3110
      %v3143 = vunpack.c.l.b16 %v3111
      %v3144 = vunpack.c.l.b16 %v3112
      %v3145 = vunpack.c.l.b16 %v3113
      %v3146 = vunpack.c.l.b16 %v3114
      %v3147 = vunpack.c.l.b16 %v3115
      %v3148 = vunpack.c.l.b16 %v3116
      %v3149 = vunpack.c.l.b16 %v3117
      %v3150 = vunpack.c.l.b16 %v3118
      %v3151 = vpack.c.b16 %v3136, %v3135
      %v3152 = vpack.c.b16 %v3138, %v3137
      %v3153 = vpack.c.b16 %v3140, %v3139
      %v3154 = vpack.c.b16 %v3142, %v3141
      %v3155 = vpack.c.b16 %v3144, %v3143
      %v3156 = vpack.c.b16 %v3146, %v3145
      %v3157 = vpack.c.b16 %v3148, %v3147
      %v3158 = vpack.c.b16 %v3150, %v3149
      %3167 = vmatprep.subr.bf16.mxu0 0
      %3168 = vmatpush1.bf16.msra.mxu0 %v3151
      %3169 = vmatprep.subr.bf16.mxu0 0
      %3170 = vmatpush1.bf16.msra.mxu0 %v3152
      %3171 = vmatprep.subr.bf16.mxu0 0
      %3172 = vmatpush1.bf16.msra.mxu0 %v3153
      %3173 = vmatprep.subr.bf16.mxu0 0
      %3174 = vmatpush1.bf16.msra.mxu0 %v3154
      %3175 = vmatprep.subr.bf16.mxu0 0
      %3176 = vmatpush1.bf16.msra.mxu0 %v3155
      %3177 = vmatprep.subr.bf16.mxu0 0
      %3178 = vmatpush1.bf16.msra.mxu0 %v3156
      %3179 = vmatprep.subr.bf16.mxu0 0
      %3180 = vmatpush1.bf16.msra.mxu0 %v3157
      %3181 = vmatprep.subr.bf16.mxu0 0
      %3182 = vmatpush1.bf16.msra.mxu0 %v3158
      %3183 = vmatprep.subr.bf16.mxu0 0
      %3184 = vmatpush1.bf16.msra.mxu0 0
      %3185 = vmatprep.subr.bf16.mxu0 0
      %3186 = vmatpush1.bf16.msra.mxu0 0
      %3187 = vmatprep.subr.bf16.mxu0 0
      %3188 = vmatpush1.bf16.msra.mxu0 0
      %3189 = vmatprep.subr.bf16.mxu0 0
      %3190 = vmatpush1.bf16.msra.mxu0 0
      %3191 = vmatprep.subr.bf16.mxu0 0
      %3192 = vmatpush1.bf16.msra.mxu0 0
      %3193 = vmatprep.subr.bf16.mxu0 0
      %3194 = vmatpush1.bf16.msra.mxu0 0
      %3195 = vmatprep.subr.bf16.mxu0 0
      %3196 = vmatpush1.bf16.msra.mxu0 0
      %3197 = vmatprep.subr.bf16.mxu0 0
      %3198 = vmatpush1.bf16.msra.mxu0 0
      %3199 = vmatprep.mubr.bf16.mxu0 0
      %3200 = vmatmul.mubr.bf16.gmra.mrb[0].mxu0 %v2898
      %v3201 = vpop.f32.mrb[0].mxu0
      %v3202 = vadd.f32 0.0, %v3201
      %v3203 = vpop.f32.mrb[0].mxu0
      %v3204 = vpop.f32.mrb[0].mxu0
      %v3205 = vadd.f32 0.0, %v3204
      %v3206 = vpop.f32.mrb[0].mxu0
      %3207 = vmatprep.mubr.bf16.mxu0 0
      %3208 = vmatmul.mubr.bf16.gmra.mrb[0].mxu0 %v2900
      %v3209 = vpop.f32.mrb[0].mxu0
      %v3210 = vadd.f32 0.0, %v3209
      %v3211 = vpop.f32.mrb[0].mxu0
      %v3212 = vpop.f32.mrb[0].mxu0
      %v3213 = vadd.f32 0.0, %v3212
      %v3214 = vpop.f32.mrb[0].mxu0
      %3215 = vmatprep.mubr.bf16.mxu0 0
      %3216 = vmatmul.mubr.bf16.gmra.mrb[0].mxu0 %v2902
      %v3217 = vpop.f32.mrb[0].mxu0
      %v3218 = vadd.f32 0.0, %v3217
      %v3219 = vpop.f32.mrb[0].mxu0
      %v3220 = vpop.f32.mrb[0].mxu0
      %v3221 = vadd.f32 0.0, %v3220
      %v3222 = vpop.f32.mrb[0].mxu0
      %3223 = vmatprep.mubr.bf16.mxu0 0
      %3224 = vmatmul.mubr.bf16.gmra.mrb[0].mxu0 %v2904
      %v3225 = vpop.f32.mrb[0].mxu0
      %v3226 = vadd.f32 0.0, %v3225
      %v3227 = vpop.f32.mrb[0].mxu0
      %v3228 = vpop.f32.mrb[0].mxu0
      %v3229 = vadd.f32 0.0, %v3228
      %v3230 = vpop.f32.mrb[0].mxu0
      %3231 = vmatprep.mubr.bf16.mxu0 0
      %3232 = vmatmul.mubr.bf16.gmra.mrb[0].mxu0 %v2906
      %v3233 = vpop.f32.mrb[0].mxu0
      %v3234 = vadd.f32 0.0, %v3233
      %v3235 = vpop.f32.mrb[0].mxu0
      %v3236 = vpop.f32.mrb[0].mxu0
      %v3237 = vadd.f32 0.0, %v3236
      %v3238 = vpop.f32.mrb[0].mxu0
      %3239 = vmatprep.mubr.bf16.mxu0 0
      %3240 = vmatmul.mubr.bf16.gmra.mrb[0].mxu0 %v2908
      %v3241 = vpop.f32.mrb[0].mxu0
      %v3242 = vadd.f32 0.0, %v3241
      %v3243 = vpop.f32.mrb[0].mxu0
      %v3244 = vpop.f32.mrb[0].mxu0
      %v3245 = vadd.f32 0.0, %v3244
      %v3246 = vpop.f32.mrb[0].mxu0
      %3247 = vmatprep.mubr.bf16.mxu0 0
      %3248 = vmatmul.mubr.bf16.gmra.mrb[0].mxu0 %v2910
      %v3249 = vpop.f32.mrb[0].mxu0
      %v3250 = vadd.f32 0.0, %v3249
      %v3251 = vpop.f32.mrb[0].mxu0
      %v3252 = vpop.f32.mrb[0].mxu0
      %v3253 = vadd.f32 0.0, %v3252
      %v3254 = vpop.f32.mrb[0].mxu0
      %3255 = vmatprep.mubr.bf16.mxu0 0
      %3256 = vmatmul.mubr.bf16.gmra.mrb[0].mxu0 %v2912
      %v3257 = vpop.f32.mrb[0].mxu0
      %v3258 = vadd.f32 0.0, %v3257
      %v3259 = vpop.f32.mrb[0].mxu0
      %v3260 = vpop.f32.mrb[0].mxu0
      %v3261 = vadd.f32 0.0, %v3260
      %v3262 = vpop.f32.mrb[0].mxu0
      %3263 = vmatprep.mubr.bf16.mxu0 0
      %3264 = vmatmul.mubr.bf16.gmra.mrb[0].mxu0 %v2914
      %v3265 = vpop.f32.mrb[0].mxu0
      %v3266 = vadd.f32 0.0, %v3265
      %v3267 = vpop.f32.mrb[0].mxu0
      %v3268 = vpop.f32.mrb[0].mxu0
      %v3269 = vadd.f32 0.0, %v3268
      %v3270 = vpop.f32.mrb[0].mxu0
      %3271 = vmatprep.mubr.bf16.mxu0 0
      %3272 = vmatmul.mubr.bf16.gmra.mrb[0].mxu0 %v2913
      %v3273 = vpop.f32.mrb[0].mxu0
      %v3274 = vadd.f32 0.0, %v3273
      %v3275 = vpop.f32.mrb[0].mxu0
      %v3276 = vpop.f32.mrb[0].mxu0
      %v3277 = vpop.f32.mrb[0].mxu0
      %3278 = vdwg.mxu0
      %v3298 = vrot.slane %v3202, 1
      %v3299 = vrot.slane %v3205, 1
      %v3300 = vsel %vm1638, %v3298, %v3299
      %v3301 = vrot.slane %v3210, 1
      %v3302 = vsel %vm1638, %v3299, %v3301
      %v3303 = vrot.slane %v3213, 1
      %v3304 = vsel %vm1638, %v3301, %v3303
      %v3305 = vrot.slane %v3218, 1
      %v3306 = vsel %vm1638, %v3303, %v3305
      %v3307 = vrot.slane %v3221, 1
      %v3308 = vsel %vm1638, %v3305, %v3307
      %v3309 = vrot.slane %v3226, 1
      %v3310 = vsel %vm1638, %v3307, %v3309
      %v3311 = vrot.slane %v3229, 1
      %v3312 = vsel %vm1638, %v3309, %v3311
      %v3313 = vrot.slane %v3234, 1
      %v3314 = vsel %vm1638, %v3311, %v3313
      %v3315 = vrot.slane %v3237, 1
      %v3316 = vsel %vm1638, %v3313, %v3315
      %v3317 = vrot.slane %v3242, 1
      %v3318 = vsel %vm1638, %v3315, %v3317
      %v3319 = vrot.slane %v3245, 1
      %v3320 = vsel %vm1638, %v3317, %v3319
      %v3321 = vrot.slane %v3250, 1
      %v3322 = vsel %vm1638, %v3319, %v3321
      %v3323 = vrot.slane %v3253, 1
      %v3324 = vsel %vm1638, %v3321, %v3323
      %v3325 = vrot.slane %v3258, 1
      %v3326 = vsel %vm1638, %v3323, %v3325
      %v3327 = vrot.slane %v3261, 1
      %v3328 = vsel %vm1638, %v3325, %v3327
      %v3329 = vrot.slane %v3266, 1
      %v3330 = vsel %vm1638, %v3327, %v3329
      %v3331 = vrot.slane %v3269, 1
      %v3332 = vsel %vm1638, %v3329, %v3331
      %v3333 = vrot.slane %v3274, 1
      %v3334 = vsel %vm1638, %v3331, %v3333
      %v3353 = vadd.f32 %v3084, %v3300
      %v3354 = vadd.f32 %v3085, %v3302
      %v3355 = vadd.f32 %v3086, %v3304
      %v3356 = vadd.f32 %v3087, %v3306
      %v3357 = vadd.f32 %v3088, %v3308
      %v3358 = vadd.f32 %v3089, %v3310
      %v3359 = vadd.f32 %v3090, %v3312
      %v3360 = vadd.f32 %v3091, %v3314
      %v3361 = vadd.f32 %v3092, %v3316
      %v3362 = vadd.f32 %v3093, %v3318
      %v3363 = vadd.f32 %v3094, %v3320
      %v3364 = vadd.f32 %v3095, %v3322
      %v3365 = vadd.f32 %v3096, %v3324
      %v3366 = vadd.f32 %v3097, %v3326
      %v3367 = vadd.f32 %v3098, %v3328
      %v3368 = vadd.f32 %v3099, %v3330
      %v3369 = vadd.f32 %v3100, %v3332
      %v3370 = vadd.f32 %v3101, %v3334
      %s3371 = scalar_lea.vmem %s5, 512
      %v3372 = vld [vmem:[%s3371] sm:$0xf]
      %v3373 = vld [vmem:[%s3371 + $0x4] sm:$0xf]
      %v3374 = vld [vmem:[%s3371 + $0x8] sm:$0xf]
      %v3375 = vld [vmem:[%s3371 + $0xc] sm:$0xf]
      %v3376 = vld [vmem:[%s3371 + $0x10] sm:$0xf]
      %v3377 = vld [vmem:[%s3371 + $0x14] sm:$0xf]
      %v3378 = vld [vmem:[%s3371 + $0x18] sm:$0xf]
      %v3379 = vld [vmem:[%s3371 + $0x1c] sm:$0xf]
      %v3380 = vld [vmem:[%s3371 + $0x20] sm:$0xf]
      %v3381 = vld [vmem:[%s3371 + $0x24] sm:$0xf]
      %v3382 = vld [vmem:[%s3371 + $0x28] sm:$0xf]
      %v3383 = vld [vmem:[%s3371 + $0x2c] sm:$0xf]
      %v3384 = vld [vmem:[%s3371 + $0x30] sm:$0xf]
      %v3385 = vld [vmem:[%s3371 + $0x34] sm:$0xf]
      %v3386 = vld [vmem:[%s3371 + $0x38] sm:$0xf]
      %v3387 = vld [vmem:[%s3371 + $0x3c] sm:$0xf]
      %v3404 = vunpack.c.l.b16 %v3372
      %v3405 = vunpack.c.l.b16 %v3373
      %v3406 = vunpack.c.l.b16 %v3374
      %v3407 = vunpack.c.l.b16 %v3375
      %v3408 = vunpack.c.l.b16 %v3376
      %v3409 = vunpack.c.l.b16 %v3377
      %v3410 = vunpack.c.l.b16 %v3378
      %v3411 = vunpack.c.l.b16 %v3379
      %v3412 = vunpack.c.l.b16 %v3380
      %v3413 = vunpack.c.l.b16 %v3381
      %v3414 = vunpack.c.l.b16 %v3382
      %v3415 = vunpack.c.l.b16 %v3383
      %v3416 = vunpack.c.l.b16 %v3384
      %v3417 = vunpack.c.l.b16 %v3385
      %v3418 = vunpack.c.l.b16 %v3386
      %v3419 = vunpack.c.l.b16 %v3387
      %v3420 = vpack.c.b16 %v3405, %v3404
      %v3421 = vpack.c.b16 %v3407, %v3406
      %v3422 = vpack.c.b16 %v3409, %v3408
      %v3423 = vpack.c.b16 %v3411, %v3410
      %v3424 = vpack.c.b16 %v3413, %v3412
      %v3425 = vpack.c.b16 %v3415, %v3414
      %v3426 = vpack.c.b16 %v3417, %v3416
      %v3427 = vpack.c.b16 %v3419, %v3418
      %3436 = vmatprep.subr.bf16.mxu0 0
      %3437 = vmatpush1.bf16.msra.mxu0 %v3420
      %3438 = vmatprep.subr.bf16.mxu0 0
      %3439 = vmatpush1.bf16.msra.mxu0 %v3421
      %3440 = vmatprep.subr.bf16.mxu0 0
      %3441 = vmatpush1.bf16.msra.mxu0 %v3422
      %3442 = vmatprep.subr.bf16.mxu0 0
      %3443 = vmatpush1.bf16.msra.mxu0 %v3423
      %3444 = vmatprep.subr.bf16.mxu0 0
      %3445 = vmatpush1.bf16.msra.mxu0 %v3424
      %3446 = vmatprep.subr.bf16.mxu0 0
      %3447 = vmatpush1.bf16.msra.mxu0 %v3425
      %3448 = vmatprep.subr.bf16.mxu0 0
      %3449 = vmatpush1.bf16.msra.mxu0 %v3426
      %3450 = vmatprep.subr.bf16.mxu0 0
      %3451 = vmatpush1.bf16.msra.mxu0 %v3427
      %3452 = vmatprep.subr.bf16.mxu0 0
      %3453 = vmatpush1.bf16.msra.mxu0 0
      %3454 = vmatprep.subr.bf16.mxu0 0
      %3455 = vmatpush1.bf16.msra.mxu0 0
      %3456 = vmatprep.subr.bf16.mxu0 0
      %3457 = vmatpush1.bf16.msra.mxu0 0
      %3458 = vmatprep.subr.bf16.mxu0 0
      %3459 = vmatpush1.bf16.msra.mxu0 0
      %3460 = vmatprep.subr.bf16.mxu0 0
      %3461 = vmatpush1.bf16.msra.mxu0 0
      %3462 = vmatprep.subr.bf16.mxu0 0
      %3463 = vmatpush1.bf16.msra.mxu0 0
      %3464 = vmatprep.subr.bf16.mxu0 0
      %3465 = vmatpush1.bf16.msra.mxu0 0
      %3466 = vmatprep.subr.bf16.mxu0 0
      %3467 = vmatpush1.bf16.msra.mxu0 0
      %3468 = vmatprep.mubr.bf16.mxu0 0
      %3469 = vmatmul.mubr.bf16.gmra.mrb[0].mxu0 %v2898
      %v3470 = vpop.f32.mrb[0].mxu0
      %v3471 = vadd.f32 0.0, %v3470
      %v3472 = vpop.f32.mrb[0].mxu0
      %v3473 = vpop.f32.mrb[0].mxu0
      %v3474 = vadd.f32 0.0, %v3473
      %v3475 = vpop.f32.mrb[0].mxu0
      %3476 = vmatprep.mubr.bf16.mxu0 0
      %3477 = vmatmul.mubr.bf16.gmra.mrb[0].mxu0 %v2900
      %v3478 = vpop.f32.mrb[0].mxu0
      %v3479 = vadd.f32 0.0, %v3478
      %v3480 = vpop.f32.mrb[0].mxu0
      %v3481 = vpop.f32.mrb[0].mxu0
      %v3482 = vadd.f32 0.0, %v3481
      %v3483 = vpop.f32.mrb[0].mxu0
      %3484 = vmatprep.mubr.bf16.mxu0 0
      %3485 = vmatmul.mubr.bf16.gmra.mrb[0].mxu0 %v2902
      %v3486 = vpop.f32.mrb[0].mxu0
      %v3487 = vadd.f32 0.0, %v3486
      %v3488 = vpop.f32.mrb[0].mxu0
      %v3489 = vpop.f32.mrb[0].mxu0
      %v3490 = vadd.f32 0.0, %v3489
      %v3491 = vpop.f32.mrb[0].mxu0
      %3492 = vmatprep.mubr.bf16.mxu0 0
      %3493 = vmatmul.mubr.bf16.gmra.mrb[0].mxu0 %v2904
      %v3494 = vpop.f32.mrb[0].mxu0
      %v3495 = vadd.f32 0.0, %v3494
      %v3496 = vpop.f32.mrb[0].mxu0
      %v3497 = vpop.f32.mrb[0].mxu0
      %v3498 = vadd.f32 0.0, %v3497
      %v3499 = vpop.f32.mrb[0].mxu0
      %3500 = vmatprep.mubr.bf16.mxu0 0
      %3501 = vmatmul.mubr.bf16.gmra.mrb[0].mxu0 %v2906
      %v3502 = vpop.f32.mrb[0].mxu0
      %v3503 = vadd.f32 0.0, %v3502
      %v3504 = vpop.f32.mrb[0].mxu0
      %v3505 = vpop.f32.mrb[0].mxu0
      %v3506 = vadd.f32 0.0, %v3505
      %v3507 = vpop.f32.mrb[0].mxu0
      %3508 = vmatprep.mubr.bf16.mxu0 0
      %3509 = vmatmul.mubr.bf16.gmra.mrb[0].mxu0 %v2908
      %v3510 = vpop.f32.mrb[0].mxu0
      %v3511 = vadd.f32 0.0, %v3510
      %v3512 = vpop.f32.mrb[0].mxu0
      %v3513 = vpop.f32.mrb[0].mxu0
      %v3514 = vadd.f32 0.0, %v3513
      %v3515 = vpop.f32.mrb[0].mxu0
      %3516 = vmatprep.mubr.bf16.mxu0 0
      %3517 = vmatmul.mubr.bf16.gmra.mrb[0].mxu0 %v2910
      %v3518 = vpop.f32.mrb[0].mxu0
      %v3519 = vadd.f32 0.0, %v3518
      %v3520 = vpop.f32.mrb[0].mxu0
      %v3521 = vpop.f32.mrb[0].mxu0
      %v3522 = vadd.f32 0.0, %v3521
      %v3523 = vpop.f32.mrb[0].mxu0
      %3524 = vmatprep.mubr.bf16.mxu0 0
      %3525 = vmatmul.mubr.bf16.gmra.mrb[0].mxu0 %v2912
      %v3526 = vpop.f32.mrb[0].mxu0
      %v3527 = vadd.f32 0.0, %v3526
      %v3528 = vpop.f32.mrb[0].mxu0
      %v3529 = vpop.f32.mrb[0].mxu0
      %v3530 = vadd.f32 0.0, %v3529
      %v3531 = vpop.f32.mrb[0].mxu0
      %3532 = vmatprep.mubr.bf16.mxu0 0
      %3533 = vmatmul.mubr.bf16.gmra.mrb[0].mxu0 %v2914
      %v3534 = vpop.f32.mrb[0].mxu0
      %v3535 = vadd.f32 0.0, %v3534
      %v3536 = vpop.f32.mrb[0].mxu0
      %v3537 = vpop.f32.mrb[0].mxu0
      %v3538 = vadd.f32 0.0, %v3537
      %v3539 = vpop.f32.mrb[0].mxu0
      %3540 = vmatprep.mubr.bf16.mxu0 0
      %3541 = vmatmul.mubr.bf16.gmra.mrb[0].mxu0 %v2913
      %v3542 = vpop.f32.mrb[0].mxu0
      %v3543 = vadd.f32 0.0, %v3542
      %v3544 = vpop.f32.mrb[0].mxu0
      %v3545 = vpop.f32.mrb[0].mxu0
      %v3546 = vpop.f32.mrb[0].mxu0
      %3547 = vdwg.mxu0
      %v3567 = vrot.slane %v3471, 2
      %v3568 = vrot.slane %v3474, 2
      %v3569 = vsel %vm1908, %v3567, %v3568
      %v3570 = vrot.slane %v3479, 2
      %v3571 = vsel %vm1908, %v3568, %v3570
      %v3572 = vrot.slane %v3482, 2
      %v3573 = vsel %vm1908, %v3570, %v3572
      %v3574 = vrot.slane %v3487, 2
      %v3575 = vsel %vm1908, %v3572, %v3574
      %v3576 = vrot.slane %v3490, 2
      %v3577 = vsel %vm1908, %v3574, %v3576
      %v3578 = vrot.slane %v3495, 2
      %v3579 = vsel %vm1908, %v3576, %v3578
      %v3580 = vrot.slane %v3498, 2
      %v3581 = vsel %vm1908, %v3578, %v3580
      %v3582 = vrot.slane %v3503, 2
      %v3583 = vsel %vm1908, %v3580, %v3582
      %v3584 = vrot.slane %v3506, 2
      %v3585 = vsel %vm1908, %v3582, %v3584
      %v3586 = vrot.slane %v3511, 2
      %v3587 = vsel %vm1908, %v3584, %v3586
      %v3588 = vrot.slane %v3514, 2
      %v3589 = vsel %vm1908, %v3586, %v3588
      %v3590 = vrot.slane %v3519, 2
      %v3591 = vsel %vm1908, %v3588, %v3590
      %v3592 = vrot.slane %v3522, 2
      %v3593 = vsel %vm1908, %v3590, %v3592
      %v3594 = vrot.slane %v3527, 2
      %v3595 = vsel %vm1908, %v3592, %v3594
      %v3596 = vrot.slane %v3530, 2
      %v3597 = vsel %vm1908, %v3594, %v3596
      %v3598 = vrot.slane %v3535, 2
      %v3599 = vsel %vm1908, %v3596, %v3598
      %v3600 = vrot.slane %v3538, 2
      %v3601 = vsel %vm1908, %v3598, %v3600
      %v3602 = vrot.slane %v3543, 2
      %v3603 = vsel %vm1908, %v3600, %v3602
      %v3622 = vadd.f32 %v3353, %v3569
      %v3623 = vadd.f32 %v3354, %v3571
      %v3624 = vadd.f32 %v3355, %v3573
      %v3625 = vadd.f32 %v3356, %v3575
      %v3626 = vadd.f32 %v3357, %v3577
      %v3627 = vadd.f32 %v3358, %v3579
      %v3628 = vadd.f32 %v3359, %v3581
      %v3629 = vadd.f32 %v3360, %v3583
      %v3630 = vadd.f32 %v3361, %v3585
      %v3631 = vadd.f32 %v3362, %v3587
      %v3632 = vadd.f32 %v3363, %v3589
      %v3633 = vadd.f32 %v3364, %v3591
      %v3634 = vadd.f32 %v3365, %v3593
      %v3635 = vadd.f32 %v3366, %v3595
      %v3636 = vadd.f32 %v3367, %v3597
      %v3637 = vadd.f32 %v3368, %v3599
      %v3638 = vadd.f32 %v3369, %v3601
      %v3639 = vadd.f32 %v3370, %v3603
      %v3640 = vld [vmem:[%s6] sm:$0x1]
      %v3642 = vlaneseq
      %v3643 = vshrl.u32 %v3642, 7
      %v3644 = vsub.s32 0, %v3643
      %v3645 = vrot.slane %v3640, %v3644
      %v3647 = vadd.f32 %v3622, %v3645
      %v3648 = vadd.f32 %v3623, %v3645
      %v3649 = vadd.f32 %v3624, %v3645
      %v3650 = vadd.f32 %v3625, %v3645
      %v3651 = vadd.f32 %v3626, %v3645
      %v3652 = vadd.f32 %v3627, %v3645
      %v3653 = vadd.f32 %v3628, %v3645
      %v3654 = vadd.f32 %v3629, %v3645
      %v3655 = vadd.f32 %v3630, %v3645
      %v3656 = vadd.f32 %v3631, %v3645
      %v3657 = vadd.f32 %v3632, %v3645
      %v3658 = vadd.f32 %v3633, %v3645
      %v3659 = vadd.f32 %v3634, %v3645
      %v3660 = vadd.f32 %v3635, %v3645
      %v3661 = vadd.f32 %v3636, %v3645
      %v3662 = vadd.f32 %v3637, %v3645
      %v3663 = vadd.f32 %v3638, %v3645
      %v3664 = vadd.f32 %v3639, %v3645
      %v3665 = vmax.f32 %v3647, 0.0
      %v3666 = vmax.f32 %v3648, 0.0
      %v3667 = vmax.f32 %v3649, 0.0
      %v3668 = vmax.f32 %v3650, 0.0
      %v3669 = vmax.f32 %v3651, 0.0
      %v3670 = vmax.f32 %v3652, 0.0
      %v3671 = vmax.f32 %v3653, 0.0
      %v3672 = vmax.f32 %v3654, 0.0
      %v3673 = vmax.f32 %v3655, 0.0
      %v3674 = vmax.f32 %v3656, 0.0
      %v3675 = vmax.f32 %v3657, 0.0
      %v3676 = vmax.f32 %v3658, 0.0
      %v3677 = vmax.f32 %v3659, 0.0
      %v3678 = vmax.f32 %v3660, 0.0
      %v3679 = vmax.f32 %v3661, 0.0
      %v3680 = vmax.f32 %v3662, 0.0
      %v3681 = vmax.f32 %v3663, 0.0
      %v3682 = vmax.f32 %v3664, 0.0
      %v3686 = vrot.slane %v3665, 1
      %v3687 = vrot.slane %v3666, 1
      %v3688 = vsel %vm1638, %v3686, %v3687
      %v3689 = vrot.slane %v3667, 1
      %v3690 = vsel %vm1638, %v3687, %v3689
      %vm3695 = vcmask 1044480
      %v3696 = vrot.slane %v3667, 3
      %v3697 = vrot.slane %v3668, 3
      %v3698 = vsel %vm3695, %v3696, %v3697
      %v3699 = vrot.slane %v3669, 3
      %v3700 = vsel %vm3695, %v3697, %v3699
      %vm3705 = vcmask 1042432
      %v3706 = vrot.slane %v3669, 5
      %v3707 = vrot.slane %v3670, 5
      %v3708 = vsel %vm3705, %v3706, %v3707
      %v3709 = vrot.slane %v3671, 5
      %v3710 = vsel %vm3705, %v3707, %v3709
      %vm3715 = vcmask 1040384
      %v3716 = vrot.slane %v3671, 7
      %v3717 = vrot.slane %v3672, 7
      %v3718 = vsel %vm3715, %v3716, %v3717
      %v3719 = vrot.slane %v3673, 7
      %v3720 = vsel %vm3715, %v3717, %v3719
      %v3726 = vrot.slane %v3674, 1
      %v3727 = vrot.slane %v3675, 1
      %v3728 = vsel %vm1638, %v3726, %v3727
      %v3729 = vrot.slane %v3676, 1
      %v3730 = vsel %vm1638, %v3727, %v3729
      %v3735 = vrot.slane %v3676, 3
      %v3736 = vrot.slane %v3677, 3
      %v3737 = vsel %vm3695, %v3735, %v3736
      %v3738 = vrot.slane %v3678, 3
      %v3739 = vsel %vm3695, %v3736, %v3738
      %v3744 = vrot.slane %v3678, 5
      %v3745 = vrot.slane %v3679, 5
      %v3746 = vsel %vm3705, %v3744, %v3745
      %v3747 = vrot.slane %v3680, 5
      %v3748 = vsel %vm3705, %v3745, %v3747
      %v3753 = vrot.slane %v3680, 7
      %v3754 = vrot.slane %v3681, 7
      %v3755 = vsel %vm3715, %v3753, %v3754
      %v3756 = vrot.slane %v3682, 7
      %v3757 = vsel %vm3715, %v3754, %v3756
      %v3760 = vpack.c.bf16 %v3690, %v3688
      %v3761 = vpack.c.bf16 %v3700, %v3698
      %v3762 = vpack.c.bf16 %v3710, %v3708
      %v3763 = vpack.c.bf16 %v3720, %v3718
      %v3764 = vpack.c.bf16 %v3730, %v3728
      %v3765 = vpack.c.bf16 %v3739, %v3737
      %v3766 = vpack.c.bf16 %v3748, %v3746
      %v3767 = vpack.c.bf16 %v3757, %v3755
      %v3768 = vld [vmem:[%s7] sm:$0xf]
      %v3769 = vld [vmem:[%s7 + $0x4] sm:$0xf]
      %v3770 = vld [vmem:[%s7 + $0x8] sm:$0xf]
      %v3771 = vld [vmem:[%s7 + $0xc] sm:$0xf]
      %v3772 = vld [vmem:[%s7 + $0x10] sm:$0xf]
      %v3773 = vld [vmem:[%s7 + $0x14] sm:$0xf]
      %v3774 = vld [vmem:[%s7 + $0x18] sm:$0xf]
      %v3775 = vld [vmem:[%s7 + $0x1c] sm:$0xf]
      %v3776 = vld [vmem:[%s7 + $0x20] sm:$0xf]
      %v3777 = vld [vmem:[%s7 + $0x24] sm:$0xf]
      %v3778 = vld [vmem:[%s7 + $0x28] sm:$0xf]
      %v3779 = vld [vmem:[%s7 + $0x2c] sm:$0xf]
      %v3780 = vld [vmem:[%s7 + $0x30] sm:$0xf]
      %v3781 = vld [vmem:[%s7 + $0x34] sm:$0xf]
      %v3782 = vld [vmem:[%s7 + $0x38] sm:$0xf]
      %v3783 = vld [vmem:[%s7 + $0x3c] sm:$0xf]
      %v3784 = vld [vmem:[%s8] sm:$0x1]
      %v3786 = vlaneseq
      %v3787 = vshrl.u32 %v3786, 7
      %v3788 = vsub.s32 0, %v3787
      %v3789 = vrot.slane %v3784, %v3788
      %v3807 = vunpack.c.l.b16 %v3768
      %v3808 = vunpack.c.l.b16 %v3769
      %v3809 = vunpack.c.l.b16 %v3770
      %v3810 = vunpack.c.l.b16 %v3771
      %v3811 = vunpack.c.l.b16 %v3772
      %v3812 = vunpack.c.l.b16 %v3773
      %v3813 = vunpack.c.l.b16 %v3774
      %v3814 = vunpack.c.l.b16 %v3775
      %v3815 = vunpack.c.l.b16 %v3776
      %v3816 = vunpack.c.l.b16 %v3777
      %v3817 = vunpack.c.l.b16 %v3778
      %v3818 = vunpack.c.l.b16 %v3779
      %v3819 = vunpack.c.l.b16 %v3780
      %v3820 = vunpack.c.l.b16 %v3781
      %v3821 = vunpack.c.l.b16 %v3782
      %v3822 = vunpack.c.l.b16 %v3783
      %v3823 = vpack.c.b16 %v3808, %v3807
      %v3824 = vpack.c.b16 %v3810, %v3809
      %v3825 = vpack.c.b16 %v3812, %v3811
      %v3826 = vpack.c.b16 %v3814, %v3813
      %v3827 = vpack.c.b16 %v3816, %v3815
      %v3828 = vpack.c.b16 %v3818, %v3817
      %v3829 = vpack.c.b16 %v3820, %v3819
      %v3830 = vpack.c.b16 %v3822, %v3821
      %3839 = vmatprep.subr.bf16.mxu0 0
      %3840 = vmatpush1.bf16.msra.mxu0 %v3823
      %3841 = vmatprep.subr.bf16.mxu0 0
      %3842 = vmatpush1.bf16.msra.mxu0 %v3824
      %3843 = vmatprep.subr.bf16.mxu0 0
      %3844 = vmatpush1.bf16.msra.mxu0 %v3825
      %3845 = vmatprep.subr.bf16.mxu0 0
      %3846 = vmatpush1.bf16.msra.mxu0 %v3826
      %3847 = vmatprep.subr.bf16.mxu0 0
      %3848 = vmatpush1.bf16.msra.mxu0 %v3827
      %3849 = vmatprep.subr.bf16.mxu0 0
      %3850 = vmatpush1.bf16.msra.mxu0 %v3828
      %3851 = vmatprep.subr.bf16.mxu0 0
      %3852 = vmatpush1.bf16.msra.mxu0 %v3829
      %3853 = vmatprep.subr.bf16.mxu0 0
      %3854 = vmatpush1.bf16.msra.mxu0 %v3830
      %3855 = vmatprep.subr.bf16.mxu0 0
      %3856 = vmatpush1.bf16.msra.mxu0 0
      %3857 = vmatprep.subr.bf16.mxu0 0
      %3858 = vmatpush1.bf16.msra.mxu0 0
      %3859 = vmatprep.subr.bf16.mxu0 0
      %3860 = vmatpush1.bf16.msra.mxu0 0
      %3861 = vmatprep.subr.bf16.mxu0 0
      %3862 = vmatpush1.bf16.msra.mxu0 0
      %3863 = vmatprep.subr.bf16.mxu0 0
      %3864 = vmatpush1.bf16.msra.mxu0 0
      %3865 = vmatprep.subr.bf16.mxu0 0
      %3866 = vmatpush1.bf16.msra.mxu0 0
      %3867 = vmatprep.subr.bf16.mxu0 0
      %3868 = vmatpush1.bf16.msra.mxu0 0
      %3869 = vmatprep.subr.bf16.mxu0 0
      %3870 = vmatpush1.bf16.msra.mxu0 0
      %3871 = vmatprep.mubr.bf16.mxu0 0
      %3872 = vmatmul.mubr.bf16.gmra.mrb[0].mxu0 %v3760
      %v3873 = vpop.f32.mrb[0].mxu0
      %v3874 = vadd.f32 %v3789, %v3873
      %v3875 = vpop.f32.mrb[0].mxu0
      %v3876 = vpop.f32.mrb[0].mxu0
      %v3877 = vadd.f32 %v3789, %v3876
      %v3878 = vpop.f32.mrb[0].mxu0
      %3879 = vmatprep.mubr.bf16.mxu0 0
      %3880 = vmatmul.mubr.bf16.gmra.mrb[0].mxu0 %v3761
      %v3881 = vpop.f32.mrb[0].mxu0
      %v3882 = vadd.f32 %v3789, %v3881
      %v3883 = vpop.f32.mrb[0].mxu0
      %v3884 = vpop.f32.mrb[0].mxu0
      %v3885 = vadd.f32 %v3789, %v3884
      %v3886 = vpop.f32.mrb[0].mxu0
      %3887 = vmatprep.mubr.bf16.mxu0 0
      %3888 = vmatmul.mubr.bf16.gmra.mrb[0].mxu0 %v3762
      %v3889 = vpop.f32.mrb[0].mxu0
      %v3890 = vadd.f32 %v3789, %v3889
      %v3891 = vpop.f32.mrb[0].mxu0
      %v3892 = vpop.f32.mrb[0].mxu0
      %v3893 = vadd.f32 %v3789, %v3892
      %v3894 = vpop.f32.mrb[0].mxu0
      %3895 = vmatprep.mubr.bf16.mxu0 0
      %3896 = vmatmul.mubr.bf16.gmra.mrb[0].mxu0 %v3763
      %v3897 = vpop.f32.mrb[0].mxu0
      %v3898 = vadd.f32 %v3789, %v3897
      %v3899 = vpop.f32.mrb[0].mxu0
      %v3900 = vpop.f32.mrb[0].mxu0
      %v3901 = vadd.f32 %v3789, %v3900
      %v3902 = vpop.f32.mrb[0].mxu0
      %3903 = vmatprep.mubr.bf16.mxu0 0
      %3904 = vmatmul.mubr.bf16.gmra.mrb[0].mxu0 %v3764
      %v3905 = vpop.f32.mrb[0].mxu0
      %v3906 = vadd.f32 %v3789, %v3905
      %v3907 = vpop.f32.mrb[0].mxu0
      %v3908 = vpop.f32.mrb[0].mxu0
      %v3909 = vadd.f32 %v3789, %v3908
      %v3910 = vpop.f32.mrb[0].mxu0
      %3911 = vmatprep.mubr.bf16.mxu0 0
      %3912 = vmatmul.mubr.bf16.gmra.mrb[0].mxu0 %v3765
      %v3913 = vpop.f32.mrb[0].mxu0
      %v3914 = vadd.f32 %v3789, %v3913
      %v3915 = vpop.f32.mrb[0].mxu0
      %v3916 = vpop.f32.mrb[0].mxu0
      %v3917 = vadd.f32 %v3789, %v3916
      %v3918 = vpop.f32.mrb[0].mxu0
      %3919 = vmatprep.mubr.bf16.mxu0 0
      %3920 = vmatmul.mubr.bf16.gmra.mrb[0].mxu0 %v3766
      %v3921 = vpop.f32.mrb[0].mxu0
      %v3922 = vadd.f32 %v3789, %v3921
      %v3923 = vpop.f32.mrb[0].mxu0
      %v3924 = vpop.f32.mrb[0].mxu0
      %v3925 = vadd.f32 %v3789, %v3924
      %v3926 = vpop.f32.mrb[0].mxu0
      %3927 = vmatprep.mubr.bf16.mxu0 0
      %3928 = vmatmul.mubr.bf16.gmra.mrb[0].mxu0 %v3767
      %v3929 = vpop.f32.mrb[0].mxu0
      %v3930 = vadd.f32 %v3789, %v3929
      %v3931 = vpop.f32.mrb[0].mxu0
      %v3932 = vpop.f32.mrb[0].mxu0
      %v3933 = vadd.f32 %v3789, %v3932
      %v3934 = vpop.f32.mrb[0].mxu0
      %3935 = vdwg.mxu0
      %v3936 = vld [vmem:[%s454] sm:$0xf]
      %v3937 = vld [vmem:[%s454 + $0x4] sm:$0xf]
      %v3938 = vld [vmem:[%s454 + $0x8] sm:$0xf]
      %v3939 = vld [vmem:[%s454 + $0xc] sm:$0xf]
      %v3940 = vld [vmem:[%s454 + $0x10] sm:$0xf]
      %v3941 = vld [vmem:[%s454 + $0x14] sm:$0xf]
      %v3942 = vld [vmem:[%s454 + $0x18] sm:$0xf]
      %v3943 = vld [vmem:[%s454 + $0x1c] sm:$0xf]
      %v3944 = vld [vmem:[%s454 + $0x20] sm:$0xf]
      %v3945 = vld [vmem:[%s454 + $0x24] sm:$0xf]
      %v3946 = vld [vmem:[%s454 + $0x28] sm:$0xf]
      %v3947 = vld [vmem:[%s454 + $0x2c] sm:$0xf]
      %v3948 = vld [vmem:[%s454 + $0x30] sm:$0xf]
      %v3949 = vld [vmem:[%s454 + $0x34] sm:$0xf]
      %v3950 = vld [vmem:[%s454 + $0x38] sm:$0xf]
      %v3951 = vld [vmem:[%s454 + $0x3c] sm:$0xf]
      %v3952 = vunpack.c.l.bf16 %v3936
      %v3953 = vunpack.c.l.bf16 %v3937
      %v3954 = vunpack.c.l.bf16 %v3938
      %v3955 = vunpack.c.l.bf16 %v3939
      %v3956 = vunpack.c.l.bf16 %v3940
      %v3957 = vunpack.c.l.bf16 %v3941
      %v3958 = vunpack.c.l.bf16 %v3942
      %v3959 = vunpack.c.l.bf16 %v3943
      %v3960 = vunpack.c.l.bf16 %v3944
      %v3961 = vunpack.c.l.bf16 %v3945
      %v3962 = vunpack.c.l.bf16 %v3946
      %v3963 = vunpack.c.l.bf16 %v3947
      %v3964 = vunpack.c.l.bf16 %v3948
      %v3965 = vunpack.c.l.bf16 %v3949
      %v3966 = vunpack.c.l.bf16 %v3950
      %v3967 = vunpack.c.l.bf16 %v3951
      %v3968 = vadd.f32 %v3874, %v3952
      %v3969 = vadd.f32 %v3877, %v3953
      %v3970 = vadd.f32 %v3882, %v3954
      %v3971 = vadd.f32 %v3885, %v3955
      %v3972 = vadd.f32 %v3890, %v3956
      %v3973 = vadd.f32 %v3893, %v3957
      %v3974 = vadd.f32 %v3898, %v3958
      %v3975 = vadd.f32 %v3901, %v3959
      %v3976 = vadd.f32 %v3906, %v3960
      %v3977 = vadd.f32 %v3909, %v3961
      %v3978 = vadd.f32 %v3914, %v3962
      %v3979 = vadd.f32 %v3917, %v3963
      %v3980 = vadd.f32 %v3922, %v3964
      %v3981 = vadd.f32 %v3925, %v3965
      %v3982 = vadd.f32 %v3930, %v3966
      %v3983 = vadd.f32 %v3933, %v3967
      %v3984 = vmax.f32 %v3968, 0.0
      %v3985 = vmax.f32 %v3969, 0.0
      %v3986 = vmax.f32 %v3970, 0.0
      %v3987 = vmax.f32 %v3971, 0.0
      %v3988 = vmax.f32 %v3972, 0.0
      %v3989 = vmax.f32 %v3973, 0.0
      %v3990 = vmax.f32 %v3974, 0.0
      %v3991 = vmax.f32 %v3975, 0.0
      %v3992 = vmax.f32 %v3976, 0.0
      %v3993 = vmax.f32 %v3977, 0.0
      %v3994 = vmax.f32 %v3978, 0.0
      %v3995 = vmax.f32 %v3979, 0.0
      %v3996 = vmax.f32 %v3980, 0.0
      %v3997 = vmax.f32 %v3981, 0.0
      %v3998 = vmax.f32 %v3982, 0.0
      %v3999 = vmax.f32 %v3983, 0.0
      %v4000 = vpack.c.bf16 %v3985, %v3984
      %v4001 = vpack.c.bf16 %v3987, %v3986
      %v4002 = vpack.c.bf16 %v3989, %v3988
      %v4003 = vpack.c.bf16 %v3991, %v3990
      %v4004 = vpack.c.bf16 %v3993, %v3992
      %v4005 = vpack.c.bf16 %v3995, %v3994
      %v4006 = vpack.c.bf16 %v3997, %v3996
      %v4007 = vpack.c.bf16 %v3999, %v3998
      %v4016 = vunpack.c.l.b16 %v4000
      %v4017 = vunpack.c.h.b16 %v4000
      %v4018 = vunpack.c.l.b16 %v4001
      %v4019 = vunpack.c.h.b16 %v4001
      %v4020 = vunpack.c.l.b16 %v4002
      %v4021 = vunpack.c.h.b16 %v4002
      %v4022 = vunpack.c.l.b16 %v4003
      %v4023 = vunpack.c.h.b16 %v4003
      %v4024 = vunpack.c.l.b16 %v4004
      %v4025 = vunpack.c.h.b16 %v4004
      %v4026 = vunpack.c.l.b16 %v4005
      %v4027 = vunpack.c.h.b16 %v4005
      %v4028 = vunpack.c.l.b16 %v4006
      %v4029 = vunpack.c.h.b16 %v4006
      %v4030 = vunpack.c.l.b16 %v4007
      %v4031 = vunpack.c.h.b16 %v4007
      %v4032 = vpack.c.b16 %v4016, %v4016
      %v4033 = vpack.c.b16 %v4017, %v4017
      %v4034 = vpack.c.b16 %v4018, %v4018
      %v4035 = vpack.c.b16 %v4019, %v4019
      %v4036 = vpack.c.b16 %v4020, %v4020
      %v4037 = vpack.c.b16 %v4021, %v4021
      %v4038 = vpack.c.b16 %v4022, %v4022
      %v4039 = vpack.c.b16 %v4023, %v4023
      %v4040 = vpack.c.b16 %v4024, %v4024
      %v4041 = vpack.c.b16 %v4025, %v4025
      %v4042 = vpack.c.b16 %v4026, %v4026
      %v4043 = vpack.c.b16 %v4027, %v4027
      %v4044 = vpack.c.b16 %v4028, %v4028
      %v4045 = vpack.c.b16 %v4029, %v4029
      %v4046 = vpack.c.b16 %v4030, %v4030
      %v4047 = vpack.c.b16 %v4031, %v4031
      %4064 = vst [vmem:[%s499] sm:$0xf] %v4032
      %4065 = vst [vmem:[%s499 + $0x4] sm:$0xf] %v4033
      %4066 = vst [vmem:[%s499 + $0x8] sm:$0xf] %v4034
      %4067 = vst [vmem:[%s499 + $0xc] sm:$0xf] %v4035
      %4068 = vst [vmem:[%s499 + $0x10] sm:$0xf] %v4036
      %4069 = vst [vmem:[%s499 + $0x14] sm:$0xf] %v4037
      %4070 = vst [vmem:[%s499 + $0x18] sm:$0xf] %v4038
      %4071 = vst [vmem:[%s499 + $0x1c] sm:$0xf] %v4039
      %4072 = vst [vmem:[%s499 + $0x20] sm:$0xf] %v4040
      %4073 = vst [vmem:[%s499 + $0x24] sm:$0xf] %v4041
      %4074 = vst [vmem:[%s499 + $0x28] sm:$0xf] %v4042
      %4075 = vst [vmem:[%s499 + $0x2c] sm:$0xf] %v4043
      %4076 = vst [vmem:[%s499 + $0x30] sm:$0xf] %v4044
      %4077 = vst [vmem:[%s499 + $0x34] sm:$0xf] %v4045
      %4078 = vst [vmem:[%s499 + $0x38] sm:$0xf] %v4046
      %4079 = vst [vmem:[%s499 + $0x3c] sm:$0xf] %v4047
      %s4080 = smul.u32 8, %s25
      %p4081 = scmp.lt.s32.totalorder %s24, 1
      %s4082 = scalar_select %p4081, %s24, 1
      %p4083 = scmp.lt.s32.totalorder %s4080, 15
      %s4084 = scalar_select %p4083, %s4080, 15
      %s4085 = smul.addr %s4084, 2
      %s4086 = smul.addr %s4082, 32
      %s4087 = sadd.s32 %s4085, %s4086
      %s4088 = smul.addr %s4087, 4
      %s4089 = scalar_lea.vmem %s9, %s4088
      // Predicated region
      $region65: #{bottleneck_forward.1} parent=55 // pred_check
        %p4090 = pneg %p278
      $region66: #{bottleneck_forward.1} parent=55 // pred_check_branch
        %4092 = sbr.rel (%p4090) target = $region68
      $region67: #{bottleneck_forward.1} parent=55 // pred_region
        %s4093 = smul.u32 8, %s25
      $region68: #{bottleneck_forward.1} parent=55 // pred_fallthru
        _
    $region56: #{bottleneck_forward.1} parent=5 // pred_fallthru
      _
    %p4094 = scmp.le.s32.totalorder 2, %s15
    // Predicated region
    $region69: #{bottleneck_forward.1} parent=5 // pred_check
      %p4095 = pneg %p4094
    $region70: #{bottleneck_forward.1} parent=5 // pred_check_branch
      %4097 = sbr.rel (%p4095) target = $region72
    $region71: #{bottleneck_forward.1} parent=5 // pred_region
      %s4098 = ssub.s32 %s15, 2
      // Predicated region
      $region73: #{bottleneck_forward.1} parent=71 // pred_check
        %p4099 = pneg %p284
      $region74: #{bottleneck_forward.1} parent=71 // pred_check_branch
        %4101 = sbr.rel (%p4099) target = $region76
      $region75: #{bottleneck_forward.1} parent=71 // pred_region
        %s4102 = smul.u32 8, %s27
        %p4103 = scmp.lt.s32.totalorder %s26, 1
        %s4104 = scalar_select %p4103, %s26, 1
        %p4105 = scmp.lt.s32.totalorder %s4102, 15
        %s4106 = scalar_select %p4105, %s4102, 15
        %s4107 = smul.addr %s4106, 2
        %s4108 = smul.addr %s4104, 32
        %s4109 = sadd.s32 %s4107, %s4108
        %s4110 = smul.addr %s4109, 4
        %s4111 = scalar_lea.vmem %s9, %s4110
      $region76: #{bottleneck_forward.1} parent=71 // pred_fallthru
        _
    $region72: #{bottleneck_forward.1} parent=5 // pred_fallthru
      _
  $region6: #{bottleneck_forward.1} parent=0 // loop_footer
    %s19 = sadd.s32 1, %s15
  $region7: #{bottleneck_forward.1} parent=0 // loop_footer_branch
    %14 = sbr.rel target = $region3
  $region8: #{bottleneck_forward.1} parent=0 // loop_exit
    _

</llo_original>
